<compile_context>
chip_gen: v7x
topology: tpu7x:2x2x1
jax: 0.10.0
libtpu: 0.0.40
codegen_flags: <defaults>
</compile_context>

<pallas_src>
import math
from functools import partial

import jax
import jax.numpy as jnp
from jax.experimental import pallas as pl
from jax.experimental.pallas import tpu as pltpu  # noqa: F401  (TPU backend assumed)

# ----- small synthetic DistilBERT config (no config.json / checkpoint is read) -----
VOCAB = 100
VOCAB_PAD = 128          # pad vocab to a full lane width -> aligned MXU K-dim
MAX_POS = 64
DIM = 32
N_HEADS = 4
HEAD_DIM = DIM // N_HEADS
N_LAYERS = 2
HIDDEN_DIM = 64
NUM_LABELS = 2
LN_EPS = 1e-12
ATTN_SCALE = 1.0 / math.sqrt(HEAD_DIM)
NEG_INF = -1e30


# --------------------------- in-kernel math helpers (value level) ---------------------------

def _layer_norm(x, g, b):
    mu = jnp.mean(x, axis=-1, keepdims=True)
    xc = x - mu
    var = jnp.mean(xc * xc, axis=-1, keepdims=True)
    return xc * jax.lax.rsqrt(var + jnp.float32(LN_EPS)) * g + b


def _erf(x):
    # Abramowitz & Stegun 7.1.26 (|err| <= 1.5e-7); stands in for exact-erf GELU using
    # only ops with guaranteed Mosaic lowerings (exp/abs/mul/add/div/where).
    p = jnp.float32(0.3275911)
    a1 = jnp.float32(0.254829592)
    a2 = jnp.float32(-0.284496736)
    a3 = jnp.float32(1.421413741)
    a4 = jnp.float32(-1.453152027)
    a5 = jnp.float32(1.061405429)
    ax = jnp.abs(x)
    t = 1.0 / (1.0 + p * ax)
    poly = ((((a5 * t + a4) * t + a3) * t + a2) * t + a1) * t
    y = 1.0 - poly * jnp.exp(-ax * ax)
    return jnp.where(x >= 0, y, -y)


def _gelu(x):
    # exact-erf GELU (HF DistilBERT "gelu"), via the erf approximation above
    return jnp.float32(0.5) * x * (1.0 + _erf(x * jnp.float32(1.0 / math.sqrt(2.0))))


# --------------------------- the single fused kernel ---------------------------

def _distilbert_fused_kernel(
    tok1h_ref, pemb_ref, bias_ref, hm_ref, bsum_ref, pool_ref, y1h_ref,
    wemb_ref, eg_ref, eb_ref,
    qkvw_ref, qkvb_ref, ow_ref, ob_ref, sag_ref, sab_ref,
    f1w_ref, f1b_ref, f2w_ref, f2b_ref, og_ref, obeta_ref,
    prew_ref, preb_ref, clsw_ref, clsb_ref,
    logits_ref, probs_ref, loss_ref,
    *, B,
):
    f32 = jnp.float32

    # ---------- embeddings: lane-aligned one-hot matmul + position tile ----------
    word = jnp.dot(tok1h_ref[...], wemb_ref[...], preferred_element_type=f32)   # (T, DIM)
    pos = jnp.tile(pemb_ref[...], (B, 1))                                       # row i -> pos i % S
    h = _layer_norm(word + pos, eg_ref[...], eb_ref[...])

    bias = bias_ref[...]     # (T, H*T) additive mask (batch block-diag + key padding), tiled per head
    hm = hm_ref[...]         # (H*T, DIM) head-block mask
    bsum = bsum_ref[...]     # (H*T, H*T) per-head-block column summer

    # ---------- transformer layers (statically unrolled) ----------
    for layer in range(N_LAYERS):
        x = h
        qkv = jnp.dot(x, qkvw_ref[layer], preferred_element_type=f32) + qkvb_ref[layer]
        q = qkv[:, 0 * DIM:1 * DIM] * f32(ATTN_SCALE)
        k = qkv[:, 1 * DIM:2 * DIM]
        v = qkv[:, 2 * DIM:3 * DIM]

        # All heads in one matmul: stack K along sublanes, zero cross-head feature dims.
        kb = jnp.tile(k, (N_HEADS, 1)) * hm                                      # (H*T, DIM)
        s = jax.lax.dot_general(q, kb, (((1,), (1,)), ((), ())),
                                preferred_element_type=f32) + bias               # (T, H*T)
        # Any per-row shift is a valid softmax stabilizer; use the global row max so no
        # per-head reshape/relayout is needed (scores here are tiny, no underflow risk).
        s = s - jnp.max(s, axis=-1, keepdims=True)
        e = jnp.exp(s)
        den = jnp.dot(e, bsum, preferred_element_type=f32)                       # per-head-block sums
        p = e / den                                                              # exact division

        vb = jnp.tile(v, (N_HEADS, 1)) * hm                                      # (H*T, DIM)
        ctx = jnp.dot(p, vb, preferred_element_type=f32)                         # (T, DIM), heads merged
        attn_out = jnp.dot(ctx, ow_ref[layer], preferred_element_type=f32) + ob_ref[layer]

        h = _layer_norm(attn_out + x, sag_ref[layer], sab_ref[layer])

        ff = jnp.dot(h, f1w_ref[layer], preferred_element_type=f32) + f1b_ref[layer]
        ff = _gelu(ff)
        ff = jnp.dot(ff, f2w_ref[layer], preferred_element_type=f32) + f2b_ref[layer]
        h = _layer_norm(ff + h, og_ref[layer], obeta_ref[layer])

    # ---------- CLS pooling + pre_classifier + classifier + softmax / CE ----------
    pooled = jnp.dot(pool_ref[...], h, preferred_element_type=f32)               # (B, DIM)
    pooled = jnp.dot(pooled, prew_ref[...], preferred_element_type=f32) + preb_ref[...]
    pooled = jnp.maximum(pooled, f32(0.0))                                       # ReLU; dropout = identity
    logits = jnp.dot(pooled, clsw_ref[...], preferred_element_type=f32) + clsb_ref[...]
    logits_ref[...] = logits

    zmax = jnp.max(logits, axis=-1, keepdims=True)
    e2 = jnp.exp(logits - zmax)
    den2 = jnp.sum(e2, axis=-1, keepdims=True)
    probs_ref[...] = e2 / den2
    logp = (logits - zmax) - jnp.log(den2)
    nll = -jnp.sum(y1h_ref[...] * logp, axis=-1, keepdims=True)                  # (B, 1)
    loss_ref[...] = jnp.sum(nll, axis=0, keepdims=True) * f32(1.0 / B)


# --------------------------- model glue ---------------------------

def init_params(key):
    ks = iter(jax.random.split(key, 16))

    def nrm(shape):
        return 0.02 * jax.random.normal(next(ks), shape, dtype=jnp.float32)

    def ones(shape):
        return jnp.ones(shape, jnp.float32)

    def zeros(shape):
        return jnp.zeros(shape, jnp.float32)

    return {
        "word_emb": nrm((VOCAB, DIM)),
        "pos_emb": nrm((MAX_POS, DIM)),
        "emb_ln_g": ones((1, DIM)), "emb_ln_b": zeros((1, DIM)),
        # per-layer weights stacked along a leading layer axis; Q/K/V concatenated
        "qkv_w": nrm((N_LAYERS, DIM, 3 * DIM)), "qkv_b": zeros((N_LAYERS, 1, 3 * DIM)),
        "o_w": nrm((N_LAYERS, DIM, DIM)), "o_b": zeros((N_LAYERS, 1, DIM)),
        "sa_ln_g": ones((N_LAYERS, 1, DIM)), "sa_ln_b": zeros((N_LAYERS, 1, DIM)),
        "ffn1_w": nrm((N_LAYERS, DIM, HIDDEN_DIM)), "ffn1_b": zeros((N_LAYERS, 1, HIDDEN_DIM)),
        "ffn2_w": nrm((N_LAYERS, HIDDEN_DIM, DIM)), "ffn2_b": zeros((N_LAYERS, 1, DIM)),
        "out_ln_g": ones((N_LAYERS, 1, DIM)), "out_ln_b": zeros((N_LAYERS, 1, DIM)),
        "pre_w": nrm((DIM, DIM)), "pre_b": zeros((1, DIM)),
        "cls_w": nrm((DIM, NUM_LABELS)), "cls_b": zeros((1, NUM_LABELS)),
    }


def distilbert_forward(params, batch_seqs, batch_seq_masks, batch_seq_segments, labels):
    del batch_seq_segments  # DistilBERT has no token-type embeddings (ignored, as in HF)
    B, S = batch_seqs.shape
    T = B * S
    HT = N_HEADS * T
    f32 = jnp.float32

    # token gather as a lane-aligned (T, 128) one-hot, built outside the kernel
    ids = batch_seqs.reshape(T).astype(jnp.int32)
    tok_1h = jax.nn.one_hot(ids, VOCAB_PAD, dtype=f32)                           # (T, 128)

    # additive attention bias: block-diagonal batches + key padding (integer math, O(1) in B)
    mask_flat = batch_seq_masks.astype(f32).reshape(T)
    rows = jnp.arange(T, dtype=jnp.int32)
    same_batch = (rows[:, None] // S) == (rows[None, :] // S)
    allowed = same_batch & (mask_flat[None, :] > 0.5)
    # TODO(synk): an all-zero attention-mask sequence would make softmax uniform over
    # its masked keys (degenerate case; not hit in this test).
    attn_bias = jnp.where(allowed, f32(0.0), f32(NEG_INF))                       # (T, T)
    bias_tiled = jnp.tile(attn_bias, (1, N_HEADS))                               # (T, HT)

    # static structural matrices for the block-structured multi-head attention
    rh = jnp.arange(HT, dtype=jnp.int32)
    hm = ((rh[:, None] // T) ==
          (jnp.arange(DIM, dtype=jnp.int32)[None, :] // HEAD_DIM)).astype(f32)   # (HT, DIM)
    bsum = ((rh[:, None] // T) == (rh[None, :] // T)).astype(f32)                # (HT, HT)
    pool_sel = (jnp.arange(T, dtype=jnp.int32)[None, :] ==
                (jnp.arange(B, dtype=jnp.int32)[:, None] * S)).astype(f32)       # (B, T): token 0 per seq

    y1h = jax.nn.one_hot(labels, NUM_LABELS, dtype=f32)
    wemb = jnp.pad(params["word_emb"], ((0, VOCAB_PAD - VOCAB), (0, 0)))         # (128, DIM)
    pos_emb_s = params["pos_emb"][:S]                                            # static slice

    kernel = partial(_distilbert_fused_kernel, B=B)
    logits, probs, loss = pl.pallas_call(
        kernel,
        out_shape=(
            jax.ShapeDtypeStruct((B, NUM_LABELS), jnp.float32),
            jax.ShapeDtypeStruct((B, NUM_LABELS), jnp.float32),
            jax.ShapeDtypeStruct((1, 1), jnp.float32),
        ),
    )(
        tok_1h, pos_emb_s, bias_tiled, hm, bsum, pool_sel, y1h,
        wemb, params["emb_ln_g"], params["emb_ln_b"],
        params["qkv_w"], params["qkv_b"], params["o_w"], params["o_b"],
        params["sa_ln_g"], params["sa_ln_b"],
        params["ffn1_w"], params["ffn1_b"], params["ffn2_w"], params["ffn2_b"],
        params["out_ln_g"], params["out_ln_b"],
        params["pre_w"], params["pre_b"], params["cls_w"], params["cls_b"],
    )
    return loss[0, 0], logits, probs


# --------------------------- driver ---------------------------

if __name__ == "__main__":
    key = jax.random.PRNGKey(0)
    pkey, ikey = jax.random.split(key)
    params = init_params(pkey)

    B, S = 2, 8
    batch_seqs = jax.random.randint(ikey, (B, S), 0, VOCAB, dtype=jnp.int32)
    batch_seq_masks = jnp.array([[1] * S, [1] * (S - 2) + [0] * 2], dtype=jnp.int32)
    batch_seq_segments = jnp.zeros((B, S), dtype=jnp.int32)   # accepted, unused
    labels = jnp.array([0, 1], dtype=jnp.int32)

    fwd = jax.jit(distilbert_forward)
    loss, logits, probs = fwd(params, batch_seqs, batch_seq_masks,
                              batch_seq_segments, labels)
    jax.block_until_ready((loss, logits, probs))

    assert logits.shape == (B, NUM_LABELS)
    assert probs.shape == (B, NUM_LABELS)
    assert loss.shape == ()
    assert bool(jnp.all(jnp.isfinite(logits)))
    assert bool(jnp.allclose(jnp.sum(probs, axis=-1), 1.0, atol=1e-5))
    print("KERNEL_OK")
</pallas_src>

<mosaic_0001>
module attributes {stable_mosaic.version = 11 : i64} {
  func.func @_distilbert_fused_kernel(%arg0: memref<16x128xf32, #tpu.memory_space<vmem>>, %arg1: memref<8x32xf32, #tpu.memory_space<vmem>>, %arg2: memref<16x64xf32, #tpu.memory_space<vmem>>, %arg3: memref<64x32xf32, #tpu.memory_space<vmem>>, %arg4: memref<64x64xf32, #tpu.memory_space<vmem>>, %arg5: memref<2x16xf32, #tpu.memory_space<vmem>>, %arg6: memref<2x2xf32, #tpu.memory_space<vmem>>, %arg7: memref<128x32xf32, #tpu.memory_space<vmem>>, %arg8: memref<1x32xf32, #tpu.memory_space<vmem>>, %arg9: memref<1x32xf32, #tpu.memory_space<vmem>>, %arg10: memref<2x32x96xf32, #tpu.memory_space<vmem>>, %arg11: memref<2x1x96xf32, #tpu.memory_space<vmem>>, %arg12: memref<2x32x32xf32, #tpu.memory_space<vmem>>, %arg13: memref<2x1x32xf32, #tpu.memory_space<vmem>>, %arg14: memref<2x1x32xf32, #tpu.memory_space<vmem>>, %arg15: memref<2x1x32xf32, #tpu.memory_space<vmem>>, %arg16: memref<2x32x64xf32, #tpu.memory_space<vmem>>, %arg17: memref<2x1x64xf32, #tpu.memory_space<vmem>>, %arg18: memref<2x64x32xf32, #tpu.memory_space<vmem>>, %arg19: memref<2x1x32xf32, #tpu.memory_space<vmem>>, %arg20: memref<2x1x32xf32, #tpu.memory_space<vmem>>, %arg21: memref<2x1x32xf32, #tpu.memory_space<vmem>>, %arg22: memref<32x32xf32, #tpu.memory_space<vmem>>, %arg23: memref<1x32xf32, #tpu.memory_space<vmem>>, %arg24: memref<32x2xf32, #tpu.memory_space<vmem>>, %arg25: memref<1x2xf32, #tpu.memory_space<vmem>>, %arg26: memref<2x2xf32, #tpu.memory_space<vmem>>, %arg27: memref<2x2xf32, #tpu.memory_space<vmem>>, %arg28: memref<1x1xf32, #tpu.memory_space<vmem>>) attributes {dimension_semantics = [], scalar_prefetch = 0 : i64, scratch_operands = 0 : i64, tpu.core_type = #tpu.core_type<tc>} {
    %c0 = arith.constant 0 : index
    %c0_0 = arith.constant 0 : index
    %0 = vector.load %arg0[%c0, %c0_0] : memref<16x128xf32, #tpu.memory_space<vmem>>, vector<16x128xf32>
    %c0_1 = arith.constant 0 : index
    %c0_2 = arith.constant 0 : index
    %1 = vector.load %arg7[%c0_1, %c0_2] : memref<128x32xf32, #tpu.memory_space<vmem>>, vector<128x32xf32>
    %cst = arith.constant dense<0.000000e+00> : vector<16x32xf32>
    %2 = tpu.matmul %0, %1, %cst {dimension_numbers = #tpu.dot_dimension_numbers<[1], [0], [0], [1], [0, 0, 1, 1], [], []>} : vector<16x128xf32>, vector<128x32xf32>, vector<16x32xf32> -> vector<16x32xf32>
    %c0_3 = arith.constant 0 : index
    %c0_4 = arith.constant 0 : index
    %3 = vector.load %arg1[%c0_3, %c0_4] : memref<8x32xf32, #tpu.memory_space<vmem>>, vector<8x32xf32>
    %4 = tpu.concatenate %3, %3 in 0 : vector<8x32xf32>, vector<8x32xf32> -> vector<16x32xf32>
    %5 = arith.addf %2, %4 : vector<16x32xf32>
    %c0_5 = arith.constant 0 : index
    %c0_6 = arith.constant 0 : index
    %6 = vector.load %arg8[%c0_5, %c0_6] : memref<1x32xf32, #tpu.memory_space<vmem>>, vector<1x32xf32>
    %c0_7 = arith.constant 0 : index
    %c0_8 = arith.constant 0 : index
    %7 = vector.load %arg9[%c0_7, %c0_8] : memref<1x32xf32, #tpu.memory_space<vmem>>, vector<1x32xf32>
    %cst_9 = arith.constant dense<0.000000e+00> : vector<16xf32>
    %8 = vector.multi_reduction <add>, %5, %cst_9 [1] : vector<16x32xf32> to vector<16xf32>
    %9 = vector.shape_cast %8 : vector<16xf32> to vector<16x1xf32>
    %cst_10 = arith.constant 3.200000e+01 : f32
    %10 = vector.broadcast %cst_10 : f32 to vector<16x1xf32>
    %11 = arith.divf %9, %10 : vector<16x1xf32>
    %12 = vector.broadcast %11 : vector<16x1xf32> to vector<16x32xf32>
    %13 = arith.subf %5, %12 : vector<16x32xf32>
    %14 = arith.mulf %13, %13 : vector<16x32xf32>
    %cst_11 = arith.constant dense<0.000000e+00> : vector<16xf32>
    %15 = vector.multi_reduction <add>, %14, %cst_11 [1] : vector<16x32xf32> to vector<16xf32>
    %16 = vector.shape_cast %15 : vector<16xf32> to vector<16x1xf32>
    %cst_12 = arith.constant 3.200000e+01 : f32
    %17 = vector.broadcast %cst_12 : f32 to vector<16x1xf32>
    %18 = arith.divf %16, %17 : vector<16x1xf32>
    %cst_13 = arith.constant 9.99999996E-13 : f32
    %19 = vector.broadcast %cst_13 : f32 to vector<16x1xf32>
    %20 = arith.addf %18, %19 : vector<16x1xf32>
    %21 = math.rsqrt %20 : vector<16x1xf32>
    %22 = vector.broadcast %21 : vector<16x1xf32> to vector<16x32xf32>
    %23 = arith.mulf %13, %22 : vector<16x32xf32>
    %24 = vector.broadcast %6 : vector<1x32xf32> to vector<16x32xf32>
    %25 = arith.mulf %23, %24 : vector<16x32xf32>
    %26 = vector.broadcast %7 : vector<1x32xf32> to vector<16x32xf32>
    %27 = arith.addf %25, %26 : vector<16x32xf32>
    %c0_14 = arith.constant 0 : index
    %c0_15 = arith.constant 0 : index
    %28 = vector.load %arg2[%c0_14, %c0_15] : memref<16x64xf32, #tpu.memory_space<vmem>>, vector<16x64xf32>
    %c0_16 = arith.constant 0 : index
    %c0_17 = arith.constant 0 : index
    %29 = vector.load %arg3[%c0_16, %c0_17] : memref<64x32xf32, #tpu.memory_space<vmem>>, vector<64x32xf32>
    %c0_18 = arith.constant 0 : index
    %c0_19 = arith.constant 0 : index
    %30 = vector.load %arg4[%c0_18, %c0_19] : memref<64x64xf32, #tpu.memory_space<vmem>>, vector<64x64xf32>
    %c0_20 = arith.constant 0 : index
    %c0_21 = arith.constant 0 : index
    %c0_22 = arith.constant 0 : index
    %31 = vector.load %arg10[%c0_20, %c0_21, %c0_22] : memref<2x32x96xf32, #tpu.memory_space<vmem>>, vector<1x32x96xf32>
    %32 = vector.shape_cast %31 : vector<1x32x96xf32> to vector<32x96xf32>
    %cst_23 = arith.constant dense<0.000000e+00> : vector<16x96xf32>
    %33 = tpu.matmul %27, %32, %cst_23 {dimension_numbers = #tpu.dot_dimension_numbers<[1], [0], [0], [1], [0, 0, 1, 1], [], []>} : vector<16x32xf32>, vector<32x96xf32>, vector<16x96xf32> -> vector<16x96xf32>
    %c0_24 = arith.constant 0 : index
    %c0_25 = arith.constant 0 : index
    %c0_26 = arith.constant 0 : index
    %34 = vector.load %arg11[%c0_24, %c0_25, %c0_26] : memref<2x1x96xf32, #tpu.memory_space<vmem>>, vector<1x1x96xf32>
    %35 = vector.shape_cast %34 : vector<1x1x96xf32> to vector<1x96xf32>
    %36 = vector.broadcast %35 : vector<1x96xf32> to vector<16x96xf32>
    %37 = arith.addf %33, %36 : vector<16x96xf32>
    %38 = vector.extract_strided_slice %37 {offsets = [0, 0], sizes = [16, 32], strides = [1, 1]} : vector<16x96xf32> to vector<16x32xf32>
    %cst_27 = arith.constant 0.353553385 : f32
    %39 = vector.broadcast %cst_27 : f32 to vector<16x32xf32>
    %40 = arith.mulf %38, %39 : vector<16x32xf32>
    %41 = vector.extract_strided_slice %37 {offsets = [0, 32], sizes = [16, 32], strides = [1, 1]} : vector<16x96xf32> to vector<16x32xf32>
    %42 = vector.extract_strided_slice %37 {offsets = [0, 64], sizes = [16, 32], strides = [1, 1]} : vector<16x96xf32> to vector<16x32xf32>
    %43 = tpu.concatenate %41, %41, %41, %41 in 0 : vector<16x32xf32>, vector<16x32xf32>, vector<16x32xf32>, vector<16x32xf32> -> vector<64x32xf32>
    %44 = arith.mulf %43, %29 : vector<64x32xf32>
    %cst_28 = arith.constant dense<0.000000e+00> : vector<16x64xf32>
    %45 = tpu.matmul %40, %44, %cst_28 {dimension_numbers = #tpu.dot_dimension_numbers<[1], [1], [0], [0], [0, 0, 1, 0], [], []>} : vector<16x32xf32>, vector<64x32xf32>, vector<16x64xf32> -> vector<16x64xf32>
    %46 = arith.addf %45, %28 : vector<16x64xf32>
    %cst_29 = arith.constant dense<0xFF800000> : vector<16xf32>
    %47 = vector.multi_reduction <maximumf>, %46, %cst_29 [1] : vector<16x64xf32> to vector<16xf32>
    %48 = vector.shape_cast %47 : vector<16xf32> to vector<16x1xf32>
    %49 = vector.broadcast %48 : vector<16x1xf32> to vector<16x64xf32>
    %50 = arith.subf %46, %49 : vector<16x64xf32>
    %51 = math.exp %50 : vector<16x64xf32>
    %cst_30 = arith.constant dense<0.000000e+00> : vector<16x64xf32>
    %52 = tpu.matmul %51, %30, %cst_30 {dimension_numbers = #tpu.dot_dimension_numbers<[1], [0], [0], [1], [0, 0, 1, 1], [], []>} : vector<16x64xf32>, vector<64x64xf32>, vector<16x64xf32> -> vector<16x64xf32>
    %53 = arith.divf %51, %52 : vector<16x64xf32>
    %54 = tpu.concatenate %42, %42, %42, %42 in 0 : vector<16x32xf32>, vector<16x32xf32>, vector<16x32xf32>, vector<16x32xf32> -> vector<64x32xf32>
    %55 = arith.mulf %54, %29 : vector<64x32xf32>
    %cst_31 = arith.constant dense<0.000000e+00> : vector<16x32xf32>
    %56 = tpu.matmul %53, %55, %cst_31 {dimension_numbers = #tpu.dot_dimension_numbers<[1], [0], [0], [1], [0, 0, 1, 1], [], []>} : vector<16x64xf32>, vector<64x32xf32>, vector<16x32xf32> -> vector<16x32xf32>
    %c0_32 = arith.constant 0 : index
    %c0_33 = arith.constant 0 : index
    %c0_34 = arith.constant 0 : index
    %57 = vector.load %arg12[%c0_32, %c0_33, %c0_34] : memref<2x32x32xf32, #tpu.memory_space<vmem>>, vector<1x32x32xf32>
    %58 = vector.shape_cast %57 : vector<1x32x32xf32> to vector<32x32xf32>
    %cst_35 = arith.constant dense<0.000000e+00> : vector<16x32xf32>
    %59 = tpu.matmul %56, %58, %cst_35 {dimension_numbers = #tpu.dot_dimension_numbers<[1], [0], [0], [1], [0, 0, 1, 1], [], []>} : vector<16x32xf32>, vector<32x32xf32>, vector<16x32xf32> -> vector<16x32xf32>
    %c0_36 = arith.constant 0 : index
    %c0_37 = arith.constant 0 : index
    %c0_38 = arith.constant 0 : index
    %60 = vector.load %arg13[%c0_36, %c0_37, %c0_38] : memref<2x1x32xf32, #tpu.memory_space<vmem>>, vector<1x1x32xf32>
    %61 = vector.shape_cast %60 : vector<1x1x32xf32> to vector<1x32xf32>
    %62 = vector.broadcast %61 : vector<1x32xf32> to vector<16x32xf32>
    %63 = arith.addf %59, %62 : vector<16x32xf32>
    %64 = arith.addf %63, %27 : vector<16x32xf32>
    %c0_39 = arith.constant 0 : index
    %c0_40 = arith.constant 0 : index
    %c0_41 = arith.constant 0 : index
    %65 = vector.load %arg14[%c0_39, %c0_40, %c0_41] : memref<2x1x32xf32, #tpu.memory_space<vmem>>, vector<1x1x32xf32>
    %66 = vector.shape_cast %65 : vector<1x1x32xf32> to vector<1x32xf32>
    %c0_42 = arith.constant 0 : index
    %c0_43 = arith.constant 0 : index
    %c0_44 = arith.constant 0 : index
    %67 = vector.load %arg15[%c0_42, %c0_43, %c0_44] : memref<2x1x32xf32, #tpu.memory_space<vmem>>, vector<1x1x32xf32>
    %68 = vector.shape_cast %67 : vector<1x1x32xf32> to vector<1x32xf32>
    %cst_45 = arith.constant dense<0.000000e+00> : vector<16xf32>
    %69 = vector.multi_reduction <add>, %64, %cst_45 [1] : vector<16x32xf32> to vector<16xf32>
    %70 = vector.shape_cast %69 : vector<16xf32> to vector<16x1xf32>
    %cst_46 = arith.constant 3.200000e+01 : f32
    %71 = vector.broadcast %cst_46 : f32 to vector<16x1xf32>
    %72 = arith.divf %70, %71 : vector<16x1xf32>
    %73 = vector.broadcast %72 : vector<16x1xf32> to vector<16x32xf32>
    %74 = arith.subf %64, %73 : vector<16x32xf32>
    %75 = arith.mulf %74, %74 : vector<16x32xf32>
    %cst_47 = arith.constant dense<0.000000e+00> : vector<16xf32>
    %76 = vector.multi_reduction <add>, %75, %cst_47 [1] : vector<16x32xf32> to vector<16xf32>
    %77 = vector.shape_cast %76 : vector<16xf32> to vector<16x1xf32>
    %cst_48 = arith.constant 3.200000e+01 : f32
    %78 = vector.broadcast %cst_48 : f32 to vector<16x1xf32>
    %79 = arith.divf %77, %78 : vector<16x1xf32>
    %cst_49 = arith.constant 9.99999996E-13 : f32
    %80 = vector.broadcast %cst_49 : f32 to vector<16x1xf32>
    %81 = arith.addf %79, %80 : vector<16x1xf32>
    %82 = math.rsqrt %81 : vector<16x1xf32>
    %83 = vector.broadcast %82 : vector<16x1xf32> to vector<16x32xf32>
    %84 = arith.mulf %74, %83 : vector<16x32xf32>
    %85 = vector.broadcast %66 : vector<1x32xf32> to vector<16x32xf32>
    %86 = arith.mulf %84, %85 : vector<16x32xf32>
    %87 = vector.broadcast %68 : vector<1x32xf32> to vector<16x32xf32>
    %88 = arith.addf %86, %87 : vector<16x32xf32>
    %c0_50 = arith.constant 0 : index
    %c0_51 = arith.constant 0 : index
    %c0_52 = arith.constant 0 : index
    %89 = vector.load %arg16[%c0_50, %c0_51, %c0_52] : memref<2x32x64xf32, #tpu.memory_space<vmem>>, vector<1x32x64xf32>
    %90 = vector.shape_cast %89 : vector<1x32x64xf32> to vector<32x64xf32>
    %cst_53 = arith.constant dense<0.000000e+00> : vector<16x64xf32>
    %91 = tpu.matmul %88, %90, %cst_53 {dimension_numbers = #tpu.dot_dimension_numbers<[1], [0], [0], [1], [0, 0, 1, 1], [], []>} : vector<16x32xf32>, vector<32x64xf32>, vector<16x64xf32> -> vector<16x64xf32>
    %c0_54 = arith.constant 0 : index
    %c0_55 = arith.constant 0 : index
    %c0_56 = arith.constant 0 : index
    %92 = vector.load %arg17[%c0_54, %c0_55, %c0_56] : memref<2x1x64xf32, #tpu.memory_space<vmem>>, vector<1x1x64xf32>
    %93 = vector.shape_cast %92 : vector<1x1x64xf32> to vector<1x64xf32>
    %94 = vector.broadcast %93 : vector<1x64xf32> to vector<16x64xf32>
    %95 = arith.addf %91, %94 : vector<16x64xf32>
    %cst_57 = arith.constant 5.000000e-01 : f32
    %96 = vector.broadcast %cst_57 : f32 to vector<16x64xf32>
    %97 = arith.mulf %96, %95 : vector<16x64xf32>
    %cst_58 = arith.constant 0.707106769 : f32
    %98 = vector.broadcast %cst_58 : f32 to vector<16x64xf32>
    %99 = arith.mulf %95, %98 : vector<16x64xf32>
    %100 = math.absf %99 : vector<16x64xf32>
    %cst_59 = arith.constant 0.327591091 : f32
    %101 = vector.broadcast %cst_59 : f32 to vector<16x64xf32>
    %102 = arith.mulf %101, %100 : vector<16x64xf32>
    %cst_60 = arith.constant 1.000000e+00 : f32
    %103 = vector.broadcast %cst_60 : f32 to vector<16x64xf32>
    %104 = arith.addf %103, %102 : vector<16x64xf32>
    %cst_61 = arith.constant 1.000000e+00 : f32
    %105 = vector.broadcast %cst_61 : f32 to vector<16x64xf32>
    %106 = arith.divf %105, %104 : vector<16x64xf32>
    %cst_62 = arith.constant 1.06140542 : f32
    %107 = vector.broadcast %cst_62 : f32 to vector<16x64xf32>
    %108 = arith.mulf %107, %106 : vector<16x64xf32>
    %cst_63 = arith.constant -1.45315206 : f32
    %109 = vector.broadcast %cst_63 : f32 to vector<16x64xf32>
    %110 = arith.addf %108, %109 : vector<16x64xf32>
    %111 = arith.mulf %110, %106 : vector<16x64xf32>
    %cst_64 = arith.constant 1.42141378 : f32
    %112 = vector.broadcast %cst_64 : f32 to vector<16x64xf32>
    %113 = arith.addf %111, %112 : vector<16x64xf32>
    %114 = arith.mulf %113, %106 : vector<16x64xf32>
    %cst_65 = arith.constant -0.284496725 : f32
    %115 = vector.broadcast %cst_65 : f32 to vector<16x64xf32>
    %116 = arith.addf %114, %115 : vector<16x64xf32>
    %117 = arith.mulf %116, %106 : vector<16x64xf32>
    %cst_66 = arith.constant 0.254829586 : f32
    %118 = vector.broadcast %cst_66 : f32 to vector<16x64xf32>
    %119 = arith.addf %117, %118 : vector<16x64xf32>
    %120 = arith.mulf %119, %106 : vector<16x64xf32>
    %cst_67 = arith.constant 0.000000e+00 : f32
    %121 = vector.broadcast %cst_67 : f32 to vector<16x64xf32>
    %122 = arith.subf %121, %100 : vector<16x64xf32>
    %123 = arith.mulf %122, %100 : vector<16x64xf32>
    %124 = math.exp %123 : vector<16x64xf32>
    %125 = arith.mulf %120, %124 : vector<16x64xf32>
    %cst_68 = arith.constant 1.000000e+00 : f32
    %126 = vector.broadcast %cst_68 : f32 to vector<16x64xf32>
    %127 = arith.subf %126, %125 : vector<16x64xf32>
    %cst_69 = arith.constant 0.000000e+00 : f32
    %128 = vector.broadcast %cst_69 : f32 to vector<16x64xf32>
    %129 = arith.cmpf oge, %99, %128 : vector<16x64xf32>
    %cst_70 = arith.constant 0.000000e+00 : f32
    %130 = vector.broadcast %cst_70 : f32 to vector<16x64xf32>
    %131 = arith.subf %130, %127 : vector<16x64xf32>
    %132 = arith.select %129, %127, %131 : vector<16x64xi1>, vector<16x64xf32>
    %cst_71 = arith.constant 1.000000e+00 : f32
    %133 = vector.broadcast %cst_71 : f32 to vector<16x64xf32>
    %134 = arith.addf %133, %132 : vector<16x64xf32>
    %135 = arith.mulf %97, %134 : vector<16x64xf32>
    %c0_72 = arith.constant 0 : index
    %c0_73 = arith.constant 0 : index
    %c0_74 = arith.constant 0 : index
    %136 = vector.load %arg18[%c0_72, %c0_73, %c0_74] : memref<2x64x32xf32, #tpu.memory_space<vmem>>, vector<1x64x32xf32>
    %137 = vector.shape_cast %136 : vector<1x64x32xf32> to vector<64x32xf32>
    %cst_75 = arith.constant dense<0.000000e+00> : vector<16x32xf32>
    %138 = tpu.matmul %135, %137, %cst_75 {dimension_numbers = #tpu.dot_dimension_numbers<[1], [0], [0], [1], [0, 0, 1, 1], [], []>} : vector<16x64xf32>, vector<64x32xf32>, vector<16x32xf32> -> vector<16x32xf32>
    %c0_76 = arith.constant 0 : index
    %c0_77 = arith.constant 0 : index
    %c0_78 = arith.constant 0 : index
    %139 = vector.load %arg19[%c0_76, %c0_77, %c0_78] : memref<2x1x32xf32, #tpu.memory_space<vmem>>, vector<1x1x32xf32>
    %140 = vector.shape_cast %139 : vector<1x1x32xf32> to vector<1x32xf32>
    %141 = vector.broadcast %140 : vector<1x32xf32> to vector<16x32xf32>
    %142 = arith.addf %138, %141 : vector<16x32xf32>
    %143 = arith.addf %142, %88 : vector<16x32xf32>
    %c0_79 = arith.constant 0 : index
    %c0_80 = arith.constant 0 : index
    %c0_81 = arith.constant 0 : index
    %144 = vector.load %arg20[%c0_79, %c0_80, %c0_81] : memref<2x1x32xf32, #tpu.memory_space<vmem>>, vector<1x1x32xf32>
    %145 = vector.shape_cast %144 : vector<1x1x32xf32> to vector<1x32xf32>
    %c0_82 = arith.constant 0 : index
    %c0_83 = arith.constant 0 : index
    %c0_84 = arith.constant 0 : index
    %146 = vector.load %arg21[%c0_82, %c0_83, %c0_84] : memref<2x1x32xf32, #tpu.memory_space<vmem>>, vector<1x1x32xf32>
    %147 = vector.shape_cast %146 : vector<1x1x32xf32> to vector<1x32xf32>
    %cst_85 = arith.constant dense<0.000000e+00> : vector<16xf32>
    %148 = vector.multi_reduction <add>, %143, %cst_85 [1] : vector<16x32xf32> to vector<16xf32>
    %149 = vector.shape_cast %148 : vector<16xf32> to vector<16x1xf32>
    %cst_86 = arith.constant 3.200000e+01 : f32
    %150 = vector.broadcast %cst_86 : f32 to vector<16x1xf32>
    %151 = arith.divf %149, %150 : vector<16x1xf32>
    %152 = vector.broadcast %151 : vector<16x1xf32> to vector<16x32xf32>
    %153 = arith.subf %143, %152 : vector<16x32xf32>
    %154 = arith.mulf %153, %153 : vector<16x32xf32>
    %cst_87 = arith.constant dense<0.000000e+00> : vector<16xf32>
    %155 = vector.multi_reduction <add>, %154, %cst_87 [1] : vector<16x32xf32> to vector<16xf32>
    %156 = vector.shape_cast %155 : vector<16xf32> to vector<16x1xf32>
    %cst_88 = arith.constant 3.200000e+01 : f32
    %157 = vector.broadcast %cst_88 : f32 to vector<16x1xf32>
    %158 = arith.divf %156, %157 : vector<16x1xf32>
    %cst_89 = arith.constant 9.99999996E-13 : f32
    %159 = vector.broadcast %cst_89 : f32 to vector<16x1xf32>
    %160 = arith.addf %158, %159 : vector<16x1xf32>
    %161 = math.rsqrt %160 : vector<16x1xf32>
    %162 = vector.broadcast %161 : vector<16x1xf32> to vector<16x32xf32>
    %163 = arith.mulf %153, %162 : vector<16x32xf32>
    %164 = vector.broadcast %145 : vector<1x32xf32> to vector<16x32xf32>
    %165 = arith.mulf %163, %164 : vector<16x32xf32>
    %166 = vector.broadcast %147 : vector<1x32xf32> to vector<16x32xf32>
    %167 = arith.addf %165, %166 : vector<16x32xf32>
    %c1 = arith.constant 1 : index
    %c0_90 = arith.constant 0 : index
    %c0_91 = arith.constant 0 : index
    %168 = vector.load %arg10[%c1, %c0_90, %c0_91] : memref<2x32x96xf32, #tpu.memory_space<vmem>>, vector<1x32x96xf32>
    %169 = vector.shape_cast %168 : vector<1x32x96xf32> to vector<32x96xf32>
    %cst_92 = arith.constant dense<0.000000e+00> : vector<16x96xf32>
    %170 = tpu.matmul %167, %169, %cst_92 {dimension_numbers = #tpu.dot_dimension_numbers<[1], [0], [0], [1], [0, 0, 1, 1], [], []>} : vector<16x32xf32>, vector<32x96xf32>, vector<16x96xf32> -> vector<16x96xf32>
    %c1_93 = arith.constant 1 : index
    %c0_94 = arith.constant 0 : index
    %c0_95 = arith.constant 0 : index
    %171 = vector.load %arg11[%c1_93, %c0_94, %c0_95] : memref<2x1x96xf32, #tpu.memory_space<vmem>>, vector<1x1x96xf32>
    %172 = vector.shape_cast %171 : vector<1x1x96xf32> to vector<1x96xf32>
    %173 = vector.broadcast %172 : vector<1x96xf32> to vector<16x96xf32>
    %174 = arith.addf %170, %173 : vector<16x96xf32>
    %175 = vector.extract_strided_slice %174 {offsets = [0, 0], sizes = [16, 32], strides = [1, 1]} : vector<16x96xf32> to vector<16x32xf32>
    %cst_96 = arith.constant 0.353553385 : f32
    %176 = vector.broadcast %cst_96 : f32 to vector<16x32xf32>
    %177 = arith.mulf %175, %176 : vector<16x32xf32>
    %178 = vector.extract_strided_slice %174 {offsets = [0, 32], sizes = [16, 32], strides = [1, 1]} : vector<16x96xf32> to vector<16x32xf32>
    %179 = vector.extract_strided_slice %174 {offsets = [0, 64], sizes = [16, 32], strides = [1, 1]} : vector<16x96xf32> to vector<16x32xf32>
    %180 = tpu.concatenate %178, %178, %178, %178 in 0 : vector<16x32xf32>, vector<16x32xf32>, vector<16x32xf32>, vector<16x32xf32> -> vector<64x32xf32>
    %181 = arith.mulf %180, %29 : vector<64x32xf32>
    %cst_97 = arith.constant dense<0.000000e+00> : vector<16x64xf32>
    %182 = tpu.matmul %177, %181, %cst_97 {dimension_numbers = #tpu.dot_dimension_numbers<[1], [1], [0], [0], [0, 0, 1, 0], [], []>} : vector<16x32xf32>, vector<64x32xf32>, vector<16x64xf32> -> vector<16x64xf32>
    %183 = arith.addf %182, %28 : vector<16x64xf32>
    %cst_98 = arith.constant dense<0xFF800000> : vector<16xf32>
    %184 = vector.multi_reduction <maximumf>, %183, %cst_98 [1] : vector<16x64xf32> to vector<16xf32>
    %185 = vector.shape_cast %184 : vector<16xf32> to vector<16x1xf32>
    %186 = vector.broadcast %185 : vector<16x1xf32> to vector<16x64xf32>
    %187 = arith.subf %183, %186 : vector<16x64xf32>
    %188 = math.exp %187 : vector<16x64xf32>
    %cst_99 = arith.constant dense<0.000000e+00> : vector<16x64xf32>
    %189 = tpu.matmul %188, %30, %cst_99 {dimension_numbers = #tpu.dot_dimension_numbers<[1], [0], [0], [1], [0, 0, 1, 1], [], []>} : vector<16x64xf32>, vector<64x64xf32>, vector<16x64xf32> -> vector<16x64xf32>
    %190 = arith.divf %188, %189 : vector<16x64xf32>
    %191 = tpu.concatenate %179, %179, %179, %179 in 0 : vector<16x32xf32>, vector<16x32xf32>, vector<16x32xf32>, vector<16x32xf32> -> vector<64x32xf32>
    %192 = arith.mulf %191, %29 : vector<64x32xf32>
    %cst_100 = arith.constant dense<0.000000e+00> : vector<16x32xf32>
    %193 = tpu.matmul %190, %192, %cst_100 {dimension_numbers = #tpu.dot_dimension_numbers<[1], [0], [0], [1], [0, 0, 1, 1], [], []>} : vector<16x64xf32>, vector<64x32xf32>, vector<16x32xf32> -> vector<16x32xf32>
    %c1_101 = arith.constant 1 : index
    %c0_102 = arith.constant 0 : index
    %c0_103 = arith.constant 0 : index
    %194 = vector.load %arg12[%c1_101, %c0_102, %c0_103] : memref<2x32x32xf32, #tpu.memory_space<vmem>>, vector<1x32x32xf32>
    %195 = vector.shape_cast %194 : vector<1x32x32xf32> to vector<32x32xf32>
    %cst_104 = arith.constant dense<0.000000e+00> : vector<16x32xf32>
    %196 = tpu.matmul %193, %195, %cst_104 {dimension_numbers = #tpu.dot_dimension_numbers<[1], [0], [0], [1], [0, 0, 1, 1], [], []>} : vector<16x32xf32>, vector<32x32xf32>, vector<16x32xf32> -> vector<16x32xf32>
    %c1_105 = arith.constant 1 : index
    %c0_106 = arith.constant 0 : index
    %c0_107 = arith.constant 0 : index
    %197 = vector.load %arg13[%c1_105, %c0_106, %c0_107] : memref<2x1x32xf32, #tpu.memory_space<vmem>>, vector<1x1x32xf32>
    %198 = vector.shape_cast %197 : vector<1x1x32xf32> to vector<1x32xf32>
    %199 = vector.broadcast %198 : vector<1x32xf32> to vector<16x32xf32>
    %200 = arith.addf %196, %199 : vector<16x32xf32>
    %201 = arith.addf %200, %167 : vector<16x32xf32>
    %c1_108 = arith.constant 1 : index
    %c0_109 = arith.constant 0 : index
    %c0_110 = arith.constant 0 : index
    %202 = vector.load %arg14[%c1_108, %c0_109, %c0_110] : memref<2x1x32xf32, #tpu.memory_space<vmem>>, vector<1x1x32xf32>
    %203 = vector.shape_cast %202 : vector<1x1x32xf32> to vector<1x32xf32>
    %c1_111 = arith.constant 1 : index
    %c0_112 = arith.constant 0 : index
    %c0_113 = arith.constant 0 : index
    %204 = vector.load %arg15[%c1_111, %c0_112, %c0_113] : memref<2x1x32xf32, #tpu.memory_space<vmem>>, vector<1x1x32xf32>
    %205 = vector.shape_cast %204 : vector<1x1x32xf32> to vector<1x32xf32>
    %cst_114 = arith.constant dense<0.000000e+00> : vector<16xf32>
    %206 = vector.multi_reduction <add>, %201, %cst_114 [1] : vector<16x32xf32> to vector<16xf32>
    %207 = vector.shape_cast %206 : vector<16xf32> to vector<16x1xf32>
    %cst_115 = arith.constant 3.200000e+01 : f32
    %208 = vector.broadcast %cst_115 : f32 to vector<16x1xf32>
    %209 = arith.divf %207, %208 : vector<16x1xf32>
    %210 = vector.broadcast %209 : vector<16x1xf32> to vector<16x32xf32>
    %211 = arith.subf %201, %210 : vector<16x32xf32>
    %212 = arith.mulf %211, %211 : vector<16x32xf32>
    %cst_116 = arith.constant dense<0.000000e+00> : vector<16xf32>
    %213 = vector.multi_reduction <add>, %212, %cst_116 [1] : vector<16x32xf32> to vector<16xf32>
    %214 = vector.shape_cast %213 : vector<16xf32> to vector<16x1xf32>
    %cst_117 = arith.constant 3.200000e+01 : f32
    %215 = vector.broadcast %cst_117 : f32 to vector<16x1xf32>
    %216 = arith.divf %214, %215 : vector<16x1xf32>
    %cst_118 = arith.constant 9.99999996E-13 : f32
    %217 = vector.broadcast %cst_118 : f32 to vector<16x1xf32>
    %218 = arith.addf %216, %217 : vector<16x1xf32>
    %219 = math.rsqrt %218 : vector<16x1xf32>
    %220 = vector.broadcast %219 : vector<16x1xf32> to vector<16x32xf32>
    %221 = arith.mulf %211, %220 : vector<16x32xf32>
    %222 = vector.broadcast %203 : vector<1x32xf32> to vector<16x32xf32>
    %223 = arith.mulf %221, %222 : vector<16x32xf32>
    %224 = vector.broadcast %205 : vector<1x32xf32> to vector<16x32xf32>
    %225 = arith.addf %223, %224 : vector<16x32xf32>
    %c1_119 = arith.constant 1 : index
    %c0_120 = arith.constant 0 : index
    %c0_121 = arith.constant 0 : index
    %226 = vector.load %arg16[%c1_119, %c0_120, %c0_121] : memref<2x32x64xf32, #tpu.memory_space<vmem>>, vector<1x32x64xf32>
    %227 = vector.shape_cast %226 : vector<1x32x64xf32> to vector<32x64xf32>
    %cst_122 = arith.constant dense<0.000000e+00> : vector<16x64xf32>
    %228 = tpu.matmul %225, %227, %cst_122 {dimension_numbers = #tpu.dot_dimension_numbers<[1], [0], [0], [1], [0, 0, 1, 1], [], []>} : vector<16x32xf32>, vector<32x64xf32>, vector<16x64xf32> -> vector<16x64xf32>
    %c1_123 = arith.constant 1 : index
    %c0_124 = arith.constant 0 : index
    %c0_125 = arith.constant 0 : index
    %229 = vector.load %arg17[%c1_123, %c0_124, %c0_125] : memref<2x1x64xf32, #tpu.memory_space<vmem>>, vector<1x1x64xf32>
    %230 = vector.shape_cast %229 : vector<1x1x64xf32> to vector<1x64xf32>
    %231 = vector.broadcast %230 : vector<1x64xf32> to vector<16x64xf32>
    %232 = arith.addf %228, %231 : vector<16x64xf32>
    %cst_126 = arith.constant 5.000000e-01 : f32
    %233 = vector.broadcast %cst_126 : f32 to vector<16x64xf32>
    %234 = arith.mulf %233, %232 : vector<16x64xf32>
    %cst_127 = arith.constant 0.707106769 : f32
    %235 = vector.broadcast %cst_127 : f32 to vector<16x64xf32>
    %236 = arith.mulf %232, %235 : vector<16x64xf32>
    %237 = math.absf %236 : vector<16x64xf32>
    %cst_128 = arith.constant 0.327591091 : f32
    %238 = vector.broadcast %cst_128 : f32 to vector<16x64xf32>
    %239 = arith.mulf %238, %237 : vector<16x64xf32>
    %cst_129 = arith.constant 1.000000e+00 : f32
    %240 = vector.broadcast %cst_129 : f32 to vector<16x64xf32>
    %241 = arith.addf %240, %239 : vector<16x64xf32>
    %cst_130 = arith.constant 1.000000e+00 : f32
    %242 = vector.broadcast %cst_130 : f32 to vector<16x64xf32>
    %243 = arith.divf %242, %241 : vector<16x64xf32>
    %cst_131 = arith.constant 1.06140542 : f32
    %244 = vector.broadcast %cst_131 : f32 to vector<16x64xf32>
    %245 = arith.mulf %244, %243 : vector<16x64xf32>
    %cst_132 = arith.constant -1.45315206 : f32
    %246 = vector.broadcast %cst_132 : f32 to vector<16x64xf32>
    %247 = arith.addf %245, %246 : vector<16x64xf32>
    %248 = arith.mulf %247, %243 : vector<16x64xf32>
    %cst_133 = arith.constant 1.42141378 : f32
    %249 = vector.broadcast %cst_133 : f32 to vector<16x64xf32>
    %250 = arith.addf %248, %249 : vector<16x64xf32>
    %251 = arith.mulf %250, %243 : vector<16x64xf32>
    %cst_134 = arith.constant -0.284496725 : f32
    %252 = vector.broadcast %cst_134 : f32 to vector<16x64xf32>
    %253 = arith.addf %251, %252 : vector<16x64xf32>
    %254 = arith.mulf %253, %243 : vector<16x64xf32>
    %cst_135 = arith.constant 0.254829586 : f32
    %255 = vector.broadcast %cst_135 : f32 to vector<16x64xf32>
    %256 = arith.addf %254, %255 : vector<16x64xf32>
    %257 = arith.mulf %256, %243 : vector<16x64xf32>
    %cst_136 = arith.constant 0.000000e+00 : f32
    %258 = vector.broadcast %cst_136 : f32 to vector<16x64xf32>
    %259 = arith.subf %258, %237 : vector<16x64xf32>
    %260 = arith.mulf %259, %237 : vector<16x64xf32>
    %261 = math.exp %260 : vector<16x64xf32>
    %262 = arith.mulf %257, %261 : vector<16x64xf32>
    %cst_137 = arith.constant 1.000000e+00 : f32
    %263 = vector.broadcast %cst_137 : f32 to vector<16x64xf32>
    %264 = arith.subf %263, %262 : vector<16x64xf32>
    %cst_138 = arith.constant 0.000000e+00 : f32
    %265 = vector.broadcast %cst_138 : f32 to vector<16x64xf32>
    %266 = arith.cmpf oge, %236, %265 : vector<16x64xf32>
    %cst_139 = arith.constant 0.000000e+00 : f32
    %267 = vector.broadcast %cst_139 : f32 to vector<16x64xf32>
    %268 = arith.subf %267, %264 : vector<16x64xf32>
    %269 = arith.select %266, %264, %268 : vector<16x64xi1>, vector<16x64xf32>
    %cst_140 = arith.constant 1.000000e+00 : f32
    %270 = vector.broadcast %cst_140 : f32 to vector<16x64xf32>
    %271 = arith.addf %270, %269 : vector<16x64xf32>
    %272 = arith.mulf %234, %271 : vector<16x64xf32>
    %c1_141 = arith.constant 1 : index
    %c0_142 = arith.constant 0 : index
    %c0_143 = arith.constant 0 : index
    %273 = vector.load %arg18[%c1_141, %c0_142, %c0_143] : memref<2x64x32xf32, #tpu.memory_space<vmem>>, vector<1x64x32xf32>
    %274 = vector.shape_cast %273 : vector<1x64x32xf32> to vector<64x32xf32>
    %cst_144 = arith.constant dense<0.000000e+00> : vector<16x32xf32>
    %275 = tpu.matmul %272, %274, %cst_144 {dimension_numbers = #tpu.dot_dimension_numbers<[1], [0], [0], [1], [0, 0, 1, 1], [], []>} : vector<16x64xf32>, vector<64x32xf32>, vector<16x32xf32> -> vector<16x32xf32>
    %c1_145 = arith.constant 1 : index
    %c0_146 = arith.constant 0 : index
    %c0_147 = arith.constant 0 : index
    %276 = vector.load %arg19[%c1_145, %c0_146, %c0_147] : memref<2x1x32xf32, #tpu.memory_space<vmem>>, vector<1x1x32xf32>
    %277 = vector.shape_cast %276 : vector<1x1x32xf32> to vector<1x32xf32>
    %278 = vector.broadcast %277 : vector<1x32xf32> to vector<16x32xf32>
    %279 = arith.addf %275, %278 : vector<16x32xf32>
    %280 = arith.addf %279, %225 : vector<16x32xf32>
    %c1_148 = arith.constant 1 : index
    %c0_149 = arith.constant 0 : index
    %c0_150 = arith.constant 0 : index
    %281 = vector.load %arg20[%c1_148, %c0_149, %c0_150] : memref<2x1x32xf32, #tpu.memory_space<vmem>>, vector<1x1x32xf32>
    %282 = vector.shape_cast %281 : vector<1x1x32xf32> to vector<1x32xf32>
    %c1_151 = arith.constant 1 : index
    %c0_152 = arith.constant 0 : index
    %c0_153 = arith.constant 0 : index
    %283 = vector.load %arg21[%c1_151, %c0_152, %c0_153] : memref<2x1x32xf32, #tpu.memory_space<vmem>>, vector<1x1x32xf32>
    %284 = vector.shape_cast %283 : vector<1x1x32xf32> to vector<1x32xf32>
    %cst_154 = arith.constant dense<0.000000e+00> : vector<16xf32>
    %285 = vector.multi_reduction <add>, %280, %cst_154 [1] : vector<16x32xf32> to vector<16xf32>
    %286 = vector.shape_cast %285 : vector<16xf32> to vector<16x1xf32>
    %cst_155 = arith.constant 3.200000e+01 : f32
    %287 = vector.broadcast %cst_155 : f32 to vector<16x1xf32>
    %288 = arith.divf %286, %287 : vector<16x1xf32>
    %289 = vector.broadcast %288 : vector<16x1xf32> to vector<16x32xf32>
    %290 = arith.subf %280, %289 : vector<16x32xf32>
    %291 = arith.mulf %290, %290 : vector<16x32xf32>
    %cst_156 = arith.constant dense<0.000000e+00> : vector<16xf32>
    %292 = vector.multi_reduction <add>, %291, %cst_156 [1] : vector<16x32xf32> to vector<16xf32>
    %293 = vector.shape_cast %292 : vector<16xf32> to vector<16x1xf32>
    %cst_157 = arith.constant 3.200000e+01 : f32
    %294 = vector.broadcast %cst_157 : f32 to vector<16x1xf32>
    %295 = arith.divf %293, %294 : vector<16x1xf32>
    %cst_158 = arith.constant 9.99999996E-13 : f32
    %296 = vector.broadcast %cst_158 : f32 to vector<16x1xf32>
    %297 = arith.addf %295, %296 : vector<16x1xf32>
    %298 = math.rsqrt %297 : vector<16x1xf32>
    %299 = vector.broadcast %298 : vector<16x1xf32> to vector<16x32xf32>
    %300 = arith.mulf %290, %299 : vector<16x32xf32>
    %301 = vector.broadcast %282 : vector<1x32xf32> to vector<16x32xf32>
    %302 = arith.mulf %300, %301 : vector<16x32xf32>
    %303 = vector.broadcast %284 : vector<1x32xf32> to vector<16x32xf32>
    %304 = arith.addf %302, %303 : vector<16x32xf32>
    %c0_159 = arith.constant 0 : index
    %c0_160 = arith.constant 0 : index
    %305 = vector.load %arg5[%c0_159, %c0_160] : memref<2x16xf32, #tpu.memory_space<vmem>>, vector<2x16xf32>
    %cst_161 = arith.constant dense<0.000000e+00> : vector<2x32xf32>
    %306 = tpu.matmul %305, %304, %cst_161 {dimension_numbers = #tpu.dot_dimension_numbers<[1], [0], [0], [1], [0, 0, 1, 1], [], []>} : vector<2x16xf32>, vector<16x32xf32>, vector<2x32xf32> -> vector<2x32xf32>
    %c0_162 = arith.constant 0 : index
    %c0_163 = arith.constant 0 : index
    %307 = vector.load %arg22[%c0_162, %c0_163] : memref<32x32xf32, #tpu.memory_space<vmem>>, vector<32x32xf32>
    %cst_164 = arith.constant dense<0.000000e+00> : vector<2x32xf32>
    %308 = tpu.matmul %306, %307, %cst_164 {dimension_numbers = #tpu.dot_dimension_numbers<[1], [0], [0], [1], [0, 0, 1, 1], [], []>} : vector<2x32xf32>, vector<32x32xf32>, vector<2x32xf32> -> vector<2x32xf32>
    %c0_165 = arith.constant 0 : index
    %c0_166 = arith.constant 0 : index
    %309 = vector.load %arg23[%c0_165, %c0_166] : memref<1x32xf32, #tpu.memory_space<vmem>>, vector<1x32xf32>
    %310 = vector.broadcast %309 : vector<1x32xf32> to vector<2x32xf32>
    %311 = arith.addf %308, %310 : vector<2x32xf32>
    %cst_167 = arith.constant 0.000000e+00 : f32
    %312 = vector.broadcast %cst_167 : f32 to vector<2x32xf32>
    %313 = arith.maximumf %311, %312 : vector<2x32xf32>
    %c0_168 = arith.constant 0 : index
    %c0_169 = arith.constant 0 : index
    %314 = vector.load %arg24[%c0_168, %c0_169] : memref<32x2xf32, #tpu.memory_space<vmem>>, vector<32x2xf32>
    %cst_170 = arith.constant dense<0.000000e+00> : vector<2x2xf32>
    %315 = tpu.matmul %313, %314, %cst_170 {dimension_numbers = #tpu.dot_dimension_numbers<[1], [0], [0], [1], [0, 0, 1, 1], [], []>} : vector<2x32xf32>, vector<32x2xf32>, vector<2x2xf32> -> vector<2x2xf32>
    %c0_171 = arith.constant 0 : index
    %c0_172 = arith.constant 0 : index
    %316 = vector.load %arg25[%c0_171, %c0_172] : memref<1x2xf32, #tpu.memory_space<vmem>>, vector<1x2xf32>
    %317 = vector.broadcast %316 : vector<1x2xf32> to vector<2x2xf32>
    %318 = arith.addf %315, %317 : vector<2x2xf32>
    %c0_173 = arith.constant 0 : index
    %c0_174 = arith.constant 0 : index
    %319 = vector.load %arg26[%c0_173, %c0_174] : memref<2x2xf32, #tpu.memory_space<vmem>>, vector<2x2xf32>
    tpu.vector_store %arg26[%c0_173, %c0_174], %318 {strides = array<i32>} : memref<2x2xf32, #tpu.memory_space<vmem>>, vector<2x2xf32>,
    %cst_175 = arith.constant dense<0xFF800000> : vector<2xf32>
    %320 = vector.multi_reduction <maximumf>, %318, %cst_175 [1] : vector<2x2xf32> to vector<2xf32>
    %321 = vector.shape_cast %320 : vector<2xf32> to vector<2x1xf32>
    %322 = vector.broadcast %321 : vector<2x1xf32> to vector<2x2xf32>
    %323 = arith.subf %318, %322 : vector<2x2xf32>
    %324 = math.exp %323 : vector<2x2xf32>
    %cst_176 = arith.constant dense<0.000000e+00> : vector<2xf32>
    %325 = vector.multi_reduction <add>, %324, %cst_176 [1] : vector<2x2xf32> to vector<2xf32>
    %326 = vector.shape_cast %325 : vector<2xf32> to vector<2x1xf32>
    %327 = vector.broadcast %326 : vector<2x1xf32> to vector<2x2xf32>
    %328 = arith.divf %324, %327 : vector<2x2xf32>
    %c0_177 = arith.constant 0 : index
    %c0_178 = arith.constant 0 : index
    %329 = vector.load %arg27[%c0_177, %c0_178] : memref<2x2xf32, #tpu.memory_space<vmem>>, vector<2x2xf32>
    tpu.vector_store %arg27[%c0_177, %c0_178], %328 {strides = array<i32>} : memref<2x2xf32, #tpu.memory_space<vmem>>, vector<2x2xf32>,
    %330 = vector.broadcast %321 : vector<2x1xf32> to vector<2x2xf32>
    %331 = arith.subf %318, %330 : vector<2x2xf32>
    %332 = math.log %326 : vector<2x1xf32>
    %333 = vector.broadcast %332 : vector<2x1xf32> to vector<2x2xf32>
    %334 = arith.subf %331, %333 : vector<2x2xf32>
    %c0_179 = arith.constant 0 : index
    %c0_180 = arith.constant 0 : index
    %335 = vector.load %arg6[%c0_179, %c0_180] : memref<2x2xf32, #tpu.memory_space<vmem>>, vector<2x2xf32>
    %336 = arith.mulf %335, %334 : vector<2x2xf32>
    %cst_181 = arith.constant dense<0.000000e+00> : vector<2xf32>
    %337 = vector.multi_reduction <add>, %336, %cst_181 [1] : vector<2x2xf32> to vector<2xf32>
    %338 = vector.shape_cast %337 : vector<2xf32> to vector<2x1xf32>
    %cst_182 = arith.constant 0.000000e+00 : f32
    %339 = vector.broadcast %cst_182 : f32 to vector<2x1xf32>
    %340 = arith.subf %339, %338 : vector<2x1xf32>
    %cst_183 = arith.constant dense<0.000000e+00> : vector<1xf32>
    %341 = vector.multi_reduction <add>, %340, %cst_183 [0] : vector<2x1xf32> to vector<1xf32>
    %342 = vector.shape_cast %341 : vector<1xf32> to vector<1x1xf32>
    %cst_184 = arith.constant 5.000000e-01 : f32
    %343 = vector.broadcast %cst_184 : f32 to vector<1x1xf32>
    %344 = arith.mulf %342, %343 : vector<1x1xf32>
    %c0_185 = arith.constant 0 : index
    %c0_186 = arith.constant 0 : index
    %345 = vector.load %arg28[%c0_185, %c0_186] : memref<1x1xf32, #tpu.memory_space<vmem>>, vector<1x1xf32>
    tpu.vector_store %arg28[%c0_185, %c0_186], %344 {strides = array<i32>} : memref<1x1xf32, #tpu.memory_space<vmem>>, vector<1x1xf32>,
    return
  }
}

</mosaic_0001>

<llo_original>
// kernel: eq.1
$region0: #{eq.1}
  %s0 = inlined_call_operand.vmem [shape: s32[2,8], index: 0, kind: input, shape index: {}]
  %s1 = inlined_call_operand.vmem [shape: s32[16], index: 1, kind: output, shape index: {}]
  $region1: #{eq.1} parent=0
    #allocation0 [shape = 'u8[4096]{0}', space=vmem, size = 0x1000, scoped, tag = 'scoped mem for output reshape']
    #allocation1 [shape = 'u8[4096]{0}', space=vmem, size = 0x1000, scoped, tag = 'scoped mem for input reshape']
    %s3 = sshllo.u32 0, 2
    %v4 = vld [vmem:[%s0] sm:%s3]
    %5 = vst [vmem:[#allocation1] sm:%s3] %v4
    %v6 = vld [vmem:[#allocation1] sm:$0x1]
    %vm7 = vcmask 64512
    %8 = vst.msk [vmem:[#allocation0] sm:$0x1] %vm7, %v6
    %s9 = scalar_lea.vmem [#allocation1], 1
    %v10 = vld [vmem:[%s9] sm:$0x1]
    %11 = vrot.lane.b32.xlu0 %v10, 8
    %v12 = vpop.permute.xlu0 %11
    %vm13 = vcmask 130112
    %14 = vst.msk [vmem:[#allocation0] sm:$0x1] %vm13, %v12
    %s16 = sshllo.u32 0, 1
    %v18 = vld [vmem:[#allocation0] sm:%s16]
    %s19 = sshllo.u32 0, 1
    %20 = vst [vmem:[%s1] sm:%s19] %v18

// kernel: tile.9
$region0: #{tile.9}
  %s0 = inlined_call_operand.vmem [shape: f32[16,4,16], index: 0, kind: input, shape index: {}]
  %s1 = inlined_call_operand.vmem [shape: f32[16,64], index: 1, kind: output, shape index: {}]
  $region1: #{tile.9} parent=0
    #allocation0 [shape = 'u8[65536]{0}', space=vmem, size = 0x10000, scoped, tag = 'scoped mem for input reshape']
    %s3 = sshllo.u32 0, 4
    %s4 = smul.addr 4, 15
    %s5 = scalar_lea.vmem %s0, %s4
    %v6 = vld [vmem:[%s5] sm:%s3]
    %s7 = scalar_lea.vmem [#allocation0], 120
    %8 = vst [vmem:[%s7] sm:%s3] %v6
    %s9 = smul.addr 4, 14
    %s10 = scalar_lea.vmem %s0, %s9
    %v11 = vld [vmem:[%s10] sm:%s3]
    %s12 = scalar_lea.vmem [#allocation0], 112
    %13 = vst [vmem:[%s12] sm:%s3] %v11
    %s14 = smul.addr 4, 13
    %s15 = scalar_lea.vmem %s0, %s14
    %v16 = vld [vmem:[%s15] sm:%s3]
    %s17 = scalar_lea.vmem [#allocation0], 104
    %18 = vst [vmem:[%s17] sm:%s3] %v16
    %s19 = smul.addr 4, 12
    %s20 = scalar_lea.vmem %s0, %s19
    %v21 = vld [vmem:[%s20] sm:%s3]
    %s22 = scalar_lea.vmem [#allocation0], 96
    %23 = vst [vmem:[%s22] sm:%s3] %v21
    %s24 = smul.addr 4, 11
    %s25 = scalar_lea.vmem %s0, %s24
    %v26 = vld [vmem:[%s25] sm:%s3]
    %s27 = scalar_lea.vmem [#allocation0], 88
    %28 = vst [vmem:[%s27] sm:%s3] %v26
    %s29 = smul.addr 4, 10
    %s30 = scalar_lea.vmem %s0, %s29
    %v31 = vld [vmem:[%s30] sm:%s3]
    %s32 = scalar_lea.vmem [#allocation0], 80
    %33 = vst [vmem:[%s32] sm:%s3] %v31
    %s34 = smul.addr 4, 9
    %s35 = scalar_lea.vmem %s0, %s34
    %v36 = vld [vmem:[%s35] sm:%s3]
    %s37 = scalar_lea.vmem [#allocation0], 72
    %38 = vst [vmem:[%s37] sm:%s3] %v36
    %s39 = smul.addr 4, 8
    %s40 = scalar_lea.vmem %s0, %s39
    %v41 = vld [vmem:[%s40] sm:%s3]
    %s42 = scalar_lea.vmem [#allocation0], 64
    %43 = vst [vmem:[%s42] sm:%s3] %v41
    %s44 = smul.addr 4, 7
    %s45 = scalar_lea.vmem %s0, %s44
    %v46 = vld [vmem:[%s45] sm:%s3]
    %s47 = scalar_lea.vmem [#allocation0], 56
    %48 = vst [vmem:[%s47] sm:%s3] %v46
    %s49 = smul.addr 4, 6
    %s50 = scalar_lea.vmem %s0, %s49
    %v51 = vld [vmem:[%s50] sm:%s3]
    %s52 = scalar_lea.vmem [#allocation0], 48
    %53 = vst [vmem:[%s52] sm:%s3] %v51
    %s54 = smul.addr 4, 5
    %s55 = scalar_lea.vmem %s0, %s54
    %v56 = vld [vmem:[%s55] sm:%s3]
    %s57 = scalar_lea.vmem [#allocation0], 40
    %58 = vst [vmem:[%s57] sm:%s3] %v56
    %s59 = smul.addr 4, 4
    %s60 = scalar_lea.vmem %s0, %s59
    %v61 = vld [vmem:[%s60] sm:%s3]
    %s62 = scalar_lea.vmem [#allocation0], 32
    %63 = vst [vmem:[%s62] sm:%s3] %v61
    %s64 = smul.addr 4, 3
    %s65 = scalar_lea.vmem %s0, %s64
    %v66 = vld [vmem:[%s65] sm:%s3]
    %s67 = scalar_lea.vmem [#allocation0], 24
    %68 = vst [vmem:[%s67] sm:%s3] %v66
    %s69 = smul.addr 4, 2
    %s70 = scalar_lea.vmem %s0, %s69
    %v71 = vld [vmem:[%s70] sm:%s3]
    %s72 = scalar_lea.vmem [#allocation0], 16
    %73 = vst [vmem:[%s72] sm:%s3] %v71
    %s74 = scalar_lea.vmem %s0, 4
    %v75 = vld [vmem:[%s74] sm:%s3]
    %s76 = scalar_lea.vmem [#allocation0], 8
    %77 = vst [vmem:[%s76] sm:%s3] %v75
    %v78 = vld [vmem:[%s0] sm:%s3]
    %79 = vst [vmem:[#allocation0] sm:%s3] %v78
    %v80 = vld [vmem:[#allocation0] ss:$8 sm:$0xf]
    %v81 = vld [vmem:[#allocation0] ss:$8 sm:$0xf0]
    %vm82 = vcmask 1047556
    %v83 = vsel %vm82, %v81, %v80
    %vm84 = vcmask 130048
    %85 = vst.msk [vmem:[%s1] sm:$0xff] %vm84, %v83
    %s86 = scalar_lea.vmem [#allocation0], 64
    %v87 = vld [vmem:[%s86] ss:$8 sm:$0xf]
    %s88 = scalar_lea.vmem [#allocation0], 64
    %v89 = vld [vmem:[%s88] ss:$8 sm:$0xf0]
    %vm90 = vcmask 1047556
    %v91 = vsel %vm90, %v89, %v87
    %vm92 = vcmask 130048
    %s93 = scalar_lea.vmem %s1, 8
    %94 = vst.msk [vmem:[%s93] sm:$0xff] %vm92, %v91
    %s95 = scalar_lea.vmem [#allocation0], 3
    %v96 = vld [vmem:[%s95] ss:$8 sm:$0xf]
    %s97 = scalar_lea.vmem [#allocation0], 3
    %v98 = vld [vmem:[%s97] ss:$8 sm:$0xf0]
    %vm99 = vcmask 1047556
    %v100 = vsel %vm99, %v98, %v96
    %101 = vrot.lane.b32.xlu0 %v100, 48
    %v102 = vpop.permute.xlu0 %101
    %vm103 = vcmask 523648
    %104 = vst.msk [vmem:[%s1] sm:$0xff] %vm103, %v102
    %s105 = scalar_lea.vmem [#allocation0], 67
    %v106 = vld [vmem:[%s105] ss:$8 sm:$0xf]
    %s107 = scalar_lea.vmem [#allocation0], 67
    %v108 = vld [vmem:[%s107] ss:$8 sm:$0xf0]
    %vm109 = vcmask 1047556
    %v110 = vsel %vm109, %v108, %v106
    %111 = vrot.lane.b32.xlu0 %v110, 48
    %v112 = vpop.permute.xlu0 %111
    %vm113 = vcmask 523648
    %s114 = scalar_lea.vmem %s1, 8
    %115 = vst.msk [vmem:[%s114] sm:$0xff] %vm113, %v112
    %s116 = scalar_lea.vmem [#allocation0], 2
    %v117 = vld [vmem:[%s116] ss:$8 sm:$0xf]
    %s118 = scalar_lea.vmem [#allocation0], 2
    %v119 = vld [vmem:[%s118] ss:$8 sm:$0xf0]
    %vm120 = vcmask 1047556
    %v121 = vsel %vm120, %v119, %v117
    %122 = vrot.lane.b32.xlu0 %v121, 32
    %v123 = vpop.permute.xlu0 %122
    %vm124 = vcmask 392448
    %125 = vst.msk [vmem:[%s1] sm:$0xff] %vm124, %v123
    %s126 = scalar_lea.vmem [#allocation0], 66
    %v127 = vld [vmem:[%s126] ss:$8 sm:$0xf]
    %s128 = scalar_lea.vmem [#allocation0], 66
    %v129 = vld [vmem:[%s128] ss:$8 sm:$0xf0]
    %vm130 = vcmask 1047556
    %v131 = vsel %vm130, %v129, %v127
    %132 = vrot.lane.b32.xlu0 %v131, 32
    %v133 = vpop.permute.xlu0 %132
    %vm134 = vcmask 392448
    %s135 = scalar_lea.vmem %s1, 8
    %136 = vst.msk [vmem:[%s135] sm:$0xff] %vm134, %v133
    %s137 = scalar_lea.vmem [#allocation0], 1
    %v138 = vld [vmem:[%s137] ss:$8 sm:$0xf]
    %s139 = scalar_lea.vmem [#allocation0], 1
    %v140 = vld [vmem:[%s139] ss:$8 sm:$0xf0]
    %vm141 = vcmask 1047556
    %v142 = vsel %vm141, %v140, %v138
    %143 = vrot.lane.b32.xlu0 %v142, 16
    %v144 = vpop.permute.xlu0 %143
    %vm145 = vcmask 261248
    %146 = vst.msk [vmem:[%s1] sm:$0xff] %vm145, %v144
    %s147 = scalar_lea.vmem [#allocation0], 65
    %v148 = vld [vmem:[%s147] ss:$8 sm:$0xf]
    %s149 = scalar_lea.vmem [#allocation0], 65
    %v150 = vld [vmem:[%s149] ss:$8 sm:$0xf0]
    %vm151 = vcmask 1047556
    %v152 = vsel %vm151, %v150, %v148
    %153 = vrot.lane.b32.xlu0 %v152, 16
    %v154 = vpop.permute.xlu0 %153
    %vm155 = vcmask 261248
    %s156 = scalar_lea.vmem %s1, 8
    %157 = vst.msk [vmem:[%s156] sm:$0xff] %vm155, %v154

// kernel: distilbert_forward.1
$region0: #{distilbert_forward.1}
  #allocation0 [shape = 'u32[]', space=smem, size = 0x4, offset = 0x4, fixed_abs, tag = 'smem constant byte address 0x4 - core index']
  #allocation1 [shape = 'u32[144,128]{1,0:T(1,128)}', space=vmem, size = 0x12000, scoped, tag = 'internal scratch']
  %s0 = inlined_call_operand.vmem [shape: f32[16,128], index: 0, kind: input, shape index: {}]
  %s1 = inlined_call_operand.vmem [shape: f32[8,32], index: 1, kind: input, shape index: {}]
  %s2 = inlined_call_operand.vmem [shape: f32[16,64], index: 2, kind: input, shape index: {}]
  %s3 = inlined_call_operand.vmem [shape: f32[64,32], index: 3, kind: input, shape index: {}]
  %s4 = inlined_call_operand.vmem [shape: f32[64,64], index: 4, kind: input, shape index: {}]
  %s5 = inlined_call_operand.vmem [shape: f32[2,16], index: 5, kind: input, shape index: {}]
  %s6 = inlined_call_operand.vmem [shape: f32[2,2], index: 6, kind: input, shape index: {}]
  %s7 = inlined_call_operand.vmem [shape: f32[128,32], index: 7, kind: input, shape index: {}]
  %s8 = inlined_call_operand.vmem [shape: f32[1,32], index: 8, kind: input, shape index: {}]
  %s9 = inlined_call_operand.vmem [shape: f32[1,32], index: 9, kind: input, shape index: {}]
  %s10 = inlined_call_operand.vmem [shape: f32[2,32,96], index: 10, kind: input, shape index: {}]
  %s11 = inlined_call_operand.vmem [shape: f32[2,1,96], index: 11, kind: input, shape index: {}]
  %s12 = inlined_call_operand.vmem [shape: f32[2,32,32], index: 12, kind: input, shape index: {}]
  %s13 = inlined_call_operand.vmem [shape: f32[2,1,32], index: 13, kind: input, shape index: {}]
  %s14 = inlined_call_operand.vmem [shape: f32[2,1,32], index: 14, kind: input, shape index: {}]
  %s15 = inlined_call_operand.vmem [shape: f32[2,1,32], index: 15, kind: input, shape index: {}]
  %s16 = inlined_call_operand.vmem [shape: f32[2,32,64], index: 16, kind: input, shape index: {}]
  %s17 = inlined_call_operand.vmem [shape: f32[2,1,64], index: 17, kind: input, shape index: {}]
  %s18 = inlined_call_operand.vmem [shape: f32[2,64,32], index: 18, kind: input, shape index: {}]
  %s19 = inlined_call_operand.vmem [shape: f32[2,1,32], index: 19, kind: input, shape index: {}]
  %s20 = inlined_call_operand.vmem [shape: f32[2,1,32], index: 20, kind: input, shape index: {}]
  %s21 = inlined_call_operand.vmem [shape: f32[2,1,32], index: 21, kind: input, shape index: {}]
  %s22 = inlined_call_operand.vmem [shape: f32[32,32], index: 22, kind: input, shape index: {}]
  %s23 = inlined_call_operand.vmem [shape: f32[1,32], index: 23, kind: input, shape index: {}]
  %s24 = inlined_call_operand.vmem [shape: f32[32,2], index: 24, kind: input, shape index: {}]
  %s25 = inlined_call_operand.vmem [shape: f32[1,2], index: 25, kind: input, shape index: {}]
  %s26 = inlined_call_operand.hbm [shape: f32[2,2], index: 26, kind: output, shape index: {0}]
  %s27 = inlined_call_operand.hbm [shape: f32[2,2], index: 27, kind: output, shape index: {1}]
  %s28 = inlined_call_operand.hbm [shape: f32[1,1], index: 28, kind: output, shape index: {2}]
  %29 = xla_tuple %s26, %s27, %s28
  %s30 = sld [smem:[#allocation0]]
  $region130: #{distilbert_forward.1} parent=0
    _
  %s32 = ssub.s32 1, %s30
  %s33 = scalar_select 0, %s32, %s30
  $region1: #{distilbert_forward.1} parent=0
    #allocation2 [shape = 'u8[1024]{0}', space=vmem, size = 0x400, scoped, tag = 'output window, operand 0, single buffered']
    #allocation3 [shape = 's32[1]{0}', space=sflag, size = 0x4, scoped, tag = 'scoped memory for distilbert_forward.1']
    #allocation4 [shape = 'u8[1024]{0}', space=vmem, size = 0x400, scoped, tag = 'output window, operand 1, single buffered']
    #allocation5 [shape = 's32[1]{0}', space=sflag, size = 0x4, scoped, tag = 'scoped memory for distilbert_forward.1']
    #allocation6 [shape = 'u8[512]{0}', space=vmem, size = 0x400, scoped, tag = 'output window, operand 2, single buffered']
    %34 = vsyncpa [#allocation3], 0
    %35 = vsyncpa [#allocation5], 0
    // Predicated region
    $region2: #{distilbert_forward.1} parent=1 // pred_check
      _
    $region3: #{distilbert_forward.1} parent=1 // pred_check_branch
      %37 = sbr.rel (0) target = $region5
    $region4: #{distilbert_forward.1} parent=1 // pred_region
      _
    $region5: #{distilbert_forward.1} parent=1 // pred_fallthru
      _
    // Predicated region
    $region6: #{distilbert_forward.1} parent=1 // pred_check
      _
    $region7: #{distilbert_forward.1} parent=1 // pred_check_branch
      %39 = sbr.rel (0) target = $region9
    $region8: #{distilbert_forward.1} parent=1 // pred_region
      _
    $region9: #{distilbert_forward.1} parent=1 // pred_fallthru
      _
    // Predicated region
    $region10: #{distilbert_forward.1} parent=1 // pred_check
      _
    $region11: #{distilbert_forward.1} parent=1 // pred_check_branch
      %41 = sbr.rel (0) target = $region13
    $region12: #{distilbert_forward.1} parent=1 // pred_region
      _
    $region13: #{distilbert_forward.1} parent=1 // pred_fallthru
      _
    // Predicated region
    $region14: #{distilbert_forward.1} parent=1 // pred_check
      _
    $region15: #{distilbert_forward.1} parent=1 // pred_check_branch
      %43 = sbr.rel (0) target = $region17
    $region16: #{distilbert_forward.1} parent=1 // pred_region
      _
    $region17: #{distilbert_forward.1} parent=1 // pred_fallthru
      _
    // Predicated region
    $region18: #{distilbert_forward.1} parent=1 // pred_check
      _
    $region19: #{distilbert_forward.1} parent=1 // pred_check_branch
      %45 = sbr.rel (0) target = $region21
    $region20: #{distilbert_forward.1} parent=1 // pred_region
      _
    $region21: #{distilbert_forward.1} parent=1 // pred_fallthru
      _
    // Predicated region
    $region22: #{distilbert_forward.1} parent=1 // pred_check
      _
    $region23: #{distilbert_forward.1} parent=1 // pred_check_branch
      %47 = sbr.rel (0) target = $region25
    $region24: #{distilbert_forward.1} parent=1 // pred_region
      _
    $region25: #{distilbert_forward.1} parent=1 // pred_fallthru
      _
    // Predicated region
    $region26: #{distilbert_forward.1} parent=1 // pred_check
      _
    $region27: #{distilbert_forward.1} parent=1 // pred_check_branch
      %49 = sbr.rel (0) target = $region29
    $region28: #{distilbert_forward.1} parent=1 // pred_region
      _
    $region29: #{distilbert_forward.1} parent=1 // pred_fallthru
      _
    // Predicated region
    $region30: #{distilbert_forward.1} parent=1 // pred_check
      _
    $region31: #{distilbert_forward.1} parent=1 // pred_check_branch
      %51 = sbr.rel (0) target = $region33
    $region32: #{distilbert_forward.1} parent=1 // pred_region
      _
    $region33: #{distilbert_forward.1} parent=1 // pred_fallthru
      _
    // Predicated region
    $region34: #{distilbert_forward.1} parent=1 // pred_check
      _
    $region35: #{distilbert_forward.1} parent=1 // pred_check_branch
      %53 = sbr.rel (0) target = $region37
    $region36: #{distilbert_forward.1} parent=1 // pred_region
      _
    $region37: #{distilbert_forward.1} parent=1 // pred_fallthru
      _
    // Predicated region
    $region38: #{distilbert_forward.1} parent=1 // pred_check
      _
    $region39: #{distilbert_forward.1} parent=1 // pred_check_branch
      %55 = sbr.rel (0) target = $region41
    $region40: #{distilbert_forward.1} parent=1 // pred_region
      _
    $region41: #{distilbert_forward.1} parent=1 // pred_fallthru
      _
    // Predicated region
    $region42: #{distilbert_forward.1} parent=1 // pred_check
      _
    $region43: #{distilbert_forward.1} parent=1 // pred_check_branch
      %57 = sbr.rel (0) target = $region45
    $region44: #{distilbert_forward.1} parent=1 // pred_region
      _
    $region45: #{distilbert_forward.1} parent=1 // pred_fallthru
      _
    // Predicated region
    $region46: #{distilbert_forward.1} parent=1 // pred_check
      _
    $region47: #{distilbert_forward.1} parent=1 // pred_check_branch
      %59 = sbr.rel (0) target = $region49
    $region48: #{distilbert_forward.1} parent=1 // pred_region
      _
    $region49: #{distilbert_forward.1} parent=1 // pred_fallthru
      _
    // Predicated region
    $region50: #{distilbert_forward.1} parent=1 // pred_check
      _
    $region51: #{distilbert_forward.1} parent=1 // pred_check_branch
      %61 = sbr.rel (0) target = $region53
    $region52: #{distilbert_forward.1} parent=1 // pred_region
      _
    $region53: #{distilbert_forward.1} parent=1 // pred_fallthru
      _
    // Predicated region
    $region54: #{distilbert_forward.1} parent=1 // pred_check
      _
    $region55: #{distilbert_forward.1} parent=1 // pred_check_branch
      %63 = sbr.rel (0) target = $region57
    $region56: #{distilbert_forward.1} parent=1 // pred_region
      _
    $region57: #{distilbert_forward.1} parent=1 // pred_fallthru
      _
    // Predicated region
    $region58: #{distilbert_forward.1} parent=1 // pred_check
      _
    $region59: #{distilbert_forward.1} parent=1 // pred_check_branch
      %65 = sbr.rel (0) target = $region61
    $region60: #{distilbert_forward.1} parent=1 // pred_region
      _
    $region61: #{distilbert_forward.1} parent=1 // pred_fallthru
      _
    // Predicated region
    $region62: #{distilbert_forward.1} parent=1 // pred_check
      _
    $region63: #{distilbert_forward.1} parent=1 // pred_check_branch
      %67 = sbr.rel (0) target = $region65
    $region64: #{distilbert_forward.1} parent=1 // pred_region
      _
    $region65: #{distilbert_forward.1} parent=1 // pred_fallthru
      _
    // Predicated region
    $region66: #{distilbert_forward.1} parent=1 // pred_check
      _
    $region67: #{distilbert_forward.1} parent=1 // pred_check_branch
      %69 = sbr.rel (0) target = $region69
    $region68: #{distilbert_forward.1} parent=1 // pred_region
      _
    $region69: #{distilbert_forward.1} parent=1 // pred_fallthru
      _
    // Predicated region
    $region70: #{distilbert_forward.1} parent=1 // pred_check
      _
    $region71: #{distilbert_forward.1} parent=1 // pred_check_branch
      %71 = sbr.rel (0) target = $region73
    $region72: #{distilbert_forward.1} parent=1 // pred_region
      _
    $region73: #{distilbert_forward.1} parent=1 // pred_fallthru
      _
    // Predicated region
    $region74: #{distilbert_forward.1} parent=1 // pred_check
      _
    $region75: #{distilbert_forward.1} parent=1 // pred_check_branch
      %73 = sbr.rel (0) target = $region77
    $region76: #{distilbert_forward.1} parent=1 // pred_region
      _
    $region77: #{distilbert_forward.1} parent=1 // pred_fallthru
      _
    // Predicated region
    $region78: #{distilbert_forward.1} parent=1 // pred_check
      _
    $region79: #{distilbert_forward.1} parent=1 // pred_check_branch
      %75 = sbr.rel (0) target = $region81
    $region80: #{distilbert_forward.1} parent=1 // pred_region
      _
    $region81: #{distilbert_forward.1} parent=1 // pred_fallthru
      _
    // Predicated region
    $region82: #{distilbert_forward.1} parent=1 // pred_check
      _
    $region83: #{distilbert_forward.1} parent=1 // pred_check_branch
      %77 = sbr.rel (0) target = $region85
    $region84: #{distilbert_forward.1} parent=1 // pred_region
      _
    $region85: #{distilbert_forward.1} parent=1 // pred_fallthru
      _
    // Predicated region
    $region86: #{distilbert_forward.1} parent=1 // pred_check
      _
    $region87: #{distilbert_forward.1} parent=1 // pred_check_branch
      %79 = sbr.rel (0) target = $region89
    $region88: #{distilbert_forward.1} parent=1 // pred_region
      _
    $region89: #{distilbert_forward.1} parent=1 // pred_fallthru
      _
    // Predicated region
    $region90: #{distilbert_forward.1} parent=1 // pred_check
      _
    $region91: #{distilbert_forward.1} parent=1 // pred_check_branch
      %81 = sbr.rel (0) target = $region93
    $region92: #{distilbert_forward.1} parent=1 // pred_region
      _
    $region93: #{distilbert_forward.1} parent=1 // pred_fallthru
      _
    // Predicated region
    $region94: #{distilbert_forward.1} parent=1 // pred_check
      _
    $region95: #{distilbert_forward.1} parent=1 // pred_check_branch
      %83 = sbr.rel (0) target = $region97
    $region96: #{distilbert_forward.1} parent=1 // pred_region
      _
    $region97: #{distilbert_forward.1} parent=1 // pred_fallthru
      _
    // Predicated region
    $region98: #{distilbert_forward.1} parent=1 // pred_check
      _
    $region99: #{distilbert_forward.1} parent=1 // pred_check_branch
      %85 = sbr.rel (0) target = $region101
    $region100: #{distilbert_forward.1} parent=1 // pred_region
      _
    $region101: #{distilbert_forward.1} parent=1 // pred_fallthru
      _
    // Predicated region
    $region102: #{distilbert_forward.1} parent=1 // pred_check
      _
    $region103: #{distilbert_forward.1} parent=1 // pred_check_branch
      %87 = sbr.rel (0) target = $region105
    $region104: #{distilbert_forward.1} parent=1 // pred_region
      _
    $region105: #{distilbert_forward.1} parent=1 // pred_fallthru
      _
    %v88 = vld [vmem:[%s0] sm:$0xff]
    %v89 = vld [vmem:[%s0 + $0x8] sm:$0xff]
    %v90 = vld [vmem:[%s7] sm:$0xff]
    %v91 = vld [vmem:[%s7 + $0x8] sm:$0xff]
    %v92 = vld [vmem:[%s7 + $0x10] sm:$0xff]
    %v93 = vld [vmem:[%s7 + $0x18] sm:$0xff]
    %v94 = vld [vmem:[%s7 + $0x20] sm:$0xff]
    %v95 = vld [vmem:[%s7 + $0x28] sm:$0xff]
    %v96 = vld [vmem:[%s7 + $0x30] sm:$0xff]
    %v97 = vld [vmem:[%s7 + $0x38] sm:$0xff]
    %v98 = vld [vmem:[%s7 + $0x40] sm:$0xff]
    %v99 = vld [vmem:[%s7 + $0x48] sm:$0xff]
    %v100 = vld [vmem:[%s7 + $0x50] sm:$0xff]
    %v101 = vld [vmem:[%s7 + $0x58] sm:$0xff]
    %v102 = vld [vmem:[%s7 + $0x60] sm:$0xff]
    %v103 = vld [vmem:[%s7 + $0x68] sm:$0xff]
    %v104 = vld [vmem:[%s7 + $0x70] sm:$0xff]
    %v105 = vld [vmem:[%s7 + $0x78] sm:$0xff]
    %v106 = vld [vmem:[%s1] sm:$0xff]
    %107 = vmatprep.subr.mxu0 0.0
    %108 = vmatpush1.msra.mxu0 %v90
    %109 = vmatprep.subr.mxu0 0.0
    %110 = vmatpush1.msra.mxu0 %v91
    %111 = vmatprep.subr.mxu0 0.0
    %112 = vmatpush1.msra.mxu0 %v92
    %113 = vmatprep.subr.mxu0 0.0
    %114 = vmatpush1.msra.mxu0 %v93
    %115 = vmatprep.subr.mxu0 0.0
    %116 = vmatpush1.msra.mxu0 %v94
    %117 = vmatprep.subr.mxu0 0.0
    %118 = vmatpush1.msra.mxu0 %v95
    %119 = vmatprep.subr.mxu0 0.0
    %120 = vmatpush1.msra.mxu0 %v96
    %121 = vmatprep.subr.mxu0 0.0
    %122 = vmatpush1.msra.mxu0 %v97
    %123 = vmatprep.subr.mxu0 0.0
    %124 = vmatpush1.msra.mxu0 %v98
    %125 = vmatprep.subr.mxu0 0.0
    %126 = vmatpush1.msra.mxu0 %v99
    %127 = vmatprep.subr.mxu0 0.0
    %128 = vmatpush1.msra.mxu0 %v100
    %129 = vmatprep.subr.mxu0 0.0
    %130 = vmatpush1.msra.mxu0 %v101
    %131 = vmatprep.subr.mxu0 0.0
    %132 = vmatpush1.msra.mxu0 %v102
    %133 = vmatprep.subr.mxu0 0.0
    %134 = vmatpush1.msra.mxu0 %v103
    %135 = vmatprep.subr.mxu0 0.0
    %136 = vmatpush1.msra.mxu0 %v104
    %137 = vmatprep.subr.mxu0 0.0
    %138 = vmatpush1.msra.mxu0 %v105
    %139 = vmatprep.subr.mxu0 0.0
    %140 = vmatpush1.msra.mxu0 0.0
    %141 = vmatprep.subr.mxu0 0.0
    %142 = vmatpush1.msra.mxu0 0.0
    %143 = vmatprep.subr.mxu0 0.0
    %144 = vmatpush1.msra.mxu0 0.0
    %145 = vmatprep.subr.mxu0 0.0
    %146 = vmatpush1.msra.mxu0 0.0
    %147 = vmatprep.subr.mxu0 0.0
    %148 = vmatpush1.msra.mxu0 0.0
    %149 = vmatprep.subr.mxu0 0.0
    %150 = vmatpush1.msra.mxu0 0.0
    %151 = vmatprep.subr.mxu0 0.0
    %152 = vmatpush1.msra.mxu0 0.0
    %153 = vmatprep.subr.mxu0 0.0
    %154 = vmatpush1.msra.mxu0 0.0
    %155 = vmatprep.subr.mxu0 0.0
    %156 = vmatpush1.msra.mxu0 0.0
    %157 = vmatprep.subr.mxu0 0.0
    %158 = vmatpush1.msra.mxu0 0.0
    %159 = vmatprep.subr.mxu0 0.0
    %160 = vmatpush1.msra.mxu0 0.0
    %161 = vmatprep.subr.mxu0 0.0
    %162 = vmatpush1.msra.mxu0 0.0
    %163 = vmatprep.subr.mxu0 0.0
    %164 = vmatpush1.msra.mxu0 0.0
    %165 = vmatprep.subr.mxu0 0.0
    %166 = vmatpush1.msra.mxu0 0.0
    %167 = vmatprep.subr.mxu0 0.0
    %168 = vmatpush1.msra.mxu0 0.0
    %169 = vmatprep.subr.mxu0 0.0
    %170 = vmatpush1.msra.mxu0 0.0
    %171 = vmatprep.mubr.f32.mxu0 0.0
    %172 = vmatmul.mubr.f32.gmra.mrb[0].mxu0 %v88
    %v173 = vpop.f32.mrb[0].mxu0
    %v174 = vadd.f32 %v106, %v173
    %v175 = vpop.f32.mrb[0].mxu0
    %176 = vmatprep.mubr.f32.mxu0 0.0
    %177 = vmatmul.mubr.f32.gmra.mrb[0].mxu0 %v89
    %v178 = vpop.f32.mrb[0].mxu0
    %v179 = vadd.f32 %v106, %v178
    %v180 = vpop.f32.mrb[0].mxu0
    %181 = vdwg.mxu0
    %v182 = vld [vmem:[%s8] sm:$0x1]
    %v183 = vld [vmem:[%s9] sm:$0x1]
    %vm184 = vcmask 261120
    %v185 = vsel %vm184, %v174, 0.0
    %186 = vadd.xlane.f32.xlu0 %v185
    %v187 = vpop.xlane.xlu0 %186
    %v188 = vsel %vm184, %v179, 0.0
    %189 = vadd.xlane.f32.xlu0 %v188
    %v190 = vpop.xlane.xlu0 %189
    %v191 = vrcp.pop 32.0
    %v192 = vmul.f32 %v187, %v191
    %v193 = vmul.f32 %v190, %v191
    %v194 = vsub.f32 %v174, %v192
    %v195 = vsub.f32 %v179, %v193
    %v196 = vmul.f32 %v194, %v194
    %v197 = vmul.f32 %v195, %v195
    %v198 = vsel %vm184, %v196, 0.0
    %199 = vadd.xlane.f32.xlu0 %v198
    %v200 = vpop.xlane.xlu0 %199
    %v201 = vsel %vm184, %v197, 0.0
    %202 = vadd.xlane.f32.xlu0 %v201
    %v203 = vpop.xlane.xlu0 %202
    %v204 = vmul.f32 %v200, %v191
    %v205 = vmul.f32 %v203, %v191
    %v206 = vadd.f32 %v204, 1e-12
    %v207 = vadd.f32 %v205, 1e-12
    %v208 = vrsqrt.pop %v206
    %v209 = vrsqrt.pop %v207
    %v210 = vmul.f32 %v194, %v208
    %v211 = vmul.f32 %v195, %v209
    %v213 = vlaneseq
    %v214 = vshrl.u32 %v213, 7
    %v215 = vsub.s32 0, %v214
    %v216 = vrot.slane %v182, %v215
    %v218 = vmul.f32 %v210, %v216
    %v219 = vmul.f32 %v211, %v216
    %v221 = vlaneseq
    %v222 = vshrl.u32 %v221, 7
    %v223 = vsub.s32 0, %v222
    %v224 = vrot.slane %v183, %v223
    %v226 = vadd.f32 %v218, %v224
    %v227 = vadd.f32 %v219, %v224
    %v228 = vld [vmem:[%s2] sm:$0xff]
    %v229 = vld [vmem:[%s2 + $0x8] sm:$0xff]
    %v230 = vld [vmem:[%s3] sm:$0xff]
    %v231 = vld [vmem:[%s3 + $0x8] sm:$0xff]
    %v232 = vld [vmem:[%s3 + $0x10] sm:$0xff]
    %v233 = vld [vmem:[%s3 + $0x18] sm:$0xff]
    %v234 = vld [vmem:[%s3 + $0x20] sm:$0xff]
    %v235 = vld [vmem:[%s3 + $0x28] sm:$0xff]
    %v236 = vld [vmem:[%s3 + $0x30] sm:$0xff]
    %v237 = vld [vmem:[%s3 + $0x38] sm:$0xff]
    %v238 = vld [vmem:[%s4] sm:$0xff]
    %v239 = vld [vmem:[%s4 + $0x8] sm:$0xff]
    %v240 = vld [vmem:[%s4 + $0x10] sm:$0xff]
    %v241 = vld [vmem:[%s4 + $0x18] sm:$0xff]
    %v242 = vld [vmem:[%s4 + $0x20] sm:$0xff]
    %v243 = vld [vmem:[%s4 + $0x28] sm:$0xff]
    %v244 = vld [vmem:[%s4 + $0x30] sm:$0xff]
    %v245 = vld [vmem:[%s4 + $0x38] sm:$0xff]
    %v246 = vld [vmem:[%s10] sm:$0xff]
    %v247 = vld [vmem:[%s10 + $0x8] sm:$0xff]
    %v248 = vld [vmem:[%s10 + $0x10] sm:$0xff]
    %v249 = vld [vmem:[%s10 + $0x18] sm:$0xff]
    %v250 = vld [vmem:[%s11] sm:$0x1]
    %v252 = vlaneseq
    %v253 = vshrl.u32 %v252, 7
    %v254 = vsub.s32 0, %v253
    %v255 = vrot.slane %v250, %v254
    %v258 = vsel %vm184, %v226, 0
    %v261 = vsel %vm184, %v227, 0
    %263 = vmatprep.subr.mxu0 0.0
    %264 = vmatpush1.msra.mxu0 %v246
    %265 = vmatprep.subr.mxu0 0.0
    %266 = vmatpush1.msra.mxu0 %v247
    %267 = vmatprep.subr.mxu0 0.0
    %268 = vmatpush1.msra.mxu0 %v248
    %269 = vmatprep.subr.mxu0 0.0
    %270 = vmatpush1.msra.mxu0 %v249
    %271 = vmatprep.subr.mxu0 0.0
    %272 = vmatpush1.msra.mxu0 0.0
    %273 = vmatprep.subr.mxu0 0.0
    %274 = vmatpush1.msra.mxu0 0.0
    %275 = vmatprep.subr.mxu0 0.0
    %276 = vmatpush1.msra.mxu0 0.0
    %277 = vmatprep.subr.mxu0 0.0
    %278 = vmatpush1.msra.mxu0 0.0
    %279 = vmatprep.subr.mxu0 0.0
    %280 = vmatpush1.msra.mxu0 0.0
    %281 = vmatprep.subr.mxu0 0.0
    %282 = vmatpush1.msra.mxu0 0.0
    %283 = vmatprep.subr.mxu0 0.0
    %284 = vmatpush1.msra.mxu0 0.0
    %285 = vmatprep.subr.mxu0 0.0
    %286 = vmatpush1.msra.mxu0 0.0
    %287 = vmatprep.subr.mxu0 0.0
    %288 = vmatpush1.msra.mxu0 0.0
    %289 = vmatprep.subr.mxu0 0.0
    %290 = vmatpush1.msra.mxu0 0.0
    %291 = vmatprep.subr.mxu0 0.0
    %292 = vmatpush1.msra.mxu0 0.0
    %293 = vmatprep.subr.mxu0 0.0
    %294 = vmatpush1.msra.mxu0 0.0
    %295 = vmatprep.subr.mxu0 0.0
    %296 = vmatpush1.msra.mxu0 0.0
    %297 = vmatprep.subr.mxu0 0.0
    %298 = vmatpush1.msra.mxu0 0.0
    %299 = vmatprep.subr.mxu0 0.0
    %300 = vmatpush1.msra.mxu0 0.0
    %301 = vmatprep.subr.mxu0 0.0
    %302 = vmatpush1.msra.mxu0 0.0
    %303 = vmatprep.subr.mxu0 0.0
    %304 = vmatpush1.msra.mxu0 0.0
    %305 = vmatprep.subr.mxu0 0.0
    %306 = vmatpush1.msra.mxu0 0.0
    %307 = vmatprep.subr.mxu0 0.0
    %308 = vmatpush1.msra.mxu0 0.0
    %309 = vmatprep.subr.mxu0 0.0
    %310 = vmatpush1.msra.mxu0 0.0
    %311 = vmatprep.subr.mxu0 0.0
    %312 = vmatpush1.msra.mxu0 0.0
    %313 = vmatprep.subr.mxu0 0.0
    %314 = vmatpush1.msra.mxu0 0.0
    %315 = vmatprep.subr.mxu0 0.0
    %316 = vmatpush1.msra.mxu0 0.0
    %317 = vmatprep.subr.mxu0 0.0
    %318 = vmatpush1.msra.mxu0 0.0
    %319 = vmatprep.subr.mxu0 0.0
    %320 = vmatpush1.msra.mxu0 0.0
    %321 = vmatprep.subr.mxu0 0.0
    %322 = vmatpush1.msra.mxu0 0.0
    %323 = vmatprep.subr.mxu0 0.0
    %324 = vmatpush1.msra.mxu0 0.0
    %325 = vmatprep.subr.mxu0 0.0
    %326 = vmatpush1.msra.mxu0 0.0
    %327 = vmatprep.mubr.f32.mxu0 0.0
    %328 = vmatmul.mubr.f32.gmra.mrb[0].mxu0 %v258
    %v329 = vpop.f32.mrb[0].mxu0
    %v330 = vadd.f32 %v255, %v329
    %v331 = vpop.f32.mrb[0].mxu0
    %332 = vmatprep.mubr.f32.mxu0 0.0
    %333 = vmatmul.mubr.f32.gmra.mrb[0].mxu0 %v261
    %v334 = vpop.f32.mrb[0].mxu0
    %v335 = vadd.f32 %v255, %v334
    %v336 = vpop.f32.mrb[0].mxu0
    %337 = vdwg.mxu0
    %v338 = vmul.f32 %v330, 0.35355338
    %v339 = vmul.f32 %v335, 0.35355338
    %348 = vrot.lane.b32.xlu0 %v230, 32
    %v349 = vpop.permute.xlu0 %348
    %350 = vrot.lane.b32.xlu0 %v231, 32
    %v351 = vpop.permute.xlu0 %350
    %352 = vrot.lane.b32.xlu0 %v232, 32
    %v353 = vpop.permute.xlu0 %352
    %354 = vrot.lane.b32.xlu0 %v233, 32
    %v355 = vpop.permute.xlu0 %354
    %356 = vrot.lane.b32.xlu0 %v234, 32
    %v357 = vpop.permute.xlu0 %356
    %358 = vrot.lane.b32.xlu0 %v235, 32
    %v359 = vpop.permute.xlu0 %358
    %360 = vrot.lane.b32.xlu0 %v236, 32
    %v361 = vpop.permute.xlu0 %360
    %362 = vrot.lane.b32.xlu0 %v237, 32
    %v363 = vpop.permute.xlu0 %362
    %v372 = vmul.f32 %v330, %v349
    %v373 = vmul.f32 %v335, %v351
    %v374 = vmul.f32 %v330, %v353
    %v375 = vmul.f32 %v335, %v355
    %v376 = vmul.f32 %v330, %v357
    %v377 = vmul.f32 %v335, %v359
    %v378 = vmul.f32 %v330, %v361
    %v379 = vmul.f32 %v335, %v363
    %388 = vrot.lane.b32.xlu0 %v372, 96
    %v389 = vpop.permute.xlu0 %388
    %390 = vrot.lane.b32.xlu0 %v373, 96
    %v391 = vpop.permute.xlu0 %390
    %392 = vrot.lane.b32.xlu0 %v374, 96
    %v393 = vpop.permute.xlu0 %392
    %394 = vrot.lane.b32.xlu0 %v375, 96
    %v395 = vpop.permute.xlu0 %394
    %396 = vrot.lane.b32.xlu0 %v376, 96
    %v397 = vpop.permute.xlu0 %396
    %398 = vrot.lane.b32.xlu0 %v377, 96
    %v399 = vpop.permute.xlu0 %398
    %400 = vrot.lane.b32.xlu0 %v378, 96
    %v401 = vpop.permute.xlu0 %400
    %402 = vrot.lane.b32.xlu0 %v379, 96
    %v403 = vpop.permute.xlu0 %402
    %v405 = vsel %vm184, %v338, 0
    %v408 = vsel %vm184, %v339, 0
    %v410 = vsel %vm184, %v389, 0
    %v412 = vsel %vm184, %v391, 0
    %v414 = vsel %vm184, %v393, 0
    %v416 = vsel %vm184, %v395, 0
    %v418 = vsel %vm184, %v397, 0
    %v420 = vsel %vm184, %v399, 0
    %v422 = vsel %vm184, %v401, 0
    %v424 = vsel %vm184, %v403, 0
    %426 = vmatprep.subr.mxu0 0.0
    %427 = vmatpush1.xpose.msra.mxu0 %v410
    %428 = vmatprep.subr.mxu0 0.0
    %429 = vmatpush1.xpose.msra.mxu0 %v412
    %430 = vmatprep.subr.mxu0 0.0
    %431 = vmatpush1.xpose.msra.mxu0 %v414
    %432 = vmatprep.subr.mxu0 0.0
    %433 = vmatpush1.xpose.msra.mxu0 %v416
    %434 = vmatprep.subr.mxu0 0.0
    %435 = vmatpush1.xpose.msra.mxu0 %v418
    %436 = vmatprep.subr.mxu0 0.0
    %437 = vmatpush1.xpose.msra.mxu0 %v420
    %438 = vmatprep.subr.mxu0 0.0
    %439 = vmatpush1.xpose.msra.mxu0 %v422
    %440 = vmatprep.subr.mxu0 0.0
    %441 = vmatpush1.xpose.msra.mxu0 %v424
    %442 = vmatprep.subr.mxu0 0.0
    %443 = vmatpush1.xpose.msra.mxu0 0.0
    %444 = vmatprep.subr.mxu0 0.0
    %445 = vmatpush1.xpose.msra.mxu0 0.0
    %446 = vmatprep.subr.mxu0 0.0
    %447 = vmatpush1.xpose.msra.mxu0 0.0
    %448 = vmatprep.subr.mxu0 0.0
    %449 = vmatpush1.xpose.msra.mxu0 0.0
    %450 = vmatprep.subr.mxu0 0.0
    %451 = vmatpush1.xpose.msra.mxu0 0.0
    %452 = vmatprep.subr.mxu0 0.0
    %453 = vmatpush1.xpose.msra.mxu0 0.0
    %454 = vmatprep.subr.mxu0 0.0
    %455 = vmatpush1.xpose.msra.mxu0 0.0
    %456 = vmatprep.subr.mxu0 0.0
    %457 = vmatpush1.xpose.msra.mxu0 0.0
    %458 = vmatprep.subr.mxu0 0.0
    %459 = vmatpush1.xpose.msra.mxu0 0.0
    %460 = vmatprep.subr.mxu0 0.0
    %461 = vmatpush1.xpose.msra.mxu0 0.0
    %462 = vmatprep.subr.mxu0 0.0
    %463 = vmatpush1.xpose.msra.mxu0 0.0
    %464 = vmatprep.subr.mxu0 0.0
    %465 = vmatpush1.xpose.msra.mxu0 0.0
    %466 = vmatprep.subr.mxu0 0.0
    %467 = vmatpush1.xpose.msra.mxu0 0.0
    %468 = vmatprep.subr.mxu0 0.0
    %469 = vmatpush1.xpose.msra.mxu0 0.0
    %470 = vmatprep.subr.mxu0 0.0
    %471 = vmatpush1.xpose.msra.mxu0 0.0
    %472 = vmatprep.subr.mxu0 0.0
    %473 = vmatpush1.xpose.msra.mxu0 0.0
    %474 = vmatprep.subr.mxu0 0.0
    %475 = vmatpush1.xpose.msra.mxu0 0.0
    %476 = vmatprep.subr.mxu0 0.0
    %477 = vmatpush1.xpose.msra.mxu0 0.0
    %478 = vmatprep.subr.mxu0 0.0
    %479 = vmatpush1.xpose.msra.mxu0 0.0
    %480 = vmatprep.subr.mxu0 0.0
    %481 = vmatpush1.xpose.msra.mxu0 0.0
    %482 = vmatprep.subr.mxu0 0.0
    %483 = vmatpush1.xpose.msra.mxu0 0.0
    %484 = vmatprep.subr.mxu0 0.0
    %485 = vmatpush1.xpose.msra.mxu0 0.0
    %486 = vmatprep.subr.mxu0 0.0
    %487 = vmatpush1.xpose.msra.mxu0 0.0
    %488 = vmatprep.subr.mxu0 0.0
    %489 = vmatpush1.xpose.msra.mxu0 0.0
    %490 = vmatprep.mubr.f32.mxu0 0.0
    %491 = vmatmul.mubr.f32.gmra.mrb[0].mxu0 %v405
    %v492 = vpop.f32.mrb[0].mxu0
    %v493 = vadd.f32 %v228, %v492
    %v494 = vpop.f32.mrb[0].mxu0
    %495 = vmatprep.mubr.f32.mxu0 0.0
    %496 = vmatmul.mubr.f32.gmra.mrb[0].mxu0 %v408
    %v497 = vpop.f32.mrb[0].mxu0
    %v498 = vadd.f32 %v229, %v497
    %v499 = vpop.f32.mrb[0].mxu0
    %500 = vdwg.mxu0
    %vm501 = vcmask 523264
    %v502 = vsel %vm501, %v493, -inf
    %503 = vmax.xlane.f32.xlu0 %v502
    %v504 = vpop.xlane.xlu0 %503
    %v505 = vsel %vm501, %v498, -inf
    %506 = vmax.xlane.f32.xlu0 %v505
    %v507 = vpop.xlane.xlu0 %506
    %v508 = vsub.f32 %v493, %v504
    %v509 = vsub.f32 %v498, %v507
    %v510 = vmul.f32 %v508, 1.442695
    %v511 = vpow.pop %v510
    %v512 = vmul.f32 %v509, 1.442695
    %v513 = vpow.pop %v512
    %v515 = vsel %vm501, %v511, 0
    %v518 = vsel %vm501, %v513, 0
    %520 = vmatprep.subr.mxu0 0.0
    %521 = vmatpush1.msra.mxu0 %v238
    %522 = vmatprep.subr.mxu0 0.0
    %523 = vmatpush1.msra.mxu0 %v239
    %524 = vmatprep.subr.mxu0 0.0
    %525 = vmatpush1.msra.mxu0 %v240
    %526 = vmatprep.subr.mxu0 0.0
    %527 = vmatpush1.msra.mxu0 %v241
    %528 = vmatprep.subr.mxu0 0.0
    %529 = vmatpush1.msra.mxu0 %v242
    %530 = vmatprep.subr.mxu0 0.0
    %531 = vmatpush1.msra.mxu0 %v243
    %532 = vmatprep.subr.mxu0 0.0
    %533 = vmatpush1.msra.mxu0 %v244
    %534 = vmatprep.subr.mxu0 0.0
    %535 = vmatpush1.msra.mxu0 %v245
    %536 = vmatprep.subr.mxu0 0.0
    %537 = vmatpush1.msra.mxu0 0.0
    %538 = vmatprep.subr.mxu0 0.0
    %539 = vmatpush1.msra.mxu0 0.0
    %540 = vmatprep.subr.mxu0 0.0
    %541 = vmatpush1.msra.mxu0 0.0
    %542 = vmatprep.subr.mxu0 0.0
    %543 = vmatpush1.msra.mxu0 0.0
    %544 = vmatprep.subr.mxu0 0.0
    %545 = vmatpush1.msra.mxu0 0.0
    %546 = vmatprep.subr.mxu0 0.0
    %547 = vmatpush1.msra.mxu0 0.0
    %548 = vmatprep.subr.mxu0 0.0
    %549 = vmatpush1.msra.mxu0 0.0
    %550 = vmatprep.subr.mxu0 0.0
    %551 = vmatpush1.msra.mxu0 0.0
    %552 = vmatprep.subr.mxu0 0.0
    %553 = vmatpush1.msra.mxu0 0.0
    %554 = vmatprep.subr.mxu0 0.0
    %555 = vmatpush1.msra.mxu0 0.0
    %556 = vmatprep.subr.mxu0 0.0
    %557 = vmatpush1.msra.mxu0 0.0
    %558 = vmatprep.subr.mxu0 0.0
    %559 = vmatpush1.msra.mxu0 0.0
    %560 = vmatprep.subr.mxu0 0.0
    %561 = vmatpush1.msra.mxu0 0.0
    %562 = vmatprep.subr.mxu0 0.0
    %563 = vmatpush1.msra.mxu0 0.0
    %564 = vmatprep.subr.mxu0 0.0
    %565 = vmatpush1.msra.mxu0 0.0
    %566 = vmatprep.subr.mxu0 0.0
    %567 = vmatpush1.msra.mxu0 0.0
    %568 = vmatprep.subr.mxu0 0.0
    %569 = vmatpush1.msra.mxu0 0.0
    %570 = vmatprep.subr.mxu0 0.0
    %571 = vmatpush1.msra.mxu0 0.0
    %572 = vmatprep.subr.mxu0 0.0
    %573 = vmatpush1.msra.mxu0 0.0
    %574 = vmatprep.subr.mxu0 0.0
    %575 = vmatpush1.msra.mxu0 0.0
    %576 = vmatprep.subr.mxu0 0.0
    %577 = vmatpush1.msra.mxu0 0.0
    %578 = vmatprep.subr.mxu0 0.0
    %579 = vmatpush1.msra.mxu0 0.0
    %580 = vmatprep.subr.mxu0 0.0
    %581 = vmatpush1.msra.mxu0 0.0
    %582 = vmatprep.subr.mxu0 0.0
    %583 = vmatpush1.msra.mxu0 0.0
    %584 = vmatprep.mubr.f32.mxu0 0.0
    %585 = vmatmul.mubr.f32.gmra.mrb[0].mxu0 %v515
    %v586 = vpop.f32.mrb[0].mxu0
    %v587 = vadd.f32 0.0, %v586
    %v588 = vpop.f32.mrb[0].mxu0
    %589 = vmatprep.mubr.f32.mxu0 0.0
    %590 = vmatmul.mubr.f32.gmra.mrb[0].mxu0 %v518
    %v591 = vpop.f32.mrb[0].mxu0
    %v592 = vadd.f32 0.0, %v591
    %v593 = vpop.f32.mrb[0].mxu0
    %594 = vdwg.mxu0
    %v595 = vrcp.pop %v587
    %v596 = vmul.f32 %v511, %v595
    %v597 = vrcp.pop %v592
    %v598 = vmul.f32 %v513, %v597
    %599 = vrot.lane.b32.xlu0 %v230, 64
    %v600 = vpop.permute.xlu0 %599
    %601 = vrot.lane.b32.xlu0 %v231, 64
    %v602 = vpop.permute.xlu0 %601
    %603 = vrot.lane.b32.xlu0 %v232, 64
    %v604 = vpop.permute.xlu0 %603
    %605 = vrot.lane.b32.xlu0 %v233, 64
    %v606 = vpop.permute.xlu0 %605
    %607 = vrot.lane.b32.xlu0 %v234, 64
    %v608 = vpop.permute.xlu0 %607
    %609 = vrot.lane.b32.xlu0 %v235, 64
    %v610 = vpop.permute.xlu0 %609
    %611 = vrot.lane.b32.xlu0 %v236, 64
    %v612 = vpop.permute.xlu0 %611
    %613 = vrot.lane.b32.xlu0 %v237, 64
    %v614 = vpop.permute.xlu0 %613
    %v623 = vmul.f32 %v330, %v600
    %v624 = vmul.f32 %v335, %v602
    %v625 = vmul.f32 %v330, %v604
    %v626 = vmul.f32 %v335, %v606
    %v627 = vmul.f32 %v330, %v608
    %v628 = vmul.f32 %v335, %v610
    %v629 = vmul.f32 %v330, %v612
    %v630 = vmul.f32 %v335, %v614
    %639 = vrot.lane.b32.xlu0 %v623, 64
    %v640 = vpop.permute.xlu0 %639
    %641 = vrot.lane.b32.xlu0 %v624, 64
    %v642 = vpop.permute.xlu0 %641
    %643 = vrot.lane.b32.xlu0 %v625, 64
    %v644 = vpop.permute.xlu0 %643
    %645 = vrot.lane.b32.xlu0 %v626, 64
    %v646 = vpop.permute.xlu0 %645
    %647 = vrot.lane.b32.xlu0 %v627, 64
    %v648 = vpop.permute.xlu0 %647
    %649 = vrot.lane.b32.xlu0 %v628, 64
    %v650 = vpop.permute.xlu0 %649
    %651 = vrot.lane.b32.xlu0 %v629, 64
    %v652 = vpop.permute.xlu0 %651
    %653 = vrot.lane.b32.xlu0 %v630, 64
    %v654 = vpop.permute.xlu0 %653
    %v664 = vsel %vm501, %v596, 0
    %v667 = vsel %vm501, %v598, 0
    %669 = vmatprep.subr.mxu0 0.0
    %670 = vmatpush1.msra.mxu0 %v640
    %671 = vmatprep.subr.mxu0 0.0
    %672 = vmatpush1.msra.mxu0 %v642
    %673 = vmatprep.subr.mxu0 0.0
    %674 = vmatpush1.msra.mxu0 %v644
    %675 = vmatprep.subr.mxu0 0.0
    %676 = vmatpush1.msra.mxu0 %v646
    %677 = vmatprep.subr.mxu0 0.0
    %678 = vmatpush1.msra.mxu0 %v648
    %679 = vmatprep.subr.mxu0 0.0
    %680 = vmatpush1.msra.mxu0 %v650
    %681 = vmatprep.subr.mxu0 0.0
    %682 = vmatpush1.msra.mxu0 %v652
    %683 = vmatprep.subr.mxu0 0.0
    %684 = vmatpush1.msra.mxu0 %v654
    %685 = vmatprep.subr.mxu0 0.0
    %686 = vmatpush1.msra.mxu0 0.0
    %687 = vmatprep.subr.mxu0 0.0
    %688 = vmatpush1.msra.mxu0 0.0
    %689 = vmatprep.subr.mxu0 0.0
    %690 = vmatpush1.msra.mxu0 0.0
    %691 = vmatprep.subr.mxu0 0.0
    %692 = vmatpush1.msra.mxu0 0.0
    %693 = vmatprep.subr.mxu0 0.0
    %694 = vmatpush1.msra.mxu0 0.0
    %695 = vmatprep.subr.mxu0 0.0
    %696 = vmatpush1.msra.mxu0 0.0
    %697 = vmatprep.subr.mxu0 0.0
    %698 = vmatpush1.msra.mxu0 0.0
    %699 = vmatprep.subr.mxu0 0.0
    %700 = vmatpush1.msra.mxu0 0.0
    %701 = vmatprep.subr.mxu0 0.0
    %702 = vmatpush1.msra.mxu0 0.0
    %703 = vmatprep.subr.mxu0 0.0
    %704 = vmatpush1.msra.mxu0 0.0
    %705 = vmatprep.subr.mxu0 0.0
    %706 = vmatpush1.msra.mxu0 0.0
    %707 = vmatprep.subr.mxu0 0.0
    %708 = vmatpush1.msra.mxu0 0.0
    %709 = vmatprep.subr.mxu0 0.0
    %710 = vmatpush1.msra.mxu0 0.0
    %711 = vmatprep.subr.mxu0 0.0
    %712 = vmatpush1.msra.mxu0 0.0
    %713 = vmatprep.subr.mxu0 0.0
    %714 = vmatpush1.msra.mxu0 0.0
    %715 = vmatprep.subr.mxu0 0.0
    %716 = vmatpush1.msra.mxu0 0.0
    %717 = vmatprep.subr.mxu0 0.0
    %718 = vmatpush1.msra.mxu0 0.0
    %719 = vmatprep.subr.mxu0 0.0
    %720 = vmatpush1.msra.mxu0 0.0
    %721 = vmatprep.subr.mxu0 0.0
    %722 = vmatpush1.msra.mxu0 0.0
    %723 = vmatprep.subr.mxu0 0.0
    %724 = vmatpush1.msra.mxu0 0.0
    %725 = vmatprep.subr.mxu0 0.0
    %726 = vmatpush1.msra.mxu0 0.0
    %727 = vmatprep.subr.mxu0 0.0
    %728 = vmatpush1.msra.mxu0 0.0
    %729 = vmatprep.subr.mxu0 0.0
    %730 = vmatpush1.msra.mxu0 0.0
    %731 = vmatprep.subr.mxu0 0.0
    %732 = vmatpush1.msra.mxu0 0.0
    %733 = vmatprep.mubr.f32.mxu0 0.0
    %734 = vmatmul.mubr.f32.gmra.mrb[0].mxu0 %v664
    %v735 = vpop.f32.mrb[0].mxu0
    %v736 = vadd.f32 0.0, %v735
    %v737 = vpop.f32.mrb[0].mxu0
    %738 = vmatprep.mubr.f32.mxu0 0.0
    %739 = vmatmul.mubr.f32.gmra.mrb[0].mxu0 %v667
    %v740 = vpop.f32.mrb[0].mxu0
    %v741 = vadd.f32 0.0, %v740
    %v742 = vpop.f32.mrb[0].mxu0
    %743 = vdwg.mxu0
    %v744 = vld [vmem:[%s12] sm:$0xff]
    %v745 = vld [vmem:[%s12 + $0x8] sm:$0xff]
    %v746 = vld [vmem:[%s12 + $0x10] sm:$0xff]
    %v747 = vld [vmem:[%s12 + $0x18] sm:$0xff]
    %v748 = vld [vmem:[%s13] sm:$0x1]
    %v750 = vlaneseq
    %v751 = vshrl.u32 %v750, 7
    %v752 = vsub.s32 0, %v751
    %v753 = vrot.slane %v748, %v752
    %v756 = vsel %vm184, %v736, 0
    %v759 = vsel %vm184, %v741, 0
    %761 = vmatprep.subr.mxu0 0.0
    %762 = vmatpush1.msra.mxu0 %v744
    %763 = vmatprep.subr.mxu0 0.0
    %764 = vmatpush1.msra.mxu0 %v745
    %765 = vmatprep.subr.mxu0 0.0
    %766 = vmatpush1.msra.mxu0 %v746
    %767 = vmatprep.subr.mxu0 0.0
    %768 = vmatpush1.msra.mxu0 %v747
    %769 = vmatprep.subr.mxu0 0.0
    %770 = vmatpush1.msra.mxu0 0.0
    %771 = vmatprep.subr.mxu0 0.0
    %772 = vmatpush1.msra.mxu0 0.0
    %773 = vmatprep.subr.mxu0 0.0
    %774 = vmatpush1.msra.mxu0 0.0
    %775 = vmatprep.subr.mxu0 0.0
    %776 = vmatpush1.msra.mxu0 0.0
    %777 = vmatprep.subr.mxu0 0.0
    %778 = vmatpush1.msra.mxu0 0.0
    %779 = vmatprep.subr.mxu0 0.0
    %780 = vmatpush1.msra.mxu0 0.0
    %781 = vmatprep.subr.mxu0 0.0
    %782 = vmatpush1.msra.mxu0 0.0
    %783 = vmatprep.subr.mxu0 0.0
    %784 = vmatpush1.msra.mxu0 0.0
    %785 = vmatprep.subr.mxu0 0.0
    %786 = vmatpush1.msra.mxu0 0.0
    %787 = vmatprep.subr.mxu0 0.0
    %788 = vmatpush1.msra.mxu0 0.0
    %789 = vmatprep.subr.mxu0 0.0
    %790 = vmatpush1.msra.mxu0 0.0
    %791 = vmatprep.subr.mxu0 0.0
    %792 = vmatpush1.msra.mxu0 0.0
    %793 = vmatprep.subr.mxu0 0.0
    %794 = vmatpush1.msra.mxu0 0.0
    %795 = vmatprep.subr.mxu0 0.0
    %796 = vmatpush1.msra.mxu0 0.0
    %797 = vmatprep.subr.mxu0 0.0
    %798 = vmatpush1.msra.mxu0 0.0
    %799 = vmatprep.subr.mxu0 0.0
    %800 = vmatpush1.msra.mxu0 0.0
    %801 = vmatprep.subr.mxu0 0.0
    %802 = vmatpush1.msra.mxu0 0.0
    %803 = vmatprep.subr.mxu0 0.0
    %804 = vmatpush1.msra.mxu0 0.0
    %805 = vmatprep.subr.mxu0 0.0
    %806 = vmatpush1.msra.mxu0 0.0
    %807 = vmatprep.subr.mxu0 0.0
    %808 = vmatpush1.msra.mxu0 0.0
    %809 = vmatprep.subr.mxu0 0.0
    %810 = vmatpush1.msra.mxu0 0.0
    %811 = vmatprep.subr.mxu0 0.0
    %812 = vmatpush1.msra.mxu0 0.0
    %813 = vmatprep.subr.mxu0 0.0
    %814 = vmatpush1.msra.mxu0 0.0
    %815 = vmatprep.subr.mxu0 0.0
    %816 = vmatpush1.msra.mxu0 0.0
    %817 = vmatprep.subr.mxu0 0.0
    %818 = vmatpush1.msra.mxu0 0.0
    %819 = vmatprep.subr.mxu0 0.0
    %820 = vmatpush1.msra.mxu0 0.0
    %821 = vmatprep.subr.mxu0 0.0
    %822 = vmatpush1.msra.mxu0 0.0
    %823 = vmatprep.subr.mxu0 0.0
    %824 = vmatpush1.msra.mxu0 0.0
    %825 = vmatprep.mubr.f32.mxu0 0.0
    %826 = vmatmul.mubr.f32.gmra.mrb[0].mxu0 %v756
    %v827 = vpop.f32.mrb[0].mxu0
    %v828 = vadd.f32 %v753, %v827
    %v829 = vpop.f32.mrb[0].mxu0
    %830 = vmatprep.mubr.f32.mxu0 0.0
    %831 = vmatmul.mubr.f32.gmra.mrb[0].mxu0 %v759
    %v832 = vpop.f32.mrb[0].mxu0
    %v833 = vadd.f32 %v753, %v832
    %v834 = vpop.f32.mrb[0].mxu0
    %835 = vdwg.mxu0
    %v836 = vadd.f32 %v828, %v226
    %v837 = vadd.f32 %v833, %v227
    %v838 = vld [vmem:[%s14] sm:$0x1]
    %v839 = vld [vmem:[%s15] sm:$0x1]
    %v840 = vsel %vm184, %v836, 0.0
    %841 = vadd.xlane.f32.xlu0 %v840
    %v842 = vpop.xlane.xlu0 %841
    %v843 = vsel %vm184, %v837, 0.0
    %844 = vadd.xlane.f32.xlu0 %v843
    %v845 = vpop.xlane.xlu0 %844
    %v846 = vmul.f32 %v842, %v191
    %v847 = vmul.f32 %v845, %v191
    %v848 = vsub.f32 %v836, %v846
    %v849 = vsub.f32 %v837, %v847
    %v850 = vmul.f32 %v848, %v848
    %v851 = vmul.f32 %v849, %v849
    %v852 = vsel %vm184, %v850, 0.0
    %853 = vadd.xlane.f32.xlu0 %v852
    %v854 = vpop.xlane.xlu0 %853
    %v855 = vsel %vm184, %v851, 0.0
    %856 = vadd.xlane.f32.xlu0 %v855
    %v857 = vpop.xlane.xlu0 %856
    %v858 = vmul.f32 %v854, %v191
    %v859 = vmul.f32 %v857, %v191
    %v860 = vadd.f32 %v858, 1e-12
    %v861 = vadd.f32 %v859, 1e-12
    %v862 = vrsqrt.pop %v860
    %v863 = vrsqrt.pop %v861
    %v864 = vmul.f32 %v848, %v862
    %v865 = vmul.f32 %v849, %v863
    %v867 = vlaneseq
    %v868 = vshrl.u32 %v867, 7
    %v869 = vsub.s32 0, %v868
    %v870 = vrot.slane %v838, %v869
    %v872 = vmul.f32 %v864, %v870
    %v873 = vmul.f32 %v865, %v870
    %v875 = vlaneseq
    %v876 = vshrl.u32 %v875, 7
    %v877 = vsub.s32 0, %v876
    %v878 = vrot.slane %v839, %v877
    %v880 = vadd.f32 %v872, %v878
    %v881 = vadd.f32 %v873, %v878
    %v882 = vld [vmem:[%s16] sm:$0xff]
    %v883 = vld [vmem:[%s16 + $0x8] sm:$0xff]
    %v884 = vld [vmem:[%s16 + $0x10] sm:$0xff]
    %v885 = vld [vmem:[%s16 + $0x18] sm:$0xff]
    %v886 = vld [vmem:[%s17] sm:$0x1]
    %v888 = vlaneseq
    %v889 = vshrl.u32 %v888, 7
    %v890 = vsub.s32 0, %v889
    %v891 = vrot.slane %v886, %v890
    %v894 = vsel %vm184, %v880, 0
    %v897 = vsel %vm184, %v881, 0
    %899 = vmatprep.subr.mxu0 0.0
    %900 = vmatpush1.msra.mxu0 %v882
    %901 = vmatprep.subr.mxu0 0.0
    %902 = vmatpush1.msra.mxu0 %v883
    %903 = vmatprep.subr.mxu0 0.0
    %904 = vmatpush1.msra.mxu0 %v884
    %905 = vmatprep.subr.mxu0 0.0
    %906 = vmatpush1.msra.mxu0 %v885
    %907 = vmatprep.subr.mxu0 0.0
    %908 = vmatpush1.msra.mxu0 0.0
    %909 = vmatprep.subr.mxu0 0.0
    %910 = vmatpush1.msra.mxu0 0.0
    %911 = vmatprep.subr.mxu0 0.0
    %912 = vmatpush1.msra.mxu0 0.0
    %913 = vmatprep.subr.mxu0 0.0
    %914 = vmatpush1.msra.mxu0 0.0
    %915 = vmatprep.subr.mxu0 0.0
    %916 = vmatpush1.msra.mxu0 0.0
    %917 = vmatprep.subr.mxu0 0.0
    %918 = vmatpush1.msra.mxu0 0.0
    %919 = vmatprep.subr.mxu0 0.0
    %920 = vmatpush1.msra.mxu0 0.0
    %921 = vmatprep.subr.mxu0 0.0
    %922 = vmatpush1.msra.mxu0 0.0
    %923 = vmatprep.subr.mxu0 0.0
    %924 = vmatpush1.msra.mxu0 0.0
    %925 = vmatprep.subr.mxu0 0.0
    %926 = vmatpush1.msra.mxu0 0.0
    %927 = vmatprep.subr.mxu0 0.0
    %928 = vmatpush1.msra.mxu0 0.0
    %929 = vmatprep.subr.mxu0 0.0
    %930 = vmatpush1.msra.mxu0 0.0
    %931 = vmatprep.subr.mxu0 0.0
    %932 = vmatpush1.msra.mxu0 0.0
    %933 = vmatprep.subr.mxu0 0.0
    %934 = vmatpush1.msra.mxu0 0.0
    %935 = vmatprep.subr.mxu0 0.0
    %936 = vmatpush1.msra.mxu0 0.0
    %937 = vmatprep.subr.mxu0 0.0
    %938 = vmatpush1.msra.mxu0 0.0
    %939 = vmatprep.subr.mxu0 0.0
    %940 = vmatpush1.msra.mxu0 0.0
    %941 = vmatprep.subr.mxu0 0.0
    %942 = vmatpush1.msra.mxu0 0.0
    %943 = vmatprep.subr.mxu0 0.0
    %944 = vmatpush1.msra.mxu0 0.0
    %945 = vmatprep.subr.mxu0 0.0
    %946 = vmatpush1.msra.mxu0 0.0
    %947 = vmatprep.subr.mxu0 0.0
    %948 = vmatpush1.msra.mxu0 0.0
    %949 = vmatprep.subr.mxu0 0.0
    %950 = vmatpush1.msra.mxu0 0.0
    %951 = vmatprep.subr.mxu0 0.0
    %952 = vmatpush1.msra.mxu0 0.0
    %953 = vmatprep.subr.mxu0 0.0
    %954 = vmatpush1.msra.mxu0 0.0
    %955 = vmatprep.subr.mxu0 0.0
    %956 = vmatpush1.msra.mxu0 0.0
    %957 = vmatprep.subr.mxu0 0.0
    %958 = vmatpush1.msra.mxu0 0.0
    %959 = vmatprep.subr.mxu0 0.0
    %960 = vmatpush1.msra.mxu0 0.0
    %961 = vmatprep.subr.mxu0 0.0
    %962 = vmatpush1.msra.mxu0 0.0
    %963 = vmatprep.mubr.f32.mxu0 0.0
    %964 = vmatmul.mubr.f32.gmra.mrb[0].mxu0 %v894
    %v965 = vpop.f32.mrb[0].mxu0
    %v966 = vadd.f32 %v891, %v965
    %v967 = vpop.f32.mrb[0].mxu0
    %968 = vmatprep.mubr.f32.mxu0 0.0
    %969 = vmatmul.mubr.f32.gmra.mrb[0].mxu0 %v897
    %v970 = vpop.f32.mrb[0].mxu0
    %v971 = vadd.f32 %v891, %v970
    %v972 = vpop.f32.mrb[0].mxu0
    %973 = vdwg.mxu0
    %v974 = vmul.f32 %v966, 0.5
    %v975 = vmul.f32 %v971, 0.5
    %v976 = vmul.f32 %v966, 0.70710677
    %v977 = vmul.f32 %v971, 0.70710677
    %v978 = vand.u32 2147483647, %v976
    %v979 = vand.u32 2147483647, %v977
    %v980 = vmul.f32 %v978, 0.3275911
    %v981 = vmul.f32 %v979, 0.3275911
    %v982 = vadd.f32 %v980, 1.0
    %v983 = vadd.f32 %v981, 1.0
    %v984 = vrcp.pop %v982
    %v985 = vmul.f32 1.0, %v984
    %v986 = vrcp.pop %v983
    %v987 = vmul.f32 1.0, %v986
    %v988 = vmul.f32 %v985, 1.0614054
    %v989 = vmul.f32 %v987, 1.0614054
    %v990 = vadd.f32 %v988, -1.4531521
    %v991 = vadd.f32 %v989, -1.4531521
    %v992 = vmul.f32 %v990, %v985
    %v993 = vmul.f32 %v991, %v987
    %v994 = vadd.f32 %v992, 1.4214138
    %v995 = vadd.f32 %v993, 1.4214138
    %v996 = vmul.f32 %v994, %v985
    %v997 = vmul.f32 %v995, %v987
    %v998 = vadd.f32 %v996, -0.28449672
    %v999 = vadd.f32 %v997, -0.28449672
    %v1000 = vmul.f32 %v998, %v985
    %v1001 = vmul.f32 %v999, %v987
    %v1002 = vadd.f32 %v1000, 0.2548296
    %v1003 = vadd.f32 %v1001, 0.2548296
    %v1004 = vmul.f32 %v1002, %v985
    %v1005 = vmul.f32 %v1003, %v987
    %v1006 = vsub.f32 0.0, %v978
    %v1007 = vsub.f32 0.0, %v979
    %v1008 = vmul.f32 %v1006, %v978
    %v1009 = vmul.f32 %v1007, %v979
    %v1010 = vmul.f32 %v1008, 1.442695
    %v1011 = vpow.pop %v1010
    %v1012 = vmul.f32 %v1009, 1.442695
    %v1013 = vpow.pop %v1012
    %v1014 = vmul.f32 %v1004, %v1011
    %v1015 = vmul.f32 %v1005, %v1013
    %v1016 = vsub.f32 1.0, %v1014
    %v1017 = vsub.f32 1.0, %v1015
    %vm1018 = vcmp.ge.f32.partialorder %v976, 0.0
    %vm1019 = vcmp.ge.f32.partialorder %v977, 0.0
    %v1020 = vsub.f32 0.0, %v1016
    %v1021 = vsub.f32 0.0, %v1017
    %v1022 = vsel %vm1018, %v1016, %v1020
    %v1023 = vsel %vm1019, %v1017, %v1021
    %v1024 = vadd.f32 %v1022, 1.0
    %v1025 = vadd.f32 %v1023, 1.0
    %v1026 = vmul.f32 %v974, %v1024
    %v1027 = vmul.f32 %v975, %v1025
    %v1028 = vld [vmem:[%s18] sm:$0xff]
    %v1029 = vld [vmem:[%s18 + $0x8] sm:$0xff]
    %v1030 = vld [vmem:[%s18 + $0x10] sm:$0xff]
    %v1031 = vld [vmem:[%s18 + $0x18] sm:$0xff]
    %v1032 = vld [vmem:[%s18 + $0x20] sm:$0xff]
    %v1033 = vld [vmem:[%s18 + $0x28] sm:$0xff]
    %v1034 = vld [vmem:[%s18 + $0x30] sm:$0xff]
    %v1035 = vld [vmem:[%s18 + $0x38] sm:$0xff]
    %v1036 = vld [vmem:[%s19] sm:$0x1]
    %v1038 = vlaneseq
    %v1039 = vshrl.u32 %v1038, 7
    %v1040 = vsub.s32 0, %v1039
    %v1041 = vrot.slane %v1036, %v1040
    %v1044 = vsel %vm501, %v1026, 0
    %v1047 = vsel %vm501, %v1027, 0
    %1049 = vmatprep.subr.mxu0 0.0
    %1050 = vmatpush1.msra.mxu0 %v1028
    %1051 = vmatprep.subr.mxu0 0.0
    %1052 = vmatpush1.msra.mxu0 %v1029
    %1053 = vmatprep.subr.mxu0 0.0
    %1054 = vmatpush1.msra.mxu0 %v1030
    %1055 = vmatprep.subr.mxu0 0.0
    %1056 = vmatpush1.msra.mxu0 %v1031
    %1057 = vmatprep.subr.mxu0 0.0
    %1058 = vmatpush1.msra.mxu0 %v1032
    %1059 = vmatprep.subr.mxu0 0.0
    %1060 = vmatpush1.msra.mxu0 %v1033
    %1061 = vmatprep.subr.mxu0 0.0
    %1062 = vmatpush1.msra.mxu0 %v1034
    %1063 = vmatprep.subr.mxu0 0.0
    %1064 = vmatpush1.msra.mxu0 %v1035
    %1065 = vmatprep.subr.mxu0 0.0
    %1066 = vmatpush1.msra.mxu0 0.0
    %1067 = vmatprep.subr.mxu0 0.0
    %1068 = vmatpush1.msra.mxu0 0.0
    %1069 = vmatprep.subr.mxu0 0.0
    %1070 = vmatpush1.msra.mxu0 0.0
    %1071 = vmatprep.subr.mxu0 0.0
    %1072 = vmatpush1.msra.mxu0 0.0
    %1073 = vmatprep.subr.mxu0 0.0
    %1074 = vmatpush1.msra.mxu0 0.0
    %1075 = vmatprep.subr.mxu0 0.0
    %1076 = vmatpush1.msra.mxu0 0.0
    %1077 = vmatprep.subr.mxu0 0.0
    %1078 = vmatpush1.msra.mxu0 0.0
    %1079 = vmatprep.subr.mxu0 0.0
    %1080 = vmatpush1.msra.mxu0 0.0
    %1081 = vmatprep.subr.mxu0 0.0
    %1082 = vmatpush1.msra.mxu0 0.0
    %1083 = vmatprep.subr.mxu0 0.0
    %1084 = vmatpush1.msra.mxu0 0.0
    %1085 = vmatprep.subr.mxu0 0.0
    %1086 = vmatpush1.msra.mxu0 0.0
    %1087 = vmatprep.subr.mxu0 0.0
    %1088 = vmatpush1.msra.mxu0 0.0
    %1089 = vmatprep.subr.mxu0 0.0
    %1090 = vmatpush1.msra.mxu0 0.0
    %1091 = vmatprep.subr.mxu0 0.0
    %1092 = vmatpush1.msra.mxu0 0.0
    %1093 = vmatprep.subr.mxu0 0.0
    %1094 = vmatpush1.msra.mxu0 0.0
    %1095 = vmatprep.subr.mxu0 0.0
    %1096 = vmatpush1.msra.mxu0 0.0
    %1097 = vmatprep.subr.mxu0 0.0
    %1098 = vmatpush1.msra.mxu0 0.0
    %1099 = vmatprep.subr.mxu0 0.0
    %1100 = vmatpush1.msra.mxu0 0.0
    %1101 = vmatprep.subr.mxu0 0.0
    %1102 = vmatpush1.msra.mxu0 0.0
    %1103 = vmatprep.subr.mxu0 0.0
    %1104 = vmatpush1.msra.mxu0 0.0
    %1105 = vmatprep.subr.mxu0 0.0
    %1106 = vmatpush1.msra.mxu0 0.0
    %1107 = vmatprep.subr.mxu0 0.0
    %1108 = vmatpush1.msra.mxu0 0.0
    %1109 = vmatprep.subr.mxu0 0.0
    %1110 = vmatpush1.msra.mxu0 0.0
    %1111 = vmatprep.subr.mxu0 0.0
    %1112 = vmatpush1.msra.mxu0 0.0
    %1113 = vmatprep.mubr.f32.mxu0 0.0
    %1114 = vmatmul.mubr.f32.gmra.mrb[0].mxu0 %v1044
    %v1115 = vpop.f32.mrb[0].mxu0
    %v1116 = vadd.f32 %v1041, %v1115
    %v1117 = vpop.f32.mrb[0].mxu0
    %1118 = vmatprep.mubr.f32.mxu0 0.0
    %1119 = vmatmul.mubr.f32.gmra.mrb[0].mxu0 %v1047
    %v1120 = vpop.f32.mrb[0].mxu0
    %v1121 = vadd.f32 %v1041, %v1120
    %v1122 = vpop.f32.mrb[0].mxu0
    %1123 = vdwg.mxu0
    %v1124 = vadd.f32 %v1116, %v880
    %v1125 = vadd.f32 %v1121, %v881
    %v1126 = vld [vmem:[%s20] sm:$0x1]
    %v1127 = vld [vmem:[%s21] sm:$0x1]
    %v1128 = vsel %vm184, %v1124, 0.0
    %1129 = vadd.xlane.f32.xlu0 %v1128
    %v1130 = vpop.xlane.xlu0 %1129
    %v1131 = vsel %vm184, %v1125, 0.0
    %1132 = vadd.xlane.f32.xlu0 %v1131
    %v1133 = vpop.xlane.xlu0 %1132
    %v1134 = vmul.f32 %v1130, %v191
    %v1135 = vmul.f32 %v1133, %v191
    %v1136 = vsub.f32 %v1124, %v1134
    %v1137 = vsub.f32 %v1125, %v1135
    %v1138 = vmul.f32 %v1136, %v1136
    %v1139 = vmul.f32 %v1137, %v1137
    %v1140 = vsel %vm184, %v1138, 0.0
    %1141 = vadd.xlane.f32.xlu0 %v1140
    %v1142 = vpop.xlane.xlu0 %1141
    %v1143 = vsel %vm184, %v1139, 0.0
    %1144 = vadd.xlane.f32.xlu0 %v1143
    %v1145 = vpop.xlane.xlu0 %1144
    %v1146 = vmul.f32 %v1142, %v191
    %v1147 = vmul.f32 %v1145, %v191
    %v1148 = vadd.f32 %v1146, 1e-12
    %v1149 = vadd.f32 %v1147, 1e-12
    %v1150 = vrsqrt.pop %v1148
    %v1151 = vrsqrt.pop %v1149
    %v1152 = vmul.f32 %v1136, %v1150
    %v1153 = vmul.f32 %v1137, %v1151
    %v1155 = vlaneseq
    %v1156 = vshrl.u32 %v1155, 7
    %v1157 = vsub.s32 0, %v1156
    %v1158 = vrot.slane %v1126, %v1157
    %v1160 = vmul.f32 %v1152, %v1158
    %v1161 = vmul.f32 %v1153, %v1158
    %v1163 = vlaneseq
    %v1164 = vshrl.u32 %v1163, 7
    %v1165 = vsub.s32 0, %v1164
    %v1166 = vrot.slane %v1127, %v1165
    %v1168 = vadd.f32 %v1160, %v1166
    %v1169 = vadd.f32 %v1161, %v1166
    %s1170 = scalar_lea.vmem %s10, 32
    %v1171 = vld [vmem:[%s1170] sm:$0xff]
    %v1172 = vld [vmem:[%s1170 + $0x8] sm:$0xff]
    %v1173 = vld [vmem:[%s1170 + $0x10] sm:$0xff]
    %v1174 = vld [vmem:[%s1170 + $0x18] sm:$0xff]
    %s1175 = scalar_lea.vmem %s11, 1
    %v1176 = vld [vmem:[%s1175] sm:$0x1]
    %v1178 = vlaneseq
    %v1179 = vshrl.u32 %v1178, 7
    %v1180 = vsub.s32 0, %v1179
    %v1181 = vrot.slane %v1176, %v1180
    %v1184 = vsel %vm184, %v1168, 0
    %v1187 = vsel %vm184, %v1169, 0
    %1189 = vmatprep.subr.mxu0 0.0
    %1190 = vmatpush1.msra.mxu0 %v1171
    %1191 = vmatprep.subr.mxu0 0.0
    %1192 = vmatpush1.msra.mxu0 %v1172
    %1193 = vmatprep.subr.mxu0 0.0
    %1194 = vmatpush1.msra.mxu0 %v1173
    %1195 = vmatprep.subr.mxu0 0.0
    %1196 = vmatpush1.msra.mxu0 %v1174
    %1197 = vmatprep.subr.mxu0 0.0
    %1198 = vmatpush1.msra.mxu0 0.0
    %1199 = vmatprep.subr.mxu0 0.0
    %1200 = vmatpush1.msra.mxu0 0.0
    %1201 = vmatprep.subr.mxu0 0.0
    %1202 = vmatpush1.msra.mxu0 0.0
    %1203 = vmatprep.subr.mxu0 0.0
    %1204 = vmatpush1.msra.mxu0 0.0
    %1205 = vmatprep.subr.mxu0 0.0
    %1206 = vmatpush1.msra.mxu0 0.0
    %1207 = vmatprep.subr.mxu0 0.0
    %1208 = vmatpush1.msra.mxu0 0.0
    %1209 = vmatprep.subr.mxu0 0.0
    %1210 = vmatpush1.msra.mxu0 0.0
    %1211 = vmatprep.subr.mxu0 0.0
    %1212 = vmatpush1.msra.mxu0 0.0
    %1213 = vmatprep.subr.mxu0 0.0
    %1214 = vmatpush1.msra.mxu0 0.0
    %1215 = vmatprep.subr.mxu0 0.0
    %1216 = vmatpush1.msra.mxu0 0.0
    %1217 = vmatprep.subr.mxu0 0.0
    %1218 = vmatpush1.msra.mxu0 0.0
    %1219 = vmatprep.subr.mxu0 0.0
    %1220 = vmatpush1.msra.mxu0 0.0
    %1221 = vmatprep.subr.mxu0 0.0
    %1222 = vmatpush1.msra.mxu0 0.0
    %1223 = vmatprep.subr.mxu0 0.0
    %1224 = vmatpush1.msra.mxu0 0.0
    %1225 = vmatprep.subr.mxu0 0.0
    %1226 = vmatpush1.msra.mxu0 0.0
    %1227 = vmatprep.subr.mxu0 0.0
    %1228 = vmatpush1.msra.mxu0 0.0
    %1229 = vmatprep.subr.mxu0 0.0
    %1230 = vmatpush1.msra.mxu0 0.0
    %1231 = vmatprep.subr.mxu0 0.0
    %1232 = vmatpush1.msra.mxu0 0.0
    %1233 = vmatprep.subr.mxu0 0.0
    %1234 = vmatpush1.msra.mxu0 0.0
    %1235 = vmatprep.subr.mxu0 0.0
    %1236 = vmatpush1.msra.mxu0 0.0
    %1237 = vmatprep.subr.mxu0 0.0
    %1238 = vmatpush1.msra.mxu0 0.0
    %1239 = vmatprep.subr.mxu0 0.0
    %1240 = vmatpush1.msra.mxu0 0.0
    %1241 = vmatprep.subr.mxu0 0.0
    %1242 = vmatpush1.msra.mxu0 0.0
    %1243 = vmatprep.subr.mxu0 0.0
    %1244 = vmatpush1.msra.mxu0 0.0
    %1245 = vmatprep.subr.mxu0 0.0
    %1246 = vmatpush1.msra.mxu0 0.0
    %1247 = vmatprep.subr.mxu0 0.0
    %1248 = vmatpush1.msra.mxu0 0.0
    %1249 = vmatprep.subr.mxu0 0.0
    %1250 = vmatpush1.msra.mxu0 0.0
    %1251 = vmatprep.subr.mxu0 0.0
    %1252 = vmatpush1.msra.mxu0 0.0
    %1253 = vmatprep.mubr.f32.mxu0 0.0
    %1254 = vmatmul.mubr.f32.gmra.mrb[0].mxu0 %v1184
    %v1255 = vpop.f32.mrb[0].mxu0
    %v1256 = vadd.f32 %v1181, %v1255
    %v1257 = vpop.f32.mrb[0].mxu0
    %1258 = vmatprep.mubr.f32.mxu0 0.0
    %1259 = vmatmul.mubr.f32.gmra.mrb[0].mxu0 %v1187
    %v1260 = vpop.f32.mrb[0].mxu0
    %v1261 = vadd.f32 %v1181, %v1260
    %v1262 = vpop.f32.mrb[0].mxu0
    %1263 = vdwg.mxu0
    %v1264 = vmul.f32 %v1256, 0.35355338
    %v1265 = vmul.f32 %v1261, 0.35355338
    %v1266 = vmul.f32 %v1256, %v349
    %v1267 = vmul.f32 %v1261, %v351
    %v1268 = vmul.f32 %v1256, %v353
    %v1269 = vmul.f32 %v1261, %v355
    %v1270 = vmul.f32 %v1256, %v357
    %v1271 = vmul.f32 %v1261, %v359
    %v1272 = vmul.f32 %v1256, %v361
    %v1273 = vmul.f32 %v1261, %v363
    %1282 = vrot.lane.b32.xlu0 %v1266, 96
    %v1283 = vpop.permute.xlu0 %1282
    %1284 = vrot.lane.b32.xlu0 %v1267, 96
    %v1285 = vpop.permute.xlu0 %1284
    %1286 = vrot.lane.b32.xlu0 %v1268, 96
    %v1287 = vpop.permute.xlu0 %1286
    %1288 = vrot.lane.b32.xlu0 %v1269, 96
    %v1289 = vpop.permute.xlu0 %1288
    %1290 = vrot.lane.b32.xlu0 %v1270, 96
    %v1291 = vpop.permute.xlu0 %1290
    %1292 = vrot.lane.b32.xlu0 %v1271, 96
    %v1293 = vpop.permute.xlu0 %1292
    %1294 = vrot.lane.b32.xlu0 %v1272, 96
    %v1295 = vpop.permute.xlu0 %1294
    %1296 = vrot.lane.b32.xlu0 %v1273, 96
    %v1297 = vpop.permute.xlu0 %1296
    %v1299 = vsel %vm184, %v1264, 0
    %v1302 = vsel %vm184, %v1265, 0
    %v1304 = vsel %vm184, %v1283, 0
    %v1306 = vsel %vm184, %v1285, 0
    %v1308 = vsel %vm184, %v1287, 0
    %v1310 = vsel %vm184, %v1289, 0
    %v1312 = vsel %vm184, %v1291, 0
    %v1314 = vsel %vm184, %v1293, 0
    %v1316 = vsel %vm184, %v1295, 0
    %v1318 = vsel %vm184, %v1297, 0
    %1320 = vmatprep.subr.mxu0 0.0
    %1321 = vmatpush1.xpose.msra.mxu0 %v1304
    %1322 = vmatprep.subr.mxu0 0.0
    %1323 = vmatpush1.xpose.msra.mxu0 %v1306
    %1324 = vmatprep.subr.mxu0 0.0
    %1325 = vmatpush1.xpose.msra.mxu0 %v1308
    %1326 = vmatprep.subr.mxu0 0.0
    %1327 = vmatpush1.xpose.msra.mxu0 %v1310
    %1328 = vmatprep.subr.mxu0 0.0
    %1329 = vmatpush1.xpose.msra.mxu0 %v1312
    %1330 = vmatprep.subr.mxu0 0.0
    %1331 = vmatpush1.xpose.msra.mxu0 %v1314
    %1332 = vmatprep.subr.mxu0 0.0
    %1333 = vmatpush1.xpose.msra.mxu0 %v1316
    %1334 = vmatprep.subr.mxu0 0.0
    %1335 = vmatpush1.xpose.msra.mxu0 %v1318
    %1336 = vmatprep.subr.mxu0 0.0
    %1337 = vmatpush1.xpose.msra.mxu0 0.0
    %1338 = vmatprep.subr.mxu0 0.0
    %1339 = vmatpush1.xpose.msra.mxu0 0.0
    %1340 = vmatprep.subr.mxu0 0.0
    %1341 = vmatpush1.xpose.msra.mxu0 0.0
    %1342 = vmatprep.subr.mxu0 0.0
    %1343 = vmatpush1.xpose.msra.mxu0 0.0
    %1344 = vmatprep.subr.mxu0 0.0
    %1345 = vmatpush1.xpose.msra.mxu0 0.0
    %1346 = vmatprep.subr.mxu0 0.0
    %1347 = vmatpush1.xpose.msra.mxu0 0.0
    %1348 = vmatprep.subr.mxu0 0.0
    %1349 = vmatpush1.xpose.msra.mxu0 0.0
    %1350 = vmatprep.subr.mxu0 0.0
    %1351 = vmatpush1.xpose.msra.mxu0 0.0
    %1352 = vmatprep.subr.mxu0 0.0
    %1353 = vmatpush1.xpose.msra.mxu0 0.0
    %1354 = vmatprep.subr.mxu0 0.0
    %1355 = vmatpush1.xpose.msra.mxu0 0.0
    %1356 = vmatprep.subr.mxu0 0.0
    %1357 = vmatpush1.xpose.msra.mxu0 0.0
    %1358 = vmatprep.subr.mxu0 0.0
    %1359 = vmatpush1.xpose.msra.mxu0 0.0
    %1360 = vmatprep.subr.mxu0 0.0
    %1361 = vmatpush1.xpose.msra.mxu0 0.0
    %1362 = vmatprep.subr.mxu0 0.0
    %1363 = vmatpush1.xpose.msra.mxu0 0.0
    %1364 = vmatprep.subr.mxu0 0.0
    %1365 = vmatpush1.xpose.msra.mxu0 0.0
    %1366 = vmatprep.subr.mxu0 0.0
    %1367 = vmatpush1.xpose.msra.mxu0 0.0
    %1368 = vmatprep.subr.mxu0 0.0
    %1369 = vmatpush1.xpose.msra.mxu0 0.0
    %1370 = vmatprep.subr.mxu0 0.0
    %1371 = vmatpush1.xpose.msra.mxu0 0.0
    %1372 = vmatprep.subr.mxu0 0.0
    %1373 = vmatpush1.xpose.msra.mxu0 0.0
    %1374 = vmatprep.subr.mxu0 0.0
    %1375 = vmatpush1.xpose.msra.mxu0 0.0
    %1376 = vmatprep.subr.mxu0 0.0
    %1377 = vmatpush1.xpose.msra.mxu0 0.0
    %1378 = vmatprep.subr.mxu0 0.0
    %1379 = vmatpush1.xpose.msra.mxu0 0.0
    %1380 = vmatprep.subr.mxu0 0.0
    %1381 = vmatpush1.xpose.msra.mxu0 0.0
    %1382 = vmatprep.subr.mxu0 0.0
    %1383 = vmatpush1.xpose.msra.mxu0 0.0
    %1384 = vmatprep.mubr.f32.mxu0 0.0
    %1385 = vmatmul.mubr.f32.gmra.mrb[0].mxu0 %v1299
    %v1386 = vpop.f32.mrb[0].mxu0
    %v1387 = vadd.f32 %v228, %v1386
    %v1388 = vpop.f32.mrb[0].mxu0
    %1389 = vmatprep.mubr.f32.mxu0 0.0
    %1390 = vmatmul.mubr.f32.gmra.mrb[0].mxu0 %v1302
    %v1391 = vpop.f32.mrb[0].mxu0
    %v1392 = vadd.f32 %v229, %v1391
    %v1393 = vpop.f32.mrb[0].mxu0
    %1394 = vdwg.mxu0
    %v1395 = vsel %vm501, %v1387, -inf
    %1396 = vmax.xlane.f32.xlu0 %v1395
    %v1397 = vpop.xlane.xlu0 %1396
    %v1398 = vsel %vm501, %v1392, -inf
    %1399 = vmax.xlane.f32.xlu0 %v1398
    %v1400 = vpop.xlane.xlu0 %1399
    %v1401 = vsub.f32 %v1387, %v1397
    %v1402 = vsub.f32 %v1392, %v1400
    %v1403 = vmul.f32 %v1401, 1.442695
    %v1404 = vpow.pop %v1403
    %v1405 = vmul.f32 %v1402, 1.442695
    %v1406 = vpow.pop %v1405
    %v1408 = vsel %vm501, %v1404, 0
    %v1411 = vsel %vm501, %v1406, 0
    %1413 = vmatprep.subr.mxu0 0.0
    %1414 = vmatpush1.msra.mxu0 %v238
    %1415 = vmatprep.subr.mxu0 0.0
    %1416 = vmatpush1.msra.mxu0 %v239
    %1417 = vmatprep.subr.mxu0 0.0
    %1418 = vmatpush1.msra.mxu0 %v240
    %1419 = vmatprep.subr.mxu0 0.0
    %1420 = vmatpush1.msra.mxu0 %v241
    %1421 = vmatprep.subr.mxu0 0.0
    %1422 = vmatpush1.msra.mxu0 %v242
    %1423 = vmatprep.subr.mxu0 0.0
    %1424 = vmatpush1.msra.mxu0 %v243
    %1425 = vmatprep.subr.mxu0 0.0
    %1426 = vmatpush1.msra.mxu0 %v244
    %1427 = vmatprep.subr.mxu0 0.0
    %1428 = vmatpush1.msra.mxu0 %v245
    %1429 = vmatprep.subr.mxu0 0.0
    %1430 = vmatpush1.msra.mxu0 0.0
    %1431 = vmatprep.subr.mxu0 0.0
    %1432 = vmatpush1.msra.mxu0 0.0
    %1433 = vmatprep.subr.mxu0 0.0
    %1434 = vmatpush1.msra.mxu0 0.0
    %1435 = vmatprep.subr.mxu0 0.0
    %1436 = vmatpush1.msra.mxu0 0.0
    %1437 = vmatprep.subr.mxu0 0.0
    %1438 = vmatpush1.msra.mxu0 0.0
    %1439 = vmatprep.subr.mxu0 0.0
    %1440 = vmatpush1.msra.mxu0 0.0
    %1441 = vmatprep.subr.mxu0 0.0
    %1442 = vmatpush1.msra.mxu0 0.0
    %1443 = vmatprep.subr.mxu0 0.0
    %1444 = vmatpush1.msra.mxu0 0.0
    %1445 = vmatprep.subr.mxu0 0.0
    %1446 = vmatpush1.msra.mxu0 0.0
    %1447 = vmatprep.subr.mxu0 0.0
    %1448 = vmatpush1.msra.mxu0 0.0
    %1449 = vmatprep.subr.mxu0 0.0
    %1450 = vmatpush1.msra.mxu0 0.0
    %1451 = vmatprep.subr.mxu0 0.0
    %1452 = vmatpush1.msra.mxu0 0.0
    %1453 = vmatprep.subr.mxu0 0.0
    %1454 = vmatpush1.msra.mxu0 0.0
    %1455 = vmatprep.subr.mxu0 0.0
    %1456 = vmatpush1.msra.mxu0 0.0
    %1457 = vmatprep.subr.mxu0 0.0
    %1458 = vmatpush1.msra.mxu0 0.0
    %1459 = vmatprep.subr.mxu0 0.0
    %1460 = vmatpush1.msra.mxu0 0.0
    %1461 = vmatprep.subr.mxu0 0.0
    %1462 = vmatpush1.msra.mxu0 0.0
    %1463 = vmatprep.subr.mxu0 0.0
    %1464 = vmatpush1.msra.mxu0 0.0
    %1465 = vmatprep.subr.mxu0 0.0
    %1466 = vmatpush1.msra.mxu0 0.0
    %1467 = vmatprep.subr.mxu0 0.0
    %1468 = vmatpush1.msra.mxu0 0.0
    %1469 = vmatprep.subr.mxu0 0.0
    %1470 = vmatpush1.msra.mxu0 0.0
    %1471 = vmatprep.subr.mxu0 0.0
    %1472 = vmatpush1.msra.mxu0 0.0
    %1473 = vmatprep.subr.mxu0 0.0
    %1474 = vmatpush1.msra.mxu0 0.0
    %1475 = vmatprep.subr.mxu0 0.0
    %1476 = vmatpush1.msra.mxu0 0.0
    %1477 = vmatprep.mubr.f32.mxu0 0.0
    %1478 = vmatmul.mubr.f32.gmra.mrb[0].mxu0 %v1408
    %v1479 = vpop.f32.mrb[0].mxu0
    %v1480 = vadd.f32 0.0, %v1479
    %v1481 = vpop.f32.mrb[0].mxu0
    %1482 = vmatprep.mubr.f32.mxu0 0.0
    %1483 = vmatmul.mubr.f32.gmra.mrb[0].mxu0 %v1411
    %v1484 = vpop.f32.mrb[0].mxu0
    %v1485 = vadd.f32 0.0, %v1484
    %v1486 = vpop.f32.mrb[0].mxu0
    %1487 = vdwg.mxu0
    %v1488 = vrcp.pop %v1480
    %v1489 = vmul.f32 %v1404, %v1488
    %v1490 = vrcp.pop %v1485
    %v1491 = vmul.f32 %v1406, %v1490
    %v1492 = vmul.f32 %v1256, %v600
    %v1493 = vmul.f32 %v1261, %v602
    %v1494 = vmul.f32 %v1256, %v604
    %v1495 = vmul.f32 %v1261, %v606
    %v1496 = vmul.f32 %v1256, %v608
    %v1497 = vmul.f32 %v1261, %v610
    %v1498 = vmul.f32 %v1256, %v612
    %v1499 = vmul.f32 %v1261, %v614
    %1508 = vrot.lane.b32.xlu0 %v1492, 64
    %v1509 = vpop.permute.xlu0 %1508
    %1510 = vrot.lane.b32.xlu0 %v1493, 64
    %v1511 = vpop.permute.xlu0 %1510
    %1512 = vrot.lane.b32.xlu0 %v1494, 64
    %v1513 = vpop.permute.xlu0 %1512
    %1514 = vrot.lane.b32.xlu0 %v1495, 64
    %v1515 = vpop.permute.xlu0 %1514
    %1516 = vrot.lane.b32.xlu0 %v1496, 64
    %v1517 = vpop.permute.xlu0 %1516
    %1518 = vrot.lane.b32.xlu0 %v1497, 64
    %v1519 = vpop.permute.xlu0 %1518
    %1520 = vrot.lane.b32.xlu0 %v1498, 64
    %v1521 = vpop.permute.xlu0 %1520
    %1522 = vrot.lane.b32.xlu0 %v1499, 64
    %v1523 = vpop.permute.xlu0 %1522
    %v1533 = vsel %vm501, %v1489, 0
    %v1536 = vsel %vm501, %v1491, 0
    %1538 = vmatprep.subr.mxu0 0.0
    %1539 = vmatpush1.msra.mxu0 %v1509
    %1540 = vmatprep.subr.mxu0 0.0
    %1541 = vmatpush1.msra.mxu0 %v1511
    %1542 = vmatprep.subr.mxu0 0.0
    %1543 = vmatpush1.msra.mxu0 %v1513
    %1544 = vmatprep.subr.mxu0 0.0
    %1545 = vmatpush1.msra.mxu0 %v1515
    %1546 = vmatprep.subr.mxu0 0.0
    %1547 = vmatpush1.msra.mxu0 %v1517
    %1548 = vmatprep.subr.mxu0 0.0
    %1549 = vmatpush1.msra.mxu0 %v1519
    %1550 = vmatprep.subr.mxu0 0.0
    %1551 = vmatpush1.msra.mxu0 %v1521
    %1552 = vmatprep.subr.mxu0 0.0
    %1553 = vmatpush1.msra.mxu0 %v1523
    %1554 = vmatprep.subr.mxu0 0.0
    %1555 = vmatpush1.msra.mxu0 0.0
    %1556 = vmatprep.subr.mxu0 0.0
    %1557 = vmatpush1.msra.mxu0 0.0
    %1558 = vmatprep.subr.mxu0 0.0
    %1559 = vmatpush1.msra.mxu0 0.0
    %1560 = vmatprep.subr.mxu0 0.0
    %1561 = vmatpush1.msra.mxu0 0.0
    %1562 = vmatprep.subr.mxu0 0.0
    %1563 = vmatpush1.msra.mxu0 0.0
    %1564 = vmatprep.subr.mxu0 0.0
    %1565 = vmatpush1.msra.mxu0 0.0
    %1566 = vmatprep.subr.mxu0 0.0
    %1567 = vmatpush1.msra.mxu0 0.0
    %1568 = vmatprep.subr.mxu0 0.0
    %1569 = vmatpush1.msra.mxu0 0.0
    %1570 = vmatprep.subr.mxu0 0.0
    %1571 = vmatpush1.msra.mxu0 0.0
    %1572 = vmatprep.subr.mxu0 0.0
    %1573 = vmatpush1.msra.mxu0 0.0
    %1574 = vmatprep.subr.mxu0 0.0
    %1575 = vmatpush1.msra.mxu0 0.0
    %1576 = vmatprep.subr.mxu0 0.0
    %1577 = vmatpush1.msra.mxu0 0.0
    %1578 = vmatprep.subr.mxu0 0.0
    %1579 = vmatpush1.msra.mxu0 0.0
    %1580 = vmatprep.subr.mxu0 0.0
    %1581 = vmatpush1.msra.mxu0 0.0
    %1582 = vmatprep.subr.mxu0 0.0
    %1583 = vmatpush1.msra.mxu0 0.0
    %1584 = vmatprep.subr.mxu0 0.0
    %1585 = vmatpush1.msra.mxu0 0.0
    %1586 = vmatprep.subr.mxu0 0.0
    %1587 = vmatpush1.msra.mxu0 0.0
    %1588 = vmatprep.subr.mxu0 0.0
    %1589 = vmatpush1.msra.mxu0 0.0
    %1590 = vmatprep.subr.mxu0 0.0
    %1591 = vmatpush1.msra.mxu0 0.0
    %1592 = vmatprep.subr.mxu0 0.0
    %1593 = vmatpush1.msra.mxu0 0.0
    %1594 = vmatprep.subr.mxu0 0.0
    %1595 = vmatpush1.msra.mxu0 0.0
    %1596 = vmatprep.subr.mxu0 0.0
    %1597 = vmatpush1.msra.mxu0 0.0
    %1598 = vmatprep.subr.mxu0 0.0
    %1599 = vmatpush1.msra.mxu0 0.0
    %1600 = vmatprep.subr.mxu0 0.0
    %1601 = vmatpush1.msra.mxu0 0.0
    %1602 = vmatprep.mubr.f32.mxu0 0.0
    %1603 = vmatmul.mubr.f32.gmra.mrb[0].mxu0 %v1533
    %v1604 = vpop.f32.mrb[0].mxu0
    %v1605 = vadd.f32 0.0, %v1604
    %v1606 = vpop.f32.mrb[0].mxu0
    %1607 = vmatprep.mubr.f32.mxu0 0.0
    %1608 = vmatmul.mubr.f32.gmra.mrb[0].mxu0 %v1536
    %v1609 = vpop.f32.mrb[0].mxu0
    %v1610 = vadd.f32 0.0, %v1609
    %v1611 = vpop.f32.mrb[0].mxu0
    %1612 = vdwg.mxu0
    %s1613 = scalar_lea.vmem %s12, 32
    %v1614 = vld [vmem:[%s1613] sm:$0xff]
    %v1615 = vld [vmem:[%s1613 + $0x8] sm:$0xff]
    %v1616 = vld [vmem:[%s1613 + $0x10] sm:$0xff]
    %v1617 = vld [vmem:[%s1613 + $0x18] sm:$0xff]
    %s1618 = scalar_lea.vmem %s13, 1
    %v1619 = vld [vmem:[%s1618] sm:$0x1]
    %v1621 = vlaneseq
    %v1622 = vshrl.u32 %v1621, 7
    %v1623 = vsub.s32 0, %v1622
    %v1624 = vrot.slane %v1619, %v1623
    %v1627 = vsel %vm184, %v1605, 0
    %v1630 = vsel %vm184, %v1610, 0
    %1632 = vmatprep.subr.mxu0 0.0
    %1633 = vmatpush1.msra.mxu0 %v1614
    %1634 = vmatprep.subr.mxu0 0.0
    %1635 = vmatpush1.msra.mxu0 %v1615
    %1636 = vmatprep.subr.mxu0 0.0
    %1637 = vmatpush1.msra.mxu0 %v1616
    %1638 = vmatprep.subr.mxu0 0.0
    %1639 = vmatpush1.msra.mxu0 %v1617
    %1640 = vmatprep.subr.mxu0 0.0
    %1641 = vmatpush1.msra.mxu0 0.0
    %1642 = vmatprep.subr.mxu0 0.0
    %1643 = vmatpush1.msra.mxu0 0.0
    %1644 = vmatprep.subr.mxu0 0.0
    %1645 = vmatpush1.msra.mxu0 0.0
    %1646 = vmatprep.subr.mxu0 0.0
    %1647 = vmatpush1.msra.mxu0 0.0
    %1648 = vmatprep.subr.mxu0 0.0
    %1649 = vmatpush1.msra.mxu0 0.0
    %1650 = vmatprep.subr.mxu0 0.0
    %1651 = vmatpush1.msra.mxu0 0.0
    %1652 = vmatprep.subr.mxu0 0.0
    %1653 = vmatpush1.msra.mxu0 0.0
    %1654 = vmatprep.subr.mxu0 0.0
    %1655 = vmatpush1.msra.mxu0 0.0
    %1656 = vmatprep.subr.mxu0 0.0
    %1657 = vmatpush1.msra.mxu0 0.0
    %1658 = vmatprep.subr.mxu0 0.0
    %1659 = vmatpush1.msra.mxu0 0.0
    %1660 = vmatprep.subr.mxu0 0.0
    %1661 = vmatpush1.msra.mxu0 0.0
    %1662 = vmatprep.subr.mxu0 0.0
    %1663 = vmatpush1.msra.mxu0 0.0
    %1664 = vmatprep.subr.mxu0 0.0
    %1665 = vmatpush1.msra.mxu0 0.0
    %1666 = vmatprep.subr.mxu0 0.0
    %1667 = vmatpush1.msra.mxu0 0.0
    %1668 = vmatprep.subr.mxu0 0.0
    %1669 = vmatpush1.msra.mxu0 0.0
    %1670 = vmatprep.subr.mxu0 0.0
    %1671 = vmatpush1.msra.mxu0 0.0
    %1672 = vmatprep.subr.mxu0 0.0
    %1673 = vmatpush1.msra.mxu0 0.0
    %1674 = vmatprep.subr.mxu0 0.0
    %1675 = vmatpush1.msra.mxu0 0.0
    %1676 = vmatprep.subr.mxu0 0.0
    %1677 = vmatpush1.msra.mxu0 0.0
    %1678 = vmatprep.subr.mxu0 0.0
    %1679 = vmatpush1.msra.mxu0 0.0
    %1680 = vmatprep.subr.mxu0 0.0
    %1681 = vmatpush1.msra.mxu0 0.0
    %1682 = vmatprep.subr.mxu0 0.0
    %1683 = vmatpush1.msra.mxu0 0.0
    %1684 = vmatprep.subr.mxu0 0.0
    %1685 = vmatpush1.msra.mxu0 0.0
    %1686 = vmatprep.subr.mxu0 0.0
    %1687 = vmatpush1.msra.mxu0 0.0
    %1688 = vmatprep.subr.mxu0 0.0
    %1689 = vmatpush1.msra.mxu0 0.0
    %1690 = vmatprep.subr.mxu0 0.0
    %1691 = vmatpush1.msra.mxu0 0.0
    %1692 = vmatprep.subr.mxu0 0.0
    %1693 = vmatpush1.msra.mxu0 0.0
    %1694 = vmatprep.subr.mxu0 0.0
    %1695 = vmatpush1.msra.mxu0 0.0
    %1696 = vmatprep.mubr.f32.mxu0 0.0
    %1697 = vmatmul.mubr.f32.gmra.mrb[0].mxu0 %v1627
    %v1698 = vpop.f32.mrb[0].mxu0
    %v1699 = vadd.f32 %v1624, %v1698
    %v1700 = vpop.f32.mrb[0].mxu0
    %1701 = vmatprep.mubr.f32.mxu0 0.0
    %1702 = vmatmul.mubr.f32.gmra.mrb[0].mxu0 %v1630
    %v1703 = vpop.f32.mrb[0].mxu0
    %v1704 = vadd.f32 %v1624, %v1703
    %v1705 = vpop.f32.mrb[0].mxu0
    %1706 = vdwg.mxu0
    %v1707 = vadd.f32 %v1699, %v1168
    %v1708 = vadd.f32 %v1704, %v1169
    %s1709 = scalar_lea.vmem %s14, 1
    %v1710 = vld [vmem:[%s1709] sm:$0x1]
    %s1711 = scalar_lea.vmem %s15, 1
    %v1712 = vld [vmem:[%s1711] sm:$0x1]
    %v1713 = vsel %vm184, %v1707, 0.0
    %1714 = vadd.xlane.f32.xlu0 %v1713
    %v1715 = vpop.xlane.xlu0 %1714
    %v1716 = vsel %vm184, %v1708, 0.0
    %1717 = vadd.xlane.f32.xlu0 %v1716
    %v1718 = vpop.xlane.xlu0 %1717
    %v1719 = vmul.f32 %v1715, %v191
    %v1720 = vmul.f32 %v1718, %v191
    %v1721 = vsub.f32 %v1707, %v1719
    %v1722 = vsub.f32 %v1708, %v1720
    %v1723 = vmul.f32 %v1721, %v1721
    %v1724 = vmul.f32 %v1722, %v1722
    %v1725 = vsel %vm184, %v1723, 0.0
    %1726 = vadd.xlane.f32.xlu0 %v1725
    %v1727 = vpop.xlane.xlu0 %1726
    %v1728 = vsel %vm184, %v1724, 0.0
    %1729 = vadd.xlane.f32.xlu0 %v1728
    %v1730 = vpop.xlane.xlu0 %1729
    %v1731 = vmul.f32 %v1727, %v191
    %v1732 = vmul.f32 %v1730, %v191
    %v1733 = vadd.f32 %v1731, 1e-12
    %v1734 = vadd.f32 %v1732, 1e-12
    %v1735 = vrsqrt.pop %v1733
    %v1736 = vrsqrt.pop %v1734
    %v1737 = vmul.f32 %v1721, %v1735
    %v1738 = vmul.f32 %v1722, %v1736
    %v1740 = vlaneseq
    %v1741 = vshrl.u32 %v1740, 7
    %v1742 = vsub.s32 0, %v1741
    %v1743 = vrot.slane %v1710, %v1742
    %v1745 = vmul.f32 %v1737, %v1743
    %v1746 = vmul.f32 %v1738, %v1743
    %v1748 = vlaneseq
    %v1749 = vshrl.u32 %v1748, 7
    %v1750 = vsub.s32 0, %v1749
    %v1751 = vrot.slane %v1712, %v1750
    %v1753 = vadd.f32 %v1745, %v1751
    %v1754 = vadd.f32 %v1746, %v1751
    %s1755 = scalar_lea.vmem %s16, 32
    %v1756 = vld [vmem:[%s1755] sm:$0xff]
    %v1757 = vld [vmem:[%s1755 + $0x8] sm:$0xff]
    %v1758 = vld [vmem:[%s1755 + $0x10] sm:$0xff]
    %v1759 = vld [vmem:[%s1755 + $0x18] sm:$0xff]
    %s1760 = scalar_lea.vmem %s17, 1
    %v1761 = vld [vmem:[%s1760] sm:$0x1]
    %v1763 = vlaneseq
    %v1764 = vshrl.u32 %v1763, 7
    %v1765 = vsub.s32 0, %v1764
    %v1766 = vrot.slane %v1761, %v1765
    %v1769 = vsel %vm184, %v1753, 0
    %v1772 = vsel %vm184, %v1754, 0
    %1774 = vmatprep.subr.mxu0 0.0
    %1775 = vmatpush1.msra.mxu0 %v1756
    %1776 = vmatprep.subr.mxu0 0.0
    %1777 = vmatpush1.msra.mxu0 %v1757
    %1778 = vmatprep.subr.mxu0 0.0
    %1779 = vmatpush1.msra.mxu0 %v1758
    %1780 = vmatprep.subr.mxu0 0.0
    %1781 = vmatpush1.msra.mxu0 %v1759
    %1782 = vmatprep.subr.mxu0 0.0
    %1783 = vmatpush1.msra.mxu0 0.0
    %1784 = vmatprep.subr.mxu0 0.0
    %1785 = vmatpush1.msra.mxu0 0.0
    %1786 = vmatprep.subr.mxu0 0.0
    %1787 = vmatpush1.msra.mxu0 0.0
    %1788 = vmatprep.subr.mxu0 0.0
    %1789 = vmatpush1.msra.mxu0 0.0
    %1790 = vmatprep.subr.mxu0 0.0
    %1791 = vmatpush1.msra.mxu0 0.0
    %1792 = vmatprep.subr.mxu0 0.0
    %1793 = vmatpush1.msra.mxu0 0.0
    %1794 = vmatprep.subr.mxu0 0.0
    %1795 = vmatpush1.msra.mxu0 0.0
    %1796 = vmatprep.subr.mxu0 0.0
    %1797 = vmatpush1.msra.mxu0 0.0
    %1798 = vmatprep.subr.mxu0 0.0
    %1799 = vmatpush1.msra.mxu0 0.0
    %1800 = vmatprep.subr.mxu0 0.0
    %1801 = vmatpush1.msra.mxu0 0.0
    %1802 = vmatprep.subr.mxu0 0.0
    %1803 = vmatpush1.msra.mxu0 0.0
    %1804 = vmatprep.subr.mxu0 0.0
    %1805 = vmatpush1.msra.mxu0 0.0
    %1806 = vmatprep.subr.mxu0 0.0
    %1807 = vmatpush1.msra.mxu0 0.0
    %1808 = vmatprep.subr.mxu0 0.0
    %1809 = vmatpush1.msra.mxu0 0.0
    %1810 = vmatprep.subr.mxu0 0.0
    %1811 = vmatpush1.msra.mxu0 0.0
    %1812 = vmatprep.subr.mxu0 0.0
    %1813 = vmatpush1.msra.mxu0 0.0
    %1814 = vmatprep.subr.mxu0 0.0
    %1815 = vmatpush1.msra.mxu0 0.0
    %1816 = vmatprep.subr.mxu0 0.0
    %1817 = vmatpush1.msra.mxu0 0.0
    %1818 = vmatprep.subr.mxu0 0.0
    %1819 = vmatpush1.msra.mxu0 0.0
    %1820 = vmatprep.subr.mxu0 0.0
    %1821 = vmatpush1.msra.mxu0 0.0
    %1822 = vmatprep.subr.mxu0 0.0
    %1823 = vmatpush1.msra.mxu0 0.0
    %1824 = vmatprep.subr.mxu0 0.0
    %1825 = vmatpush1.msra.mxu0 0.0
    %1826 = vmatprep.subr.mxu0 0.0
    %1827 = vmatpush1.msra.mxu0 0.0
    %1828 = vmatprep.subr.mxu0 0.0
    %1829 = vmatpush1.msra.mxu0 0.0
    %1830 = vmatprep.subr.mxu0 0.0
    %1831 = vmatpush1.msra.mxu0 0.0
    %1832 = vmatprep.subr.mxu0 0.0
    %1833 = vmatpush1.msra.mxu0 0.0
    %1834 = vmatprep.subr.mxu0 0.0
    %1835 = vmatpush1.msra.mxu0 0.0
    %1836 = vmatprep.subr.mxu0 0.0
    %1837 = vmatpush1.msra.mxu0 0.0
    %1838 = vmatprep.mubr.f32.mxu0 0.0
    %1839 = vmatmul.mubr.f32.gmra.mrb[0].mxu0 %v1769
    %v1840 = vpop.f32.mrb[0].mxu0
    %v1841 = vadd.f32 %v1766, %v1840
    %v1842 = vpop.f32.mrb[0].mxu0
    %1843 = vmatprep.mubr.f32.mxu0 0.0
    %1844 = vmatmul.mubr.f32.gmra.mrb[0].mxu0 %v1772
    %v1845 = vpop.f32.mrb[0].mxu0
    %v1846 = vadd.f32 %v1766, %v1845
    %v1847 = vpop.f32.mrb[0].mxu0
    %1848 = vdwg.mxu0
    %v1849 = vmul.f32 %v1841, 0.5
    %v1850 = vmul.f32 %v1846, 0.5
    %v1851 = vmul.f32 %v1841, 0.70710677
    %v1852 = vmul.f32 %v1846, 0.70710677
    %v1853 = vand.u32 2147483647, %v1851
    %v1854 = vand.u32 2147483647, %v1852
    %v1855 = vmul.f32 %v1853, 0.3275911
    %v1856 = vmul.f32 %v1854, 0.3275911
    %v1857 = vadd.f32 %v1855, 1.0
    %v1858 = vadd.f32 %v1856, 1.0
    %v1859 = vrcp.pop %v1857
    %v1860 = vmul.f32 1.0, %v1859
    %v1861 = vrcp.pop %v1858
    %v1862 = vmul.f32 1.0, %v1861
    %v1863 = vmul.f32 %v1860, 1.0614054
    %v1864 = vmul.f32 %v1862, 1.0614054
    %v1865 = vadd.f32 %v1863, -1.4531521
    %v1866 = vadd.f32 %v1864, -1.4531521
    %v1867 = vmul.f32 %v1865, %v1860
    %v1868 = vmul.f32 %v1866, %v1862
    %v1869 = vadd.f32 %v1867, 1.4214138
    %v1870 = vadd.f32 %v1868, 1.4214138
    %v1871 = vmul.f32 %v1869, %v1860
    %v1872 = vmul.f32 %v1870, %v1862
    %v1873 = vadd.f32 %v1871, -0.28449672
    %v1874 = vadd.f32 %v1872, -0.28449672
    %v1875 = vmul.f32 %v1873, %v1860
    %v1876 = vmul.f32 %v1874, %v1862
    %v1877 = vadd.f32 %v1875, 0.2548296
    %v1878 = vadd.f32 %v1876, 0.2548296
    %v1879 = vmul.f32 %v1877, %v1860
    %v1880 = vmul.f32 %v1878, %v1862
    %v1881 = vsub.f32 0.0, %v1853
    %v1882 = vsub.f32 0.0, %v1854
    %v1883 = vmul.f32 %v1881, %v1853
    %v1884 = vmul.f32 %v1882, %v1854
    %v1885 = vmul.f32 %v1883, 1.442695
    %v1886 = vpow.pop %v1885
    %v1887 = vmul.f32 %v1884, 1.442695
    %v1888 = vpow.pop %v1887
    %v1889 = vmul.f32 %v1879, %v1886
    %v1890 = vmul.f32 %v1880, %v1888
    %v1891 = vsub.f32 1.0, %v1889
    %v1892 = vsub.f32 1.0, %v1890
    %vm1893 = vcmp.ge.f32.partialorder %v1851, 0.0
    %vm1894 = vcmp.ge.f32.partialorder %v1852, 0.0
    %v1895 = vsub.f32 0.0, %v1891
    %v1896 = vsub.f32 0.0, %v1892
    %v1897 = vsel %vm1893, %v1891, %v1895
    %v1898 = vsel %vm1894, %v1892, %v1896
    %v1899 = vadd.f32 %v1897, 1.0
    %v1900 = vadd.f32 %v1898, 1.0
    %v1901 = vmul.f32 %v1849, %v1899
    %v1902 = vmul.f32 %v1850, %v1900
    %s1903 = scalar_lea.vmem %s18, 64
    %v1904 = vld [vmem:[%s1903] sm:$0xff]
    %v1905 = vld [vmem:[%s1903 + $0x8] sm:$0xff]
    %v1906 = vld [vmem:[%s1903 + $0x10] sm:$0xff]
    %v1907 = vld [vmem:[%s1903 + $0x18] sm:$0xff]
    %v1908 = vld [vmem:[%s1903 + $0x20] sm:$0xff]
    %v1909 = vld [vmem:[%s1903 + $0x28] sm:$0xff]
    %v1910 = vld [vmem:[%s1903 + $0x30] sm:$0xff]
    %v1911 = vld [vmem:[%s1903 + $0x38] sm:$0xff]
    %s1912 = scalar_lea.vmem %s19, 1
    %v1913 = vld [vmem:[%s1912] sm:$0x1]
    %v1915 = vlaneseq
    %v1916 = vshrl.u32 %v1915, 7
    %v1917 = vsub.s32 0, %v1916
    %v1918 = vrot.slane %v1913, %v1917
    %v1921 = vsel %vm501, %v1901, 0
    %v1924 = vsel %vm501, %v1902, 0
    %1926 = vmatprep.subr.mxu0 0.0
    %1927 = vmatpush1.msra.mxu0 %v1904
    %1928 = vmatprep.subr.mxu0 0.0
    %1929 = vmatpush1.msra.mxu0 %v1905
    %1930 = vmatprep.subr.mxu0 0.0
    %1931 = vmatpush1.msra.mxu0 %v1906
    %1932 = vmatprep.subr.mxu0 0.0
    %1933 = vmatpush1.msra.mxu0 %v1907
    %1934 = vmatprep.subr.mxu0 0.0
    %1935 = vmatpush1.msra.mxu0 %v1908
    %1936 = vmatprep.subr.mxu0 0.0
    %1937 = vmatpush1.msra.mxu0 %v1909
    %1938 = vmatprep.subr.mxu0 0.0
    %1939 = vmatpush1.msra.mxu0 %v1910
    %1940 = vmatprep.subr.mxu0 0.0
    %1941 = vmatpush1.msra.mxu0 %v1911
    %1942 = vmatprep.subr.mxu0 0.0
    %1943 = vmatpush1.msra.mxu0 0.0
    %1944 = vmatprep.subr.mxu0 0.0
    %1945 = vmatpush1.msra.mxu0 0.0
    %1946 = vmatprep.subr.mxu0 0.0
    %1947 = vmatpush1.msra.mxu0 0.0
    %1948 = vmatprep.subr.mxu0 0.0
    %1949 = vmatpush1.msra.mxu0 0.0
    %1950 = vmatprep.subr.mxu0 0.0
    %1951 = vmatpush1.msra.mxu0 0.0
    %1952 = vmatprep.subr.mxu0 0.0
    %1953 = vmatpush1.msra.mxu0 0.0
    %1954 = vmatprep.subr.mxu0 0.0
    %1955 = vmatpush1.msra.mxu0 0.0
    %1956 = vmatprep.subr.mxu0 0.0
    %1957 = vmatpush1.msra.mxu0 0.0
    %1958 = vmatprep.subr.mxu0 0.0
    %1959 = vmatpush1.msra.mxu0 0.0
    %1960 = vmatprep.subr.mxu0 0.0
    %1961 = vmatpush1.msra.mxu0 0.0
    %1962 = vmatprep.subr.mxu0 0.0
    %1963 = vmatpush1.msra.mxu0 0.0
    %1964 = vmatprep.subr.mxu0 0.0
    %1965 = vmatpush1.msra.mxu0 0.0
    %1966 = vmatprep.subr.mxu0 0.0
    %1967 = vmatpush1.msra.mxu0 0.0
    %1968 = vmatprep.subr.mxu0 0.0
    %1969 = vmatpush1.msra.mxu0 0.0
    %1970 = vmatprep.subr.mxu0 0.0
    %1971 = vmatpush1.msra.mxu0 0.0
    %1972 = vmatprep.subr.mxu0 0.0
    %1973 = vmatpush1.msra.mxu0 0.0
    %1974 = vmatprep.subr.mxu0 0.0
    %1975 = vmatpush1.msra.mxu0 0.0
    %1976 = vmatprep.subr.mxu0 0.0
    %1977 = vmatpush1.msra.mxu0 0.0
    %1978 = vmatprep.subr.mxu0 0.0
    %1979 = vmatpush1.msra.mxu0 0.0
    %1980 = vmatprep.subr.mxu0 0.0
    %1981 = vmatpush1.msra.mxu0 0.0
    %1982 = vmatprep.subr.mxu0 0.0
    %1983 = vmatpush1.msra.mxu0 0.0
    %1984 = vmatprep.subr.mxu0 0.0
    %1985 = vmatpush1.msra.mxu0 0.0
    %1986 = vmatprep.subr.mxu0 0.0
    %1987 = vmatpush1.msra.mxu0 0.0
    %1988 = vmatprep.subr.mxu0 0.0
    %1989 = vmatpush1.msra.mxu0 0.0
    %1990 = vmatprep.mubr.f32.mxu0 0.0
    %1991 = vmatmul.mubr.f32.gmra.mrb[0].mxu0 %v1921
    %v1992 = vpop.f32.mrb[0].mxu0
    %v1993 = vadd.f32 %v1918, %v1992
    %v1994 = vpop.f32.mrb[0].mxu0
    %1995 = vmatprep.mubr.f32.mxu0 0.0
    %1996 = vmatmul.mubr.f32.gmra.mrb[0].mxu0 %v1924
    %v1997 = vpop.f32.mrb[0].mxu0
    %v1998 = vadd.f32 %v1918, %v1997
    %v1999 = vpop.f32.mrb[0].mxu0
    %2000 = vdwg.mxu0
    %v2001 = vadd.f32 %v1993, %v1753
    %v2002 = vadd.f32 %v1998, %v1754
    %s2003 = scalar_lea.vmem %s20, 1
    %v2004 = vld [vmem:[%s2003] sm:$0x1]
    %s2005 = scalar_lea.vmem %s21, 1
    %v2006 = vld [vmem:[%s2005] sm:$0x1]
    %v2007 = vsel %vm184, %v2001, 0.0
    %2008 = vadd.xlane.f32.xlu0 %v2007
    %v2009 = vpop.xlane.xlu0 %2008
    %v2010 = vsel %vm184, %v2002, 0.0
    %2011 = vadd.xlane.f32.xlu0 %v2010
    %v2012 = vpop.xlane.xlu0 %2011
    %v2013 = vmul.f32 %v2009, %v191
    %v2014 = vmul.f32 %v2012, %v191
    %v2015 = vsub.f32 %v2001, %v2013
    %v2016 = vsub.f32 %v2002, %v2014
    %v2017 = vmul.f32 %v2015, %v2015
    %v2018 = vmul.f32 %v2016, %v2016
    %v2019 = vsel %vm184, %v2017, 0.0
    %2020 = vadd.xlane.f32.xlu0 %v2019
    %v2021 = vpop.xlane.xlu0 %2020
    %v2022 = vsel %vm184, %v2018, 0.0
    %2023 = vadd.xlane.f32.xlu0 %v2022
    %v2024 = vpop.xlane.xlu0 %2023
    %v2025 = vmul.f32 %v2021, %v191
    %v2026 = vmul.f32 %v2024, %v191
    %v2027 = vadd.f32 %v2025, 1e-12
    %v2028 = vadd.f32 %v2026, 1e-12
    %v2029 = vrsqrt.pop %v2027
    %v2030 = vrsqrt.pop %v2028
    %v2031 = vmul.f32 %v2015, %v2029
    %v2032 = vmul.f32 %v2016, %v2030
    %v2034 = vlaneseq
    %v2035 = vshrl.u32 %v2034, 7
    %v2036 = vsub.s32 0, %v2035
    %v2037 = vrot.slane %v2004, %v2036
    %v2039 = vmul.f32 %v2031, %v2037
    %v2040 = vmul.f32 %v2032, %v2037
    %v2042 = vlaneseq
    %v2043 = vshrl.u32 %v2042, 7
    %v2044 = vsub.s32 0, %v2043
    %v2045 = vrot.slane %v2006, %v2044
    %v2047 = vadd.f32 %v2039, %v2045
    %v2048 = vadd.f32 %v2040, %v2045
    %v2049 = vld [vmem:[%s5] sm:$0x3]
    %vm2050 = vcmask 130048
    %v2052 = vsel %vm2050, %v2049, 0
    %2054 = vmatprep.subr.mxu0 0.0
    %2055 = vmatpush1.msra.mxu0 %v2047
    %2056 = vmatprep.subr.mxu0 0.0
    %2057 = vmatpush1.msra.mxu0 %v2048
    %2058 = vmatprep.subr.mxu0 0.0
    %2059 = vmatpush1.msra.mxu0 0.0
    %2060 = vmatprep.subr.mxu0 0.0
    %2061 = vmatpush1.msra.mxu0 0.0
    %2062 = vmatprep.subr.mxu0 0.0
    %2063 = vmatpush1.msra.mxu0 0.0
    %2064 = vmatprep.subr.mxu0 0.0
    %2065 = vmatpush1.msra.mxu0 0.0
    %2066 = vmatprep.subr.mxu0 0.0
    %2067 = vmatpush1.msra.mxu0 0.0
    %2068 = vmatprep.subr.mxu0 0.0
    %2069 = vmatpush1.msra.mxu0 0.0
    %2070 = vmatprep.subr.mxu0 0.0
    %2071 = vmatpush1.msra.mxu0 0.0
    %2072 = vmatprep.subr.mxu0 0.0
    %2073 = vmatpush1.msra.mxu0 0.0
    %2074 = vmatprep.subr.mxu0 0.0
    %2075 = vmatpush1.msra.mxu0 0.0
    %2076 = vmatprep.subr.mxu0 0.0
    %2077 = vmatpush1.msra.mxu0 0.0
    %2078 = vmatprep.subr.mxu0 0.0
    %2079 = vmatpush1.msra.mxu0 0.0
    %2080 = vmatprep.subr.mxu0 0.0
    %2081 = vmatpush1.msra.mxu0 0.0
    %2082 = vmatprep.subr.mxu0 0.0
    %2083 = vmatpush1.msra.mxu0 0.0
    %2084 = vmatprep.subr.mxu0 0.0
    %2085 = vmatpush1.msra.mxu0 0.0
    %2086 = vmatprep.subr.mxu0 0.0
    %2087 = vmatpush1.msra.mxu0 0.0
    %2088 = vmatprep.subr.mxu0 0.0
    %2089 = vmatpush1.msra.mxu0 0.0
    %2090 = vmatprep.subr.mxu0 0.0
    %2091 = vmatpush1.msra.mxu0 0.0
    %2092 = vmatprep.subr.mxu0 0.0
    %2093 = vmatpush1.msra.mxu0 0.0
    %2094 = vmatprep.subr.mxu0 0.0
    %2095 = vmatpush1.msra.mxu0 0.0
    %2096 = vmatprep.subr.mxu0 0.0
    %2097 = vmatpush1.msra.mxu0 0.0
    %2098 = vmatprep.subr.mxu0 0.0
    %2099 = vmatpush1.msra.mxu0 0.0
    %2100 = vmatprep.subr.mxu0 0.0
    %2101 = vmatpush1.msra.mxu0 0.0
    %2102 = vmatprep.subr.mxu0 0.0
    %2103 = vmatpush1.msra.mxu0 0.0
    %2104 = vmatprep.subr.mxu0 0.0
    %2105 = vmatpush1.msra.mxu0 0.0
    %2106 = vmatprep.subr.mxu0 0.0
    %2107 = vmatpush1.msra.mxu0 0.0
    %2108 = vmatprep.subr.mxu0 0.0
    %2109 = vmatpush1.msra.mxu0 0.0
    %2110 = vmatprep.subr.mxu0 0.0
    %2111 = vmatpush1.msra.mxu0 0.0
    %2112 = vmatprep.subr.mxu0 0.0
    %2113 = vmatpush1.msra.mxu0 0.0
    %2114 = vmatprep.subr.mxu0 0.0
    %2115 = vmatpush1.msra.mxu0 0.0
    %2116 = vmatprep.subr.mxu0 0.0
    %2117 = vmatpush1.msra.mxu0 0.0
    %2118 = vmatprep.mubr.f32.mxu0 0.0
    %2119 = vmatmul.mubr.f32.gmra.mrb[0].mxu0 %v2052
    %v2120 = vpop.f32.mrb[0].mxu0
    %v2121 = vadd.f32 0.0, %v2120
    %v2122 = vpop.f32.mrb[0].mxu0
    %2123 = vdwg.mxu0
    %v2124 = vld [vmem:[%s22] sm:$0xff]
    %v2125 = vld [vmem:[%s22 + $0x8] sm:$0xff]
    %v2126 = vld [vmem:[%s22 + $0x10] sm:$0xff]
    %v2127 = vld [vmem:[%s22 + $0x18] sm:$0xff]
    %v2128 = vld [vmem:[%s23] sm:$0x1]
    %v2130 = vlaneseq
    %v2131 = vshrl.u32 %v2130, 7
    %v2132 = vsub.s32 0, %v2131
    %v2133 = vrot.slane %v2128, %v2132
    %v2136 = vsel %vm184, %v2121, 0
    %2138 = vmatprep.subr.mxu0 0.0
    %2139 = vmatpush1.msra.mxu0 %v2124
    %2140 = vmatprep.subr.mxu0 0.0
    %2141 = vmatpush1.msra.mxu0 %v2125
    %2142 = vmatprep.subr.mxu0 0.0
    %2143 = vmatpush1.msra.mxu0 %v2126
    %2144 = vmatprep.subr.mxu0 0.0
    %2145 = vmatpush1.msra.mxu0 %v2127
    %2146 = vmatprep.subr.mxu0 0.0
    %2147 = vmatpush1.msra.mxu0 0.0
    %2148 = vmatprep.subr.mxu0 0.0
    %2149 = vmatpush1.msra.mxu0 0.0
    %2150 = vmatprep.subr.mxu0 0.0
    %2151 = vmatpush1.msra.mxu0 0.0
    %2152 = vmatprep.subr.mxu0 0.0
    %2153 = vmatpush1.msra.mxu0 0.0
    %2154 = vmatprep.subr.mxu0 0.0
    %2155 = vmatpush1.msra.mxu0 0.0
    %2156 = vmatprep.subr.mxu0 0.0
    %2157 = vmatpush1.msra.mxu0 0.0
    %2158 = vmatprep.subr.mxu0 0.0
    %2159 = vmatpush1.msra.mxu0 0.0
    %2160 = vmatprep.subr.mxu0 0.0
    %2161 = vmatpush1.msra.mxu0 0.0
    %2162 = vmatprep.subr.mxu0 0.0
    %2163 = vmatpush1.msra.mxu0 0.0
    %2164 = vmatprep.subr.mxu0 0.0
    %2165 = vmatpush1.msra.mxu0 0.0
    %2166 = vmatprep.subr.mxu0 0.0
    %2167 = vmatpush1.msra.mxu0 0.0
    %2168 = vmatprep.subr.mxu0 0.0
    %2169 = vmatpush1.msra.mxu0 0.0
    %2170 = vmatprep.subr.mxu0 0.0
    %2171 = vmatpush1.msra.mxu0 0.0
    %2172 = vmatprep.subr.mxu0 0.0
    %2173 = vmatpush1.msra.mxu0 0.0
    %2174 = vmatprep.subr.mxu0 0.0
    %2175 = vmatpush1.msra.mxu0 0.0
    %2176 = vmatprep.subr.mxu0 0.0
    %2177 = vmatpush1.msra.mxu0 0.0
    %2178 = vmatprep.subr.mxu0 0.0
    %2179 = vmatpush1.msra.mxu0 0.0
    %2180 = vmatprep.subr.mxu0 0.0
    %2181 = vmatpush1.msra.mxu0 0.0
    %2182 = vmatprep.subr.mxu0 0.0
    %2183 = vmatpush1.msra.mxu0 0.0
    %2184 = vmatprep.subr.mxu0 0.0
    %2185 = vmatpush1.msra.mxu0 0.0
    %2186 = vmatprep.subr.mxu0 0.0
    %2187 = vmatpush1.msra.mxu0 0.0
    %2188 = vmatprep.subr.mxu0 0.0
    %2189 = vmatpush1.msra.mxu0 0.0
    %2190 = vmatprep.subr.mxu0 0.0
    %2191 = vmatpush1.msra.mxu0 0.0
    %2192 = vmatprep.subr.mxu0 0.0
    %2193 = vmatpush1.msra.mxu0 0.0
    %2194 = vmatprep.subr.mxu0 0.0
    %2195 = vmatpush1.msra.mxu0 0.0
    %2196 = vmatprep.subr.mxu0 0.0
    %2197 = vmatpush1.msra.mxu0 0.0
    %2198 = vmatprep.subr.mxu0 0.0
    %2199 = vmatpush1.msra.mxu0 0.0
    %2200 = vmatprep.subr.mxu0 0.0
    %2201 = vmatpush1.msra.mxu0 0.0
    %2202 = vmatprep.mubr.f32.mxu0 0.0
    %2203 = vmatmul.mubr.f32.gmra.mrb[0].mxu0 %v2136
    %v2204 = vpop.f32.mrb[0].mxu0
    %v2205 = vadd.f32 %v2133, %v2204
    %v2206 = vpop.f32.mrb[0].mxu0
    %2207 = vdwg.mxu0
    %v2208 = vmax.f32 %v2205, 0.0
    %v2209 = vld [vmem:[%s24] sm:$0xff]
    %v2210 = vld [vmem:[%s24 + $0x8] sm:$0xff]
    %v2211 = vld [vmem:[%s24 + $0x10] sm:$0xff]
    %v2212 = vld [vmem:[%s24 + $0x18] sm:$0xff]
    %v2213 = vld [vmem:[%s25] sm:$0x1]
    %v2215 = vlaneseq
    %v2216 = vshrl.u32 %v2215, 7
    %v2217 = vsub.s32 0, %v2216
    %v2218 = vrot.slane %v2213, %v2217
    %v2221 = vsel %vm184, %v2208, 0
    %2223 = vmatprep.subr.mxu0 0.0
    %2224 = vmatpush1.msra.mxu0 %v2209
    %2225 = vmatprep.subr.mxu0 0.0
    %2226 = vmatpush1.msra.mxu0 %v2210
    %2227 = vmatprep.subr.mxu0 0.0
    %2228 = vmatpush1.msra.mxu0 %v2211
    %2229 = vmatprep.subr.mxu0 0.0
    %2230 = vmatpush1.msra.mxu0 %v2212
    %2231 = vmatprep.subr.mxu0 0.0
    %2232 = vmatpush1.msra.mxu0 0.0
    %2233 = vmatprep.subr.mxu0 0.0
    %2234 = vmatpush1.msra.mxu0 0.0
    %2235 = vmatprep.subr.mxu0 0.0
    %2236 = vmatpush1.msra.mxu0 0.0
    %2237 = vmatprep.subr.mxu0 0.0
    %2238 = vmatpush1.msra.mxu0 0.0
    %2239 = vmatprep.subr.mxu0 0.0
    %2240 = vmatpush1.msra.mxu0 0.0
    %2241 = vmatprep.subr.mxu0 0.0
    %2242 = vmatpush1.msra.mxu0 0.0
    %2243 = vmatprep.subr.mxu0 0.0
    %2244 = vmatpush1.msra.mxu0 0.0
    %2245 = vmatprep.subr.mxu0 0.0
    %2246 = vmatpush1.msra.mxu0 0.0
    %2247 = vmatprep.subr.mxu0 0.0
    %2248 = vmatpush1.msra.mxu0 0.0
    %2249 = vmatprep.subr.mxu0 0.0
    %2250 = vmatpush1.msra.mxu0 0.0
    %2251 = vmatprep.subr.mxu0 0.0
    %2252 = vmatpush1.msra.mxu0 0.0
    %2253 = vmatprep.subr.mxu0 0.0
    %2254 = vmatpush1.msra.mxu0 0.0
    %2255 = vmatprep.subr.mxu0 0.0
    %2256 = vmatpush1.msra.mxu0 0.0
    %2257 = vmatprep.subr.mxu0 0.0
    %2258 = vmatpush1.msra.mxu0 0.0
    %2259 = vmatprep.subr.mxu0 0.0
    %2260 = vmatpush1.msra.mxu0 0.0
    %2261 = vmatprep.subr.mxu0 0.0
    %2262 = vmatpush1.msra.mxu0 0.0
    %2263 = vmatprep.subr.mxu0 0.0
    %2264 = vmatpush1.msra.mxu0 0.0
    %2265 = vmatprep.subr.mxu0 0.0
    %2266 = vmatpush1.msra.mxu0 0.0
    %2267 = vmatprep.subr.mxu0 0.0
    %2268 = vmatpush1.msra.mxu0 0.0
    %2269 = vmatprep.subr.mxu0 0.0
    %2270 = vmatpush1.msra.mxu0 0.0
    %2271 = vmatprep.subr.mxu0 0.0
    %2272 = vmatpush1.msra.mxu0 0.0
    %2273 = vmatprep.subr.mxu0 0.0
    %2274 = vmatpush1.msra.mxu0 0.0
    %2275 = vmatprep.subr.mxu0 0.0
    %2276 = vmatpush1.msra.mxu0 0.0
    %2277 = vmatprep.subr.mxu0 0.0
    %2278 = vmatpush1.msra.mxu0 0.0
    %2279 = vmatprep.subr.mxu0 0.0
    %2280 = vmatpush1.msra.mxu0 0.0
    %2281 = vmatprep.subr.mxu0 0.0
    %2282 = vmatpush1.msra.mxu0 0.0
    %2283 = vmatprep.subr.mxu0 0.0
    %2284 = vmatpush1.msra.mxu0 0.0
    %2285 = vmatprep.subr.mxu0 0.0
    %2286 = vmatpush1.msra.mxu0 0.0
    %2287 = vmatprep.mubr.f32.mxu0 0.0
    %2288 = vmatmul.mubr.f32.gmra.mrb[0].mxu0 %v2221
    %v2289 = vpop.f32.mrb[0].mxu0
    %v2290 = vadd.f32 %v2218, %v2289
    %v2291 = vpop.f32.mrb[0].mxu0
    %2292 = vdwg.mxu0
    %vm2293 = vcmask 9216
    %2294 = vst.msk [vmem:[#allocation2] sm:$0x3] %vm2293, %v2290
    %v2295 = vsel %vm2293, %v2290, -inf
    %2296 = vmax.xlane.f32.xlu0 %v2295
    %v2297 = vpop.xlane.xlu0 %2296
    %v2298 = vsub.f32 %v2290, %v2297
    %v2299 = vmul.f32 %v2298, 1.442695
    %v2300 = vpow.pop %v2299
    %v2301 = vsel %vm2293, %v2300, 0.0
    %2302 = vadd.xlane.f32.xlu0 %v2301
    %v2303 = vpop.xlane.xlu0 %2302
    %v2304 = vrcp.pop %v2303
    %v2305 = vmul.f32 %v2300, %v2304
    %2306 = vst.msk [vmem:[#allocation4] sm:$0x3] %vm2293, %v2305
    %v2307 = vlog2.pop %v2303
    %v2308 = vmul.f32 %v2307, 0.6931472
    %v2309 = vsub.f32 %v2298, %v2308
    %v2310 = vld [vmem:[%s6] sm:$0x3]
    %v2311 = vmul.f32 %v2310, %v2309
    %v2312 = vsel %vm2293, %v2311, 0.0
    %2313 = vadd.xlane.f32.xlu0 %v2312
    %v2314 = vpop.xlane.xlu0 %2313
    %v2315 = vsub.f32 0.0, %v2314
    %vm2316 = vcmask 1041408
    %v2317 = vsel %vm2316, %v2315, 0.0
    %v2318 = vrot.slane %v2317, 4
    %v2319 = vadd.f32 %v2317, %v2318
    %v2320 = vrot.slane %v2319, 2
    %v2321 = vadd.f32 %v2319, %v2320
    %v2322 = vrot.slane %v2321, 1
    %v2323 = vadd.f32 %v2321, %v2322
    %v2324 = vmul.f32 %v2323, 0.5
    %vm2325 = vcmask 0
    %2326 = vst.msk [vmem:[#allocation6] sm:$0x1] %vm2325, %v2324
    // Predicated region
    $region106: #{distilbert_forward.1} parent=1 // pred_check
      _
    $region107: #{distilbert_forward.1} parent=1 // pred_check_branch
      %2328 = sbr.rel (0) target = $region109
    $region108: #{distilbert_forward.1} parent=1 // pred_region
      %s2330 = ssub.s32 32, 32
      %2331 = vsyncadd [#allocation3], %s2330
      %s2333 = sshll.u32 [#allocation2], 4
      %s2334 = int_to_ptr.vmem [resolvable:$true] %s2333
      %2336 = dma.vmem_to_hbm [thread:$0]  %s2334, 32, %s26, [#allocation3]
    $region109: #{distilbert_forward.1} parent=1 // pred_fallthru
      _
    // Predicated region
    $region110: #{distilbert_forward.1} parent=1 // pred_check
      _
    $region111: #{distilbert_forward.1} parent=1 // pred_check_branch
      %2338 = sbr.rel (0) target = $region113
    $region112: #{distilbert_forward.1} parent=1 // pred_region
      %s2340 = ssub.s32 32, 32
      %2341 = vsyncadd [#allocation5], %s2340
      %s2343 = sshll.u32 [#allocation4], 4
      %s2344 = int_to_ptr.vmem [resolvable:$true] %s2343
      %2346 = dma.vmem_to_hbm [thread:$0]  %s2344, 32, %s27, [#allocation5]
    $region113: #{distilbert_forward.1} parent=1 // pred_fallthru
      _
    // Predicated region
    $region114: #{distilbert_forward.1} parent=1 // pred_check
      _
    $region115: #{distilbert_forward.1} parent=1 // pred_check_branch
      %2348 = sbr.rel (0) target = $region117
    $region116: #{distilbert_forward.1} parent=1 // pred_region
      %s2350 = ssub.s32 16, 16
      %2351 = vsyncadd [#allocation5], %s2350
      %s2353 = sshll.u32 [#allocation6], 4
      %s2354 = int_to_ptr.vmem [resolvable:$true] %s2353
      %2356 = dma.vmem_to_hbm [thread:$0]  %s2354, 16, %s28, [#allocation5]
    $region117: #{distilbert_forward.1} parent=1 // pred_fallthru
      _
    // Predicated region
    $region118: #{distilbert_forward.1} parent=1 // pred_check
      _
    $region119: #{distilbert_forward.1} parent=1 // pred_check_branch
      %2358 = sbr.rel (0) target = $region121
    $region120: #{distilbert_forward.1} parent=1 // pred_region
      %2359 = dma.done [#allocation3], 32
    $region121: #{distilbert_forward.1} parent=1 // pred_fallthru
      _
    // Predicated region
    $region122: #{distilbert_forward.1} parent=1 // pred_check
      _
    $region123: #{distilbert_forward.1} parent=1 // pred_check_branch
      %2361 = sbr.rel (0) target = $region125
    $region124: #{distilbert_forward.1} parent=1 // pred_region
      %2362 = dma.done [#allocation5], 32
    $region125: #{distilbert_forward.1} parent=1 // pred_fallthru
      _
    // Predicated region
    $region126: #{distilbert_forward.1} parent=1 // pred_check
      _
    $region127: #{distilbert_forward.1} parent=1 // pred_check_branch
      %2364 = sbr.rel (0) target = $region129
    $region128: #{distilbert_forward.1} parent=1 // pred_region
      %2365 = dma.done [#allocation5], 16
    $region129: #{distilbert_forward.1} parent=1 // pred_fallthru
      _
    %2366 = vsyncpa [#allocation3], 1
    %2367 = vsyncpa [#allocation5], 1

</llo_original>
